<compile_context>
chip_gen: v5e
topology: v5e:2x2
jax: 0.10.0
libtpu: 0.0.40
codegen_flags: <defaults>
</compile_context>

<pallas_src>
import functools

import jax
import jax.numpy as jnp
from jax.experimental import pallas as pl
from jax.experimental.pallas import tpu as pltpu

ROW_TILE_CAP = 512     # rows; large tiles get close to the HBM roofline


def _vmem_budget():
    """Generation-aware VMEM budgeting (v5e/v6e: 128 MiB, v7x: 64 MiB physical)."""
    try:
        cap = int(pltpu.get_tpu_info().vmem_capacity_bytes)
    except Exception:                      # not queryable -> assume v7x's 64 MiB
        cap = 64 * 1024 * 1024
    limit = (cap * 7) // 10                # explicit scoped-VMEM limit with headroom
    return limit, limit // 3               # (vmem_limit_bytes, per-step block budget)


def _pick_row_tile(r, per_row_bytes, fixed_bytes, budget, cap=ROW_TILE_CAP):
    """Largest divisor of r (<= cap) whose per-step VMEM footprint fits the budget."""
    best = 1
    for th in range(1, min(r, cap) + 1):
        if r % th == 0 and fixed_bytes + th * per_row_bytes <= budget:
            best = th
    return best


# ----------------------------------------------------------------------------
# MaxPool2d(2)
# ----------------------------------------------------------------------------
def _maxpool2_kernel(x_ref, o_ref):
    """x_ref: (TH, 2, Wo, 2*C) -- row pair in dim 1, W pair folded into the lane dim.
    o_ref: (TH, Wo, C)."""
    c = o_ref.shape[-1]
    x = x_ref[...]
    m = jnp.maximum(x[..., :c], x[..., c:])            # max over W pairs
    m = jnp.maximum(m[:, 0, :, :], m[:, 1, :, :])      # max over H pairs
    o_ref[...] = m.astype(o_ref.dtype)


def maxpool2x2(x):
    """(N, H, W, C) f32 -> (N, H//2, W//2, C) bf16. Batch folded into the row axis."""
    n, h, w, c = x.shape
    ho, wo = h // 2, w // 2
    r = n * ho
    # Contiguity-preserving HBM reshape: W pairs land in the lane dim, row pairs in a
    # leading dim, batch folded into the row axis (bigger blocks, more grid steps).
    xr = x.reshape(r, 2, wo, 2 * c)
    limit, budget = _vmem_budget()
    per_row = 2 * (2 * wo * 2 * c * 4) + 2 * (wo * c * 2)   # dbl-buffered in + out blocks
    th = _pick_row_tile(r, per_row, 0, budget)
    out = pl.pallas_call(
        _maxpool2_kernel,
        out_shape=jax.ShapeDtypeStruct((r, wo, c), jnp.bfloat16),
        grid=(r // th,),
        in_specs=[pl.BlockSpec((th, 2, wo, 2 * c), lambda t: (t, 0, 0, 0))],
        out_specs=pl.BlockSpec((th, wo, c), lambda t: (t, 0, 0)),
        compiler_params=pltpu.CompilerParams(
            dimension_semantics=("parallel",), vmem_limit_bytes=limit),
    )(xr)
    return out.reshape(n, ho, wo, c)


# ----------------------------------------------------------------------------
# 3x3 conv with fused input-side BN+ReLU and output-side BN statistics
# ----------------------------------------------------------------------------
def _conv3x3_kernel(x_ref, top_ref, bot_ref, w_ref, scale_ref, shift_ref,
                    y_ref, stat_ref, xpad_ref, *, apply_input_act):
    """One (batch, row-tile) step of a 3x3 'same' convolution.

    x_ref:     (TH, W, Cin)     rows of this tile (previous-stage values, bf16)
    top_ref:   (1, W, Cin)      row above the tile (clamped; used only when t > 0)
    bot_ref:   (1, W, Cin)      row below the tile (clamped; used only when t < T-1)
    w_ref:     (3, 3, Cin, Cout) bf16 weights (HWIO)
    scale_ref: (1, 1, Cin)      previous layer's folded BN scale (unused for layer 1)
    shift_ref: (1, 1, Cin)      previous layer's folded BN shift
    y_ref:     (TH, W, Cout)    raw conv output (bf16)
    stat_ref:  (2, Cout)        per-block [sum, centred M2] of the f32 conv output
    xpad_ref:  VMEM scratch (TH+2, W+2, Cin) bf16; zero halo == 'same' padding
    """
    th, w, cin = x_ref.shape
    cout = y_ref.shape[-1]
    t = pl.program_id(1)
    last = pl.num_programs(1) - 1

    def act(ref):
        if not apply_input_act:
            return ref[...]                                     # already bf16
        v = ref[...].astype(jnp.float32)                        # BN affine + ReLU in f32
        v = jnp.maximum(v * scale_ref[...] + shift_ref[...], 0.0)
        return v.astype(jnp.bfloat16)

    # ---- assemble the zero-padded halo block (only the halo is written with zeros;
    # the interior is fully overwritten -> no full-scratch zero-init) ---------------
    zero_col = jnp.zeros((th + 2, 1, cin), jnp.bfloat16)
    zero_row = jnp.zeros((1, w, cin), jnp.bfloat16)
    xpad_ref[:, 0:1, :] = zero_col                 # left 'same' column (covers corners)
    xpad_ref[:, w + 1:w + 2, :] = zero_col         # right 'same' column (covers corners)
    xpad_ref[1:th + 1, 1:w + 1, :] = act(x_ref)    # interior rows
    # TODO(synk): keep this interior store sublane-aligned (v5e vst-slot pressure).

    @pl.when(t == 0)
    def _():
        xpad_ref[0:1, 1:w + 1, :] = zero_row                    # image top border

    @pl.when(t > 0)
    def _():
        xpad_ref[0:1, 1:w + 1, :] = act(top_ref)                # halo row from above

    @pl.when(t == last)
    def _():
        xpad_ref[th + 1:th + 2, 1:w + 1, :] = zero_row          # image bottom border

    @pl.when(t < last)
    def _():
        xpad_ref[th + 1:th + 2, 1:w + 1, :] = act(bot_ref)      # halo row from below

    # ---- 9 accumulating MXU dots (K = Cin each); no im2col materialisation --------
    acc = jnp.zeros((th * w, cout), jnp.float32)
    for kh in range(3):
        for kw in range(3):
            lhs = xpad_ref[kh:kh + th, kw:kw + w, :].reshape(th * w, cin)
            acc = acc + jnp.dot(lhs, w_ref[kh, kw],
                                preferred_element_type=jnp.float32)

    y_ref[...] = acc.reshape(th, w, cout).astype(y_ref.dtype)

    # ---- per-block BatchNorm statistics: (sum, centred M2) combined Chan-style in
    # the wrapper (numerically stable; no HBM re-read of the conv output) -----------
    m = th * w
    bsum = jnp.sum(acc, axis=0, keepdims=True)
    diff = acc - bsum / m
    bm2 = jnp.sum(diff * diff, axis=0, keepdims=True)
    stat_ref[...] = jnp.concatenate([bsum, bm2], axis=0)


def conv3x3_bn(x, w4, in_scale, in_shift, *, apply_input_act, row_tile=None):
    """x: (N, H, W, Cin) bf16, w4: (3, 3, Cin, Cout) bf16.
    Returns raw conv output y (bf16) and per-block BN stats (N, T, 2, Cout) f32."""
    n, h, w_sp, cin = x.shape
    cout = w4.shape[-1]
    limit, budget = _vmem_budget()
    # fixed VMEM: double-buffered weight + 1-row halo streams + scale/shift + stats
    fixed = 2 * (9 * cin * cout * 2) + 2 * 2 * (w_sp * cin * 2) \
        + 2 * (2 * cin * 4) + 2 * (2 * cout * 4)
    # per-row VMEM: dbl-buffered bf16 in/out blocks + bf16 halo scratch + f32 acc +
    # transient f32 activation / bf16 tap-slice copies
    per_row = 2 * (w_sp * cin * 2) + 2 * (w_sp * cout * 2) + ((w_sp + 2) * cin * 2) \
        + (w_sp * cout * 4) + (w_sp * cin * 4) + 2 * (w_sp * cin * 2)
    th = row_tile if row_tile is not None else _pick_row_tile(h, per_row, fixed, budget)
    assert h % th == 0, (h, th)
    t_tiles = h // th

    kernel = functools.partial(_conv3x3_kernel, apply_input_act=apply_input_act)
    y, stats = pl.pallas_call(
        kernel,
        out_shape=(jax.ShapeDtypeStruct((n, h, w_sp, cout), jnp.bfloat16),
                   jax.ShapeDtypeStruct((n, t_tiles, 2, cout), jnp.float32)),
        grid=(n, t_tiles),
        in_specs=[
            pl.BlockSpec((None, th, w_sp, cin), lambda i, t: (i, t, 0, 0)),
            # 1-row halo streams (row index clamped at the image borders; the kernel
            # only consumes them when the neighbour row actually exists).
            pl.BlockSpec((None, 1, w_sp, cin),
                         lambda i, t: (i, jnp.maximum(t * th - 1, 0), 0, 0)),
            pl.BlockSpec((None, 1, w_sp, cin),
                         lambda i, t: (i, jnp.minimum((t + 1) * th, h - 1), 0, 0)),
            # Grid-invariant operands.  (Single-buffering via pipeline_mode would save
            # one weight copy on v7x; its double-buffered size is budgeted in `fixed`.)
            pl.BlockSpec((3, 3, cin, cout), lambda i, t: (0, 0, 0, 0)),
            pl.BlockSpec((1, 1, cin), lambda i, t: (0, 0, 0)),
            pl.BlockSpec((1, 1, cin), lambda i, t: (0, 0, 0)),
        ],
        out_specs=(
            pl.BlockSpec((None, th, w_sp, cout), lambda i, t: (i, t, 0, 0)),
            pl.BlockSpec((None, None, 2, cout), lambda i, t: (i, t, 0, 0)),
        ),
        scratch_shapes=[pltpu.VMEM((th + 2, w_sp + 2, cin), jnp.bfloat16)],
        compiler_params=pltpu.CompilerParams(
            dimension_semantics=("parallel", "parallel"),
            vmem_limit_bytes=limit),
    )(x, x, x, w4, in_scale, in_shift)
    return y, stats


# ----------------------------------------------------------------------------
# Standalone BN affine + ReLU (final layer only)
# ----------------------------------------------------------------------------
def _bn_relu_kernel(x_ref, scale_ref, shift_ref, o_ref):
    y = x_ref[...].astype(jnp.float32) * scale_ref[...] + shift_ref[...]
    o_ref[...] = jnp.maximum(y, 0.0).astype(o_ref.dtype)


def bn_relu(x, scale, shift):
    """(N, H, W, C) bf16 -> (N, H, W, C) f32. Batch folded into the row axis."""
    n, h, w, c = x.shape
    r = n * h
    xr = x.reshape(r, w, c)
    limit, budget = _vmem_budget()
    per_row = 2 * (w * c * 2) + 2 * (w * c * 4) + (w * c * 4)
    th = _pick_row_tile(r, per_row, 0, budget)
    out = pl.pallas_call(
        _bn_relu_kernel,
        out_shape=jax.ShapeDtypeStruct((r, w, c), jnp.float32),
        grid=(r // th,),
        in_specs=[pl.BlockSpec((th, w, c), lambda t: (t, 0, 0)),
                  pl.BlockSpec((1, 1, c), lambda t: (0, 0, 0)),
                  pl.BlockSpec((1, 1, c), lambda t: (0, 0, 0))],
        out_specs=pl.BlockSpec((th, w, c), lambda t: (t, 0, 0)),
        compiler_params=pltpu.CompilerParams(
            dimension_semantics=("parallel",), vmem_limit_bytes=limit),
    )(xr, scale, shift)
    return out.reshape(n, h, w, c)


def _bn_affine_from_stats(stats, gamma, beta, total_count, eps):
    """Fold training-mode BatchNorm (batch mean, biased variance) into scale/shift.

    stats: (N, T, 2, C) per-block [sum, centred M2]; combined with Chan's parallel
    variance algorithm (avoids E[x^2]-E[x]^2 catastrophic cancellation)."""
    n_blocks = stats.shape[0] * stats.shape[1]
    blk_count = total_count // n_blocks
    bsum = stats[:, :, 0, :]
    bm2 = stats[:, :, 1, :]
    mean = jnp.sum(bsum, axis=(0, 1)) / total_count
    dmean = bsum / blk_count - mean
    m2 = jnp.sum(bm2, axis=(0, 1)) + blk_count * jnp.sum(dmean * dmean, axis=(0, 1))
    var = jnp.maximum(m2 / total_count, 0.0)
    scale = gamma * jax.lax.rsqrt(var + eps)
    shift = beta - mean * scale
    return scale.reshape(1, 1, -1), shift.reshape(1, 1, -1)


# ----------------------------------------------------------------------------
# Down2 forward
# ----------------------------------------------------------------------------
def down2(x_nchw, params, *, eps=1e-5, row_tile=None):
    """Down2: MaxPool2d(2) -> (Conv3x3 -> BN -> ReLU) x 2.  NCHW in, NCHW out."""
    w1, g1, b1 = params["w1"], params["gamma1"], params["beta1"]
    w2, g2, b2 = params["w2"], params["gamma2"], params["beta2"]
    n, cin, h, w = x_nchw.shape

    # NCHW -> NHWC at the TRUE channel count (no 128-lane padding of activations: that
    # would inflate HBM traffic and MXU K by 16-32x for small Cin/Cout).
    x = jnp.transpose(x_nchw, (0, 2, 3, 1)).astype(jnp.float32)

    xp = maxpool2x2(x)                                  # (N, H/2, W/2, Cin) bf16
    hp, wp = h // 2, w // 2
    count = n * hp * wp

    ident_s = jnp.ones((1, 1, cin), jnp.float32)
    ident_b = jnp.zeros((1, 1, cin), jnp.float32)
    # layer 1: conv + BN statistics (no input-side affine)
    y1, st1 = conv3x3_bn(xp, w1, ident_s, ident_b,
                         apply_input_act=False, row_tile=row_tile)
    scale1, shift1 = _bn_affine_from_stats(st1, g1, b1, count, eps)
    # layer 2: BN1 affine + ReLU fused into conv2's input path + BN2 statistics
    y2, st2 = conv3x3_bn(y1, w2, scale1, shift1,
                         apply_input_act=True, row_tile=row_tile)
    scale2, shift2 = _bn_affine_from_stats(st2, g2, b2, count, eps)
    # final standalone BN affine + ReLU
    out = bn_relu(y2, scale2, shift2)                   # (N, H/2, W/2, Cout) f32
    return jnp.transpose(out, (0, 3, 1, 2))             # NHWC -> NCHW


# ----------------------------------------------------------------------------
# Parameters (PyTorch layout) and kernel-side preparation
# ----------------------------------------------------------------------------
def make_params(key, in_channels, out_channels, mid_channels=None):
    """Raw PyTorch-layout parameters for Down2's DoubleConv (BN: gamma=1, beta=0)."""
    if not mid_channels:
        mid_channels = out_channels
    k1, k2 = jax.random.split(key)
    w1 = 0.1 * jax.random.normal(k1, (mid_channels, in_channels, 3, 3), jnp.float32)
    w2 = 0.1 * jax.random.normal(k2, (out_channels, mid_channels, 3, 3), jnp.float32)
    return [
        (w1, jnp.ones((mid_channels,), jnp.float32), jnp.zeros((mid_channels,), jnp.float32)),
        (w2, jnp.ones((out_channels,), jnp.float32), jnp.zeros((out_channels,), jnp.float32)),
    ]


def prepare_params(raw_params):
    """PyTorch (Cout, Cin, 3, 3) weights -> bf16 HWIO (3, 3, Cin, Cout), no padding."""
    (w1, g1, b1), (w2, g2, b2) = raw_params

    def prep_w(w_oihw):
        return jnp.transpose(w_oihw, (2, 3, 1, 0)).astype(jnp.bfloat16)

    return {"w1": prep_w(w1), "gamma1": g1, "beta1": b1,
            "w2": prep_w(w2), "gamma2": g2, "beta2": b2}


# ----------------------------------------------------------------------------
# Pure-JAX reference (matching bf16 quantization points)
# ----------------------------------------------------------------------------
def down2_ref(x_nchw, raw_params, eps=1e-5):
    x = jnp.transpose(x_nchw, (0, 2, 3, 1)).astype(jnp.float32)
    n, h, w, c = x.shape
    x = jnp.max(x.reshape(n, h // 2, 2, w // 2, 2, c), axis=(2, 4))    # MaxPool2d(2)
    x = x.astype(jnp.bfloat16)
    act = None
    for (w_oihw, gamma, beta) in raw_params:
        w_hwio = jnp.transpose(w_oihw, (2, 3, 1, 0)).astype(jnp.bfloat16)
        y = jax.lax.conv_general_dilated(
            x, w_hwio, window_strides=(1, 1), padding="SAME",
            dimension_numbers=("NHWC", "HWIO", "NHWC"),
            preferred_element_type=jnp.float32)
        mean = jnp.mean(y, axis=(0, 1, 2))
        var = jnp.var(y, axis=(0, 1, 2))
        scale = gamma * jax.lax.rsqrt(var + eps)
        shift = beta - mean * scale
        act = jnp.maximum(y.astype(jnp.bfloat16).astype(jnp.float32) * scale + shift, 0.0)
        x = act.astype(jnp.bfloat16)
    return jnp.transpose(act, (0, 3, 1, 2))


if __name__ == "__main__":
    key = jax.random.PRNGKey(0)
    kx, kp = jax.random.split(key)

    N, Cin, H, W = 2, 4, 16, 16          # Down2 halves spatial: output is (N, Cout, 8, 8)
    Cout = 8
    x = jax.random.normal(kx, (N, Cin, H, W), jnp.float32)
    raw_params = make_params(kp, Cin, Cout)
    kparams = prepare_params(raw_params)

    ref = down2_ref(x, raw_params)

    # Auto row tile (single tile per image) and a forced 2-row tile so the halo
    # exchange path (interior tiles with both neighbours) is exercised too.
    for rt in (None, 2):
        fn = jax.jit(functools.partial(down2, params=kparams, row_tile=rt))
        out = jax.block_until_ready(fn(x))
        assert out.shape == (N, Cout, H // 2, W // 2), out.shape
        err = float(jnp.max(jnp.abs(out - ref)))
        assert jnp.allclose(out, ref, rtol=1e-2, atol=1e-2), (rt, err)

    print("KERNEL_OK")
</pallas_src>

<mosaic_0001>
module attributes {stable_mosaic.version = 11 : i64} {
  func.func @_maxpool2_kernel(%arg0: i32, %arg1: memref<16x2x8x8xf32, #tpu.memory_space<vmem>>, %arg2: memref<16x8x4xbf16, #tpu.memory_space<vmem>>) attributes {dimension_semantics = [#tpu.dimension_semantics<parallel>], iteration_bounds = array<i64: 1>, scalar_prefetch = 0 : i64, scratch_operands = 0 : i64, tpu.core_type = #tpu.core_type<tc>, window_params = [{transform_indices = @transform_0, window_bounds = array<i64: 16, 2, 8, 8>}, {transform_indices = @transform_1, window_bounds = array<i64: 16, 8, 4>}]} {
    %c0 = arith.constant 0 : index
    %c0_0 = arith.constant 0 : index
    %c0_1 = arith.constant 0 : index
    %c0_2 = arith.constant 0 : index
    %0 = vector.load %arg1[%c0, %c0_0, %c0_1, %c0_2] : memref<16x2x8x8xf32, #tpu.memory_space<vmem>>, vector<16x2x8x8xf32>
    %1 = vector.extract_strided_slice %0 {offsets = [0, 0, 0, 0], sizes = [16, 2, 8, 4], strides = [1, 1, 1, 1]} : vector<16x2x8x8xf32> to vector<16x2x8x4xf32>
    %2 = vector.extract_strided_slice %0 {offsets = [0, 0, 0, 4], sizes = [16, 2, 8, 4], strides = [1, 1, 1, 1]} : vector<16x2x8x8xf32> to vector<16x2x8x4xf32>
    %3 = arith.maximumf %1, %2 : vector<16x2x8x4xf32>
    %4 = vector.extract_strided_slice %3 {offsets = [0, 0, 0, 0], sizes = [16, 1, 8, 4], strides = [1, 1, 1, 1]} : vector<16x2x8x4xf32> to vector<16x1x8x4xf32>
    %5 = vector.shape_cast %4 : vector<16x1x8x4xf32> to vector<16x8x4xf32>
    %6 = vector.extract_strided_slice %3 {offsets = [0, 1, 0, 0], sizes = [16, 1, 8, 4], strides = [1, 1, 1, 1]} : vector<16x2x8x4xf32> to vector<16x1x8x4xf32>
    %7 = vector.shape_cast %6 : vector<16x1x8x4xf32> to vector<16x8x4xf32>
    %8 = arith.maximumf %5, %7 : vector<16x8x4xf32>
    %9 = arith.truncf %8 : vector<16x8x4xf32> to vector<16x8x4xbf16>
    %c0_3 = arith.constant 0 : index
    %c0_4 = arith.constant 0 : index
    %c0_5 = arith.constant 0 : index
    %10 = vector.load %arg2[%c0_3, %c0_4, %c0_5] : memref<16x8x4xbf16, #tpu.memory_space<vmem>>, vector<16x8x4xbf16>
    tpu.vector_store %arg2[%c0_3, %c0_4, %c0_5], %9 {strides = array<i32>} : memref<16x8x4xbf16, #tpu.memory_space<vmem>>, vector<16x8x4xbf16>,
    return
  }
  func.func @transform_0(%arg0: i32) -> (i32, i32, i32, i32) {
    %c0_i32 = arith.constant 0 : i32
    %c0_i32_0 = arith.constant 0 : i32
    %c0_i32_1 = arith.constant 0 : i32
    %c0_i32_2 = arith.constant 0 : i32
    return %arg0, %c0_i32, %c0_i32_0, %c0_i32_1 : i32, i32, i32, i32
  }
  func.func @transform_1(%arg0: i32) -> (i32, i32, i32) {
    %c0_i32 = arith.constant 0 : i32
    %c0_i32_0 = arith.constant 0 : i32
    %c0_i32_1 = arith.constant 0 : i32
    return %arg0, %c0_i32, %c0_i32_0 : i32, i32, i32
  }
}

module attributes {stable_mosaic.version = 11 : i64} {
  func.func @_conv3x3_kernel(%arg0: i32, %arg1: i32, %arg2: memref<1x8x8x4xbf16, #tpu.memory_space<vmem>>, %arg3: memref<1x1x8x4xbf16, #tpu.memory_space<vmem>>, %arg4: memref<1x1x8x4xbf16, #tpu.memory_space<vmem>>, %arg5: memref<3x3x4x8xbf16, #tpu.memory_space<vmem>>, %arg6: memref<1x1x4xf32, #tpu.memory_space<vmem>>, %arg7: memref<1x1x4xf32, #tpu.memory_space<vmem>>, %arg8: memref<1x8x8x8xbf16, #tpu.memory_space<vmem>>, %arg9: memref<1x1x2x8xf32, #tpu.memory_space<vmem>>, %arg10: memref<10x10x4xbf16, #tpu.memory_space<vmem>>) attributes {dimension_semantics = [#tpu.dimension_semantics<parallel>, #tpu.dimension_semantics<parallel>], iteration_bounds = array<i64: 2, 1>, scalar_prefetch = 0 : i64, scratch_operands = 1 : i64, tpu.core_type = #tpu.core_type<tc>, window_params = [{transform_indices = @transform_0, window_bounds = array<i64: 1, 8, 8, 4>}, {transform_indices = @transform_1, window_bounds = array<i64: 1, 1, 8, 4>}, {transform_indices = @transform_2, window_bounds = array<i64: 1, 1, 8, 4>}, {pipeline_mode = #tpu.pipeline_mode<synchronous>, transform_indices = @transform_3, window_bounds = array<i64: 3, 3, 4, 8>}, {pipeline_mode = #tpu.pipeline_mode<synchronous>, transform_indices = @transform_4, window_bounds = array<i64: 1, 1, 4>}, {pipeline_mode = #tpu.pipeline_mode<synchronous>, transform_indices = @transform_5, window_bounds = array<i64: 1, 1, 4>}, {transform_indices = @transform_6, window_bounds = array<i64: 1, 8, 8, 8>}, {transform_indices = @transform_7, window_bounds = array<i64: 1, 1, 2, 8>}]} {
    %cst = arith.constant 0.000000e+00 : bf16
    %0 = vector.broadcast %cst : bf16 to vector<10x1x4xbf16>
    %cst_0 = arith.constant 0.000000e+00 : bf16
    %1 = vector.broadcast %cst_0 : bf16 to vector<1x8x4xbf16>
    %c0 = arith.constant 0 : index
    %c0_1 = arith.constant 0 : index
    %c0_2 = arith.constant 0 : index
    %2 = vector.load %arg10[%c0, %c0_1, %c0_2] : memref<10x10x4xbf16, #tpu.memory_space<vmem>>, vector<10x1x4xbf16>
    tpu.vector_store %arg10[%c0, %c0_1, %c0_2], %0 {strides = array<i32>} : memref<10x10x4xbf16, #tpu.memory_space<vmem>>, vector<10x1x4xbf16>,
    %c0_3 = arith.constant 0 : index
    %c9 = arith.constant 9 : index
    %c0_4 = arith.constant 0 : index
    %3 = vector.load %arg10[%c0_3, %c9, %c0_4] : memref<10x10x4xbf16, #tpu.memory_space<vmem>>, vector<10x1x4xbf16>
    tpu.vector_store %arg10[%c0_3, %c9, %c0_4], %0 {strides = array<i32>} : memref<10x10x4xbf16, #tpu.memory_space<vmem>>, vector<10x1x4xbf16>,
    %c0_5 = arith.constant 0 : index
    %c0_6 = arith.constant 0 : index
    %c0_7 = arith.constant 0 : index
    %c0_8 = arith.constant 0 : index
    %4 = vector.load %arg2[%c0_5, %c0_6, %c0_7, %c0_8] : memref<1x8x8x4xbf16, #tpu.memory_space<vmem>>, vector<1x8x8x4xbf16>
    %5 = vector.shape_cast %4 : vector<1x8x8x4xbf16> to vector<8x8x4xbf16>
    %c1 = arith.constant 1 : index
    %c1_9 = arith.constant 1 : index
    %c0_10 = arith.constant 0 : index
    %6 = vector.load %arg10[%c1, %c1_9, %c0_10] : memref<10x10x4xbf16, #tpu.memory_space<vmem>>, vector<8x8x4xbf16>
    tpu.vector_store %arg10[%c1, %c1_9, %c0_10], %5 {strides = array<i32>} : memref<10x10x4xbf16, #tpu.memory_space<vmem>>, vector<8x8x4xbf16>,
    %c0_i32 = arith.constant 0 : i32
    %7 = arith.cmpi eq, %arg1, %c0_i32 : i32
    %8 = arith.extui %7 : i1 to i32
    %c0_i32_11 = arith.constant 0 : i32
    %9 = arith.cmpi ne, %8, %c0_i32_11 : i32
    scf.if %9 {
      %c0_101 = arith.constant 0 : index
      %c1_102 = arith.constant 1 : index
      %c0_103 = arith.constant 0 : index
      %92 = vector.load %arg10[%c0_101, %c1_102, %c0_103] : memref<10x10x4xbf16, #tpu.memory_space<vmem>>, vector<1x8x4xbf16>
      tpu.vector_store %arg10[%c0_101, %c1_102, %c0_103], %1 {strides = array<i32>} : memref<10x10x4xbf16, #tpu.memory_space<vmem>>, vector<1x8x4xbf16>,
    } else {
    }
    %c0_i32_12 = arith.constant 0 : i32
    %10 = arith.cmpi sgt, %arg1, %c0_i32_12 : i32
    %11 = arith.extui %10 : i1 to i32
    %c0_i32_13 = arith.constant 0 : i32
    %12 = arith.cmpi ne, %11, %c0_i32_13 : i32
    scf.if %12 {
      %c0_101 = arith.constant 0 : index
      %c0_102 = arith.constant 0 : index
      %c0_103 = arith.constant 0 : index
      %c0_104 = arith.constant 0 : index
      %92 = vector.load %arg3[%c0_101, %c0_102, %c0_103, %c0_104] : memref<1x1x8x4xbf16, #tpu.memory_space<vmem>>, vector<1x1x8x4xbf16>
      %93 = vector.shape_cast %92 : vector<1x1x8x4xbf16> to vector<1x8x4xbf16>
      %c0_105 = arith.constant 0 : index
      %c1_106 = arith.constant 1 : index
      %c0_107 = arith.constant 0 : index
      %94 = vector.load %arg10[%c0_105, %c1_106, %c0_107] : memref<10x10x4xbf16, #tpu.memory_space<vmem>>, vector<1x8x4xbf16>
      tpu.vector_store %arg10[%c0_105, %c1_106, %c0_107], %93 {strides = array<i32>} : memref<10x10x4xbf16, #tpu.memory_space<vmem>>, vector<1x8x4xbf16>,
    } else {
    }
    %c0_i32_14 = arith.constant 0 : i32
    %13 = arith.cmpi eq, %arg1, %c0_i32_14 : i32
    %14 = arith.extui %13 : i1 to i32
    %c0_i32_15 = arith.constant 0 : i32
    %15 = arith.cmpi ne, %14, %c0_i32_15 : i32
    scf.if %15 {
      %c9_101 = arith.constant 9 : index
      %c1_102 = arith.constant 1 : index
      %c0_103 = arith.constant 0 : index
      %92 = vector.load %arg10[%c9_101, %c1_102, %c0_103] : memref<10x10x4xbf16, #tpu.memory_space<vmem>>, vector<1x8x4xbf16>
      tpu.vector_store %arg10[%c9_101, %c1_102, %c0_103], %1 {strides = array<i32>} : memref<10x10x4xbf16, #tpu.memory_space<vmem>>, vector<1x8x4xbf16>,
    } else {
    }
    %c0_i32_16 = arith.constant 0 : i32
    %16 = arith.cmpi slt, %arg1, %c0_i32_16 : i32
    %17 = arith.extui %16 : i1 to i32
    %c0_i32_17 = arith.constant 0 : i32
    %18 = arith.cmpi ne, %17, %c0_i32_17 : i32
    scf.if %18 {
      %c0_101 = arith.constant 0 : index
      %c0_102 = arith.constant 0 : index
      %c0_103 = arith.constant 0 : index
      %c0_104 = arith.constant 0 : index
      %92 = vector.load %arg4[%c0_101, %c0_102, %c0_103, %c0_104] : memref<1x1x8x4xbf16, #tpu.memory_space<vmem>>, vector<1x1x8x4xbf16>
      %93 = vector.shape_cast %92 : vector<1x1x8x4xbf16> to vector<1x8x4xbf16>
      %c9_105 = arith.constant 9 : index
      %c1_106 = arith.constant 1 : index
      %c0_107 = arith.constant 0 : index
      %94 = vector.load %arg10[%c9_105, %c1_106, %c0_107] : memref<10x10x4xbf16, #tpu.memory_space<vmem>>, vector<1x8x4xbf16>
      tpu.vector_store %arg10[%c9_105, %c1_106, %c0_107], %93 {strides = array<i32>} : memref<10x10x4xbf16, #tpu.memory_space<vmem>>, vector<1x8x4xbf16>,
    } else {
    }
    %cst_18 = arith.constant 0.000000e+00 : f32
    %19 = vector.broadcast %cst_18 : f32 to vector<64x8xf32>
    %c0_19 = arith.constant 0 : index
    %c0_20 = arith.constant 0 : index
    %c0_21 = arith.constant 0 : index
    %20 = vector.load %arg10[%c0_19, %c0_20, %c0_21] : memref<10x10x4xbf16, #tpu.memory_space<vmem>>, vector<8x8x4xbf16>
    %21 = vector.shape_cast %20 : vector<8x8x4xbf16> to vector<64x4xbf16>
    %c0_22 = arith.constant 0 : index
    %c0_23 = arith.constant 0 : index
    %c0_24 = arith.constant 0 : index
    %c0_25 = arith.constant 0 : index
    %22 = vector.load %arg5[%c0_22, %c0_23, %c0_24, %c0_25] : memref<3x3x4x8xbf16, #tpu.memory_space<vmem>>, vector<1x1x4x8xbf16>
    %23 = vector.shape_cast %22 : vector<1x1x4x8xbf16> to vector<4x8xbf16>
    %cst_26 = arith.constant dense<0.000000e+00> : vector<64x8xf32>
    %24 = tpu.matmul %21, %23, %cst_26 {dimension_numbers = #tpu.dot_dimension_numbers<[1], [0], [0], [1], [0, 0, 1, 1], [], []>} : vector<64x4xbf16>, vector<4x8xbf16>, vector<64x8xf32> -> vector<64x8xf32>
    %25 = arith.addf %19, %24 : vector<64x8xf32>
    %c0_27 = arith.constant 0 : index
    %c1_28 = arith.constant 1 : index
    %c0_29 = arith.constant 0 : index
    %26 = vector.load %arg10[%c0_27, %c1_28, %c0_29] : memref<10x10x4xbf16, #tpu.memory_space<vmem>>, vector<8x8x4xbf16>
    %27 = vector.shape_cast %26 : vector<8x8x4xbf16> to vector<64x4xbf16>
    %c0_30 = arith.constant 0 : index
    %c1_31 = arith.constant 1 : index
    %c0_32 = arith.constant 0 : index
    %c0_33 = arith.constant 0 : index
    %28 = vector.load %arg5[%c0_30, %c1_31, %c0_32, %c0_33] : memref<3x3x4x8xbf16, #tpu.memory_space<vmem>>, vector<1x1x4x8xbf16>
    %29 = vector.shape_cast %28 : vector<1x1x4x8xbf16> to vector<4x8xbf16>
    %cst_34 = arith.constant dense<0.000000e+00> : vector<64x8xf32>
    %30 = tpu.matmul %27, %29, %cst_34 {dimension_numbers = #tpu.dot_dimension_numbers<[1], [0], [0], [1], [0, 0, 1, 1], [], []>} : vector<64x4xbf16>, vector<4x8xbf16>, vector<64x8xf32> -> vector<64x8xf32>
    %31 = arith.addf %25, %30 : vector<64x8xf32>
    %c0_35 = arith.constant 0 : index
    %c2 = arith.constant 2 : index
    %c0_36 = arith.constant 0 : index
    %32 = vector.load %arg10[%c0_35, %c2, %c0_36] : memref<10x10x4xbf16, #tpu.memory_space<vmem>>, vector<8x8x4xbf16>
    %33 = vector.shape_cast %32 : vector<8x8x4xbf16> to vector<64x4xbf16>
    %c0_37 = arith.constant 0 : index
    %c2_38 = arith.constant 2 : index
    %c0_39 = arith.constant 0 : index
    %c0_40 = arith.constant 0 : index
    %34 = vector.load %arg5[%c0_37, %c2_38, %c0_39, %c0_40] : memref<3x3x4x8xbf16, #tpu.memory_space<vmem>>, vector<1x1x4x8xbf16>
    %35 = vector.shape_cast %34 : vector<1x1x4x8xbf16> to vector<4x8xbf16>
    %cst_41 = arith.constant dense<0.000000e+00> : vector<64x8xf32>
    %36 = tpu.matmul %33, %35, %cst_41 {dimension_numbers = #tpu.dot_dimension_numbers<[1], [0], [0], [1], [0, 0, 1, 1], [], []>} : vector<64x4xbf16>, vector<4x8xbf16>, vector<64x8xf32> -> vector<64x8xf32>
    %37 = arith.addf %31, %36 : vector<64x8xf32>
    %c1_42 = arith.constant 1 : index
    %c0_43 = arith.constant 0 : index
    %c0_44 = arith.constant 0 : index
    %38 = vector.load %arg10[%c1_42, %c0_43, %c0_44] : memref<10x10x4xbf16, #tpu.memory_space<vmem>>, vector<8x8x4xbf16>
    %39 = vector.shape_cast %38 : vector<8x8x4xbf16> to vector<64x4xbf16>
    %c1_45 = arith.constant 1 : index
    %c0_46 = arith.constant 0 : index
    %c0_47 = arith.constant 0 : index
    %c0_48 = arith.constant 0 : index
    %40 = vector.load %arg5[%c1_45, %c0_46, %c0_47, %c0_48] : memref<3x3x4x8xbf16, #tpu.memory_space<vmem>>, vector<1x1x4x8xbf16>
    %41 = vector.shape_cast %40 : vector<1x1x4x8xbf16> to vector<4x8xbf16>
    %cst_49 = arith.constant dense<0.000000e+00> : vector<64x8xf32>
    %42 = tpu.matmul %39, %41, %cst_49 {dimension_numbers = #tpu.dot_dimension_numbers<[1], [0], [0], [1], [0, 0, 1, 1], [], []>} : vector<64x4xbf16>, vector<4x8xbf16>, vector<64x8xf32> -> vector<64x8xf32>
    %43 = arith.addf %37, %42 : vector<64x8xf32>
    %c1_50 = arith.constant 1 : index
    %c1_51 = arith.constant 1 : index
    %c0_52 = arith.constant 0 : index
    %44 = vector.load %arg10[%c1_50, %c1_51, %c0_52] : memref<10x10x4xbf16, #tpu.memory_space<vmem>>, vector<8x8x4xbf16>
    %45 = vector.shape_cast %44 : vector<8x8x4xbf16> to vector<64x4xbf16>
    %c1_53 = arith.constant 1 : index
    %c1_54 = arith.constant 1 : index
    %c0_55 = arith.constant 0 : index
    %c0_56 = arith.constant 0 : index
    %46 = vector.load %arg5[%c1_53, %c1_54, %c0_55, %c0_56] : memref<3x3x4x8xbf16, #tpu.memory_space<vmem>>, vector<1x1x4x8xbf16>
    %47 = vector.shape_cast %46 : vector<1x1x4x8xbf16> to vector<4x8xbf16>
    %cst_57 = arith.constant dense<0.000000e+00> : vector<64x8xf32>
    %48 = tpu.matmul %45, %47, %cst_57 {dimension_numbers = #tpu.dot_dimension_numbers<[1], [0], [0], [1], [0, 0, 1, 1], [], []>} : vector<64x4xbf16>, vector<4x8xbf16>, vector<64x8xf32> -> vector<64x8xf32>
    %49 = arith.addf %43, %48 : vector<64x8xf32>
    %c1_58 = arith.constant 1 : index
    %c2_59 = arith.constant 2 : index
    %c0_60 = arith.constant 0 : index
    %50 = vector.load %arg10[%c1_58, %c2_59, %c0_60] : memref<10x10x4xbf16, #tpu.memory_space<vmem>>, vector<8x8x4xbf16>
    %51 = vector.shape_cast %50 : vector<8x8x4xbf16> to vector<64x4xbf16>
    %c1_61 = arith.constant 1 : index
    %c2_62 = arith.constant 2 : index
    %c0_63 = arith.constant 0 : index
    %c0_64 = arith.constant 0 : index
    %52 = vector.load %arg5[%c1_61, %c2_62, %c0_63, %c0_64] : memref<3x3x4x8xbf16, #tpu.memory_space<vmem>>, vector<1x1x4x8xbf16>
    %53 = vector.shape_cast %52 : vector<1x1x4x8xbf16> to vector<4x8xbf16>
    %cst_65 = arith.constant dense<0.000000e+00> : vector<64x8xf32>
    %54 = tpu.matmul %51, %53, %cst_65 {dimension_numbers = #tpu.dot_dimension_numbers<[1], [0], [0], [1], [0, 0, 1, 1], [], []>} : vector<64x4xbf16>, vector<4x8xbf16>, vector<64x8xf32> -> vector<64x8xf32>
    %55 = arith.addf %49, %54 : vector<64x8xf32>
    %c2_66 = arith.constant 2 : index
    %c0_67 = arith.constant 0 : index
    %c0_68 = arith.constant 0 : index
    %56 = vector.load %arg10[%c2_66, %c0_67, %c0_68] : memref<10x10x4xbf16, #tpu.memory_space<vmem>>, vector<8x8x4xbf16>
    %57 = vector.shape_cast %56 : vector<8x8x4xbf16> to vector<64x4xbf16>
    %c2_69 = arith.constant 2 : index
    %c0_70 = arith.constant 0 : index
    %c0_71 = arith.constant 0 : index
    %c0_72 = arith.constant 0 : index
    %58 = vector.load %arg5[%c2_69, %c0_70, %c0_71, %c0_72] : memref<3x3x4x8xbf16, #tpu.memory_space<vmem>>, vector<1x1x4x8xbf16>
    %59 = vector.shape_cast %58 : vector<1x1x4x8xbf16> to vector<4x8xbf16>
    %cst_73 = arith.constant dense<0.000000e+00> : vector<64x8xf32>
    %60 = tpu.matmul %57, %59, %cst_73 {dimension_numbers = #tpu.dot_dimension_numbers<[1], [0], [0], [1], [0, 0, 1, 1], [], []>} : vector<64x4xbf16>, vector<4x8xbf16>, vector<64x8xf32> -> vector<64x8xf32>
    %61 = arith.addf %55, %60 : vector<64x8xf32>
    %c2_74 = arith.constant 2 : index
    %c1_75 = arith.constant 1 : index
    %c0_76 = arith.constant 0 : index
    %62 = vector.load %arg10[%c2_74, %c1_75, %c0_76] : memref<10x10x4xbf16, #tpu.memory_space<vmem>>, vector<8x8x4xbf16>
    %63 = vector.shape_cast %62 : vector<8x8x4xbf16> to vector<64x4xbf16>
    %c2_77 = arith.constant 2 : index
    %c1_78 = arith.constant 1 : index
    %c0_79 = arith.constant 0 : index
    %c0_80 = arith.constant 0 : index
    %64 = vector.load %arg5[%c2_77, %c1_78, %c0_79, %c0_80] : memref<3x3x4x8xbf16, #tpu.memory_space<vmem>>, vector<1x1x4x8xbf16>
    %65 = vector.shape_cast %64 : vector<1x1x4x8xbf16> to vector<4x8xbf16>
    %cst_81 = arith.constant dense<0.000000e+00> : vector<64x8xf32>
    %66 = tpu.matmul %63, %65, %cst_81 {dimension_numbers = #tpu.dot_dimension_numbers<[1], [0], [0], [1], [0, 0, 1, 1], [], []>} : vector<64x4xbf16>, vector<4x8xbf16>, vector<64x8xf32> -> vector<64x8xf32>
    %67 = arith.addf %61, %66 : vector<64x8xf32>
    %c2_82 = arith.constant 2 : index
    %c2_83 = arith.constant 2 : index
    %c0_84 = arith.constant 0 : index
    %68 = vector.load %arg10[%c2_82, %c2_83, %c0_84] : memref<10x10x4xbf16, #tpu.memory_space<vmem>>, vector<8x8x4xbf16>
    %69 = vector.shape_cast %68 : vector<8x8x4xbf16> to vector<64x4xbf16>
    %c2_85 = arith.constant 2 : index
    %c2_86 = arith.constant 2 : index
    %c0_87 = arith.constant 0 : index
    %c0_88 = arith.constant 0 : index
    %70 = vector.load %arg5[%c2_85, %c2_86, %c0_87, %c0_88] : memref<3x3x4x8xbf16, #tpu.memory_space<vmem>>, vector<1x1x4x8xbf16>
    %71 = vector.shape_cast %70 : vector<1x1x4x8xbf16> to vector<4x8xbf16>
    %cst_89 = arith.constant dense<0.000000e+00> : vector<64x8xf32>
    %72 = tpu.matmul %69, %71, %cst_89 {dimension_numbers = #tpu.dot_dimension_numbers<[1], [0], [0], [1], [0, 0, 1, 1], [], []>} : vector<64x4xbf16>, vector<4x8xbf16>, vector<64x8xf32> -> vector<64x8xf32>
    %73 = arith.addf %67, %72 : vector<64x8xf32>
    %74 = vector.shape_cast %73 : vector<64x8xf32> to vector<8x8x8xf32>
    %75 = arith.truncf %74 : vector<8x8x8xf32> to vector<8x8x8xbf16>
    %c0_90 = arith.constant 0 : index
    %c0_91 = arith.constant 0 : index
    %c0_92 = arith.constant 0 : index
    %c0_93 = arith.constant 0 : index
    %76 = vector.load %arg8[%c0_90, %c0_91, %c0_92, %c0_93] : memref<1x8x8x8xbf16, #tpu.memory_space<vmem>>, vector<1x8x8x8xbf16>
    %77 = vector.shape_cast %76 : vector<1x8x8x8xbf16> to vector<8x8x8xbf16>
    %78 = vector.shape_cast %75 : vector<8x8x8xbf16> to vector<1x8x8x8xbf16>
    tpu.vector_store %arg8[%c0_90, %c0_91, %c0_92, %c0_93], %78 {strides = array<i32>} : memref<1x8x8x8xbf16, #tpu.memory_space<vmem>>, vector<1x8x8x8xbf16>,
    %cst_94 = arith.constant dense<0.000000e+00> : vector<8xf32>
    %79 = vector.multi_reduction <add>, %73, %cst_94 [0] : vector<64x8xf32> to vector<8xf32>
    %80 = vector.shape_cast %79 : vector<8xf32> to vector<1x8xf32>
    %cst_95 = arith.constant 6.400000e+01 : f32
    %81 = vector.broadcast %cst_95 : f32 to vector<1x8xf32>
    %82 = arith.divf %80, %81 : vector<1x8xf32>
    %83 = vector.broadcast %82 : vector<1x8xf32> to vector<64x8xf32>
    %84 = arith.subf %73, %83 : vector<64x8xf32>
    %85 = arith.mulf %84, %84 : vector<64x8xf32>
    %cst_96 = arith.constant dense<0.000000e+00> : vector<8xf32>
    %86 = vector.multi_reduction <add>, %85, %cst_96 [0] : vector<64x8xf32> to vector<8xf32>
    %87 = vector.shape_cast %86 : vector<8xf32> to vector<1x8xf32>
    %88 = tpu.concatenate %80, %87 in 0 : vector<1x8xf32>, vector<1x8xf32> -> vector<2x8xf32>
    %c0_97 = arith.constant 0 : index
    %c0_98 = arith.constant 0 : index
    %c0_99 = arith.constant 0 : index
    %c0_100 = arith.constant 0 : index
    %89 = vector.load %arg9[%c0_97, %c0_98, %c0_99, %c0_100] : memref<1x1x2x8xf32, #tpu.memory_space<vmem>>, vector<1x1x2x8xf32>
    %90 = vector.shape_cast %89 : vector<1x1x2x8xf32> to vector<2x8xf32>
    %91 = vector.shape_cast %88 : vector<2x8xf32> to vector<1x1x2x8xf32>
    tpu.vector_store %arg9[%c0_97, %c0_98, %c0_99, %c0_100], %91 {strides = array<i32>} : memref<1x1x2x8xf32, #tpu.memory_space<vmem>>, vector<1x1x2x8xf32>,
    return
  }
  func.func @transform_0(%arg0: i32, %arg1: i32) -> (i32, i32, i32, i32) {
    %c0_i32 = arith.constant 0 : i32
    %c0_i32_0 = arith.constant 0 : i32
    %c0_i32_1 = arith.constant 0 : i32
    return %arg0, %arg1, %c0_i32, %c0_i32_0 : i32, i32, i32, i32
  }
  func.func @transform_1(%arg0: i32, %arg1: i32) -> (i32, i32, i32, i32) {
    %c8_i32 = arith.constant 8 : i32
    %0 = arith.muli %arg1, %c8_i32 : i32
    %c1_i32 = arith.constant 1 : i32
    %1 = arith.subi %0, %c1_i32 : i32
    %c0_i32 = arith.constant 0 : i32
    %2 = arith.maxsi %1, %c0_i32 : i32
    %c0_i32_0 = arith.constant 0 : i32
    %c0_i32_1 = arith.constant 0 : i32
    %c0_i32_2 = arith.constant 0 : i32
    return %arg0, %2, %c0_i32_0, %c0_i32_1 : i32, i32, i32, i32
  }
  func.func @transform_2(%arg0: i32, %arg1: i32) -> (i32, i32, i32, i32) {
    %c1_i32 = arith.constant 1 : i32
    %0 = arith.addi %arg1, %c1_i32 : i32
    %c8_i32 = arith.constant 8 : i32
    %1 = arith.muli %0, %c8_i32 : i32
    %c7_i32 = arith.constant 7 : i32
    %2 = arith.minsi %1, %c7_i32 : i32
    %c0_i32 = arith.constant 0 : i32
    %c0_i32_0 = arith.constant 0 : i32
    %c0_i32_1 = arith.constant 0 : i32
    return %arg0, %2, %c0_i32, %c0_i32_0 : i32, i32, i32, i32
  }
  func.func @transform_3(%arg0: i32, %arg1: i32) -> (i32, i32, i32, i32) {
    %c0_i32 = arith.constant 0 : i32
    %c0_i32_0 = arith.constant 0 : i32
    %c0_i32_1 = arith.constant 0 : i32
    %c0_i32_2 = arith.constant 0 : i32
    %c0_i32_3 = arith.constant 0 : i32
    return %c0_i32, %c0_i32_0, %c0_i32_1, %c0_i32_2 : i32, i32, i32, i32
  }
  func.func @transform_4(%arg0: i32, %arg1: i32) -> (i32, i32, i32) {
    %c0_i32 = arith.constant 0 : i32
    %c0_i32_0 = arith.constant 0 : i32
    %c0_i32_1 = arith.constant 0 : i32
    %c0_i32_2 = arith.constant 0 : i32
    return %c0_i32, %c0_i32_0, %c0_i32_1 : i32, i32, i32
  }
  func.func @transform_5(%arg0: i32, %arg1: i32) -> (i32, i32, i32) {
    %c0_i32 = arith.constant 0 : i32
    %c0_i32_0 = arith.constant 0 : i32
    %c0_i32_1 = arith.constant 0 : i32
    %c0_i32_2 = arith.constant 0 : i32
    return %c0_i32, %c0_i32_0, %c0_i32_1 : i32, i32, i32
  }
  func.func @transform_6(%arg0: i32, %arg1: i32) -> (i32, i32, i32, i32) {
    %c0_i32 = arith.constant 0 : i32
    %c0_i32_0 = arith.constant 0 : i32
    %c0_i32_1 = arith.constant 0 : i32
    return %arg0, %arg1, %c0_i32, %c0_i32_0 : i32, i32, i32, i32
  }
  func.func @transform_7(%arg0: i32, %arg1: i32) -> (i32, i32, i32, i32) {
    %c0_i32 = arith.constant 0 : i32
    %c0_i32_0 = arith.constant 0 : i32
    %c0_i32_1 = arith.constant 0 : i32
    return %arg0, %arg1, %c0_i32, %c0_i32_0 : i32, i32, i32, i32
  }
}

module attributes {stable_mosaic.version = 11 : i64} {
  func.func @_bn_relu_kernel(%arg0: i32, %arg1: memref<16x8x8xbf16, #tpu.memory_space<vmem>>, %arg2: memref<1x1x8xf32, #tpu.memory_space<vmem>>, %arg3: memref<1x1x8xf32, #tpu.memory_space<vmem>>, %arg4: memref<16x8x8xf32, #tpu.memory_space<vmem>>) attributes {dimension_semantics = [#tpu.dimension_semantics<parallel>], iteration_bounds = array<i64: 1>, scalar_prefetch = 0 : i64, scratch_operands = 0 : i64, tpu.core_type = #tpu.core_type<tc>, window_params = [{transform_indices = @transform_0, window_bounds = array<i64: 16, 8, 8>}, {pipeline_mode = #tpu.pipeline_mode<synchronous>, transform_indices = @transform_1, window_bounds = array<i64: 1, 1, 8>}, {pipeline_mode = #tpu.pipeline_mode<synchronous>, transform_indices = @transform_2, window_bounds = array<i64: 1, 1, 8>}, {transform_indices = @transform_3, window_bounds = array<i64: 16, 8, 8>}]} {
    %c0 = arith.constant 0 : index
    %c0_0 = arith.constant 0 : index
    %c0_1 = arith.constant 0 : index
    %0 = vector.load %arg1[%c0, %c0_0, %c0_1] : memref<16x8x8xbf16, #tpu.memory_space<vmem>>, vector<16x8x8xbf16>
    %1 = arith.extf %0 : vector<16x8x8xbf16> to vector<16x8x8xf32>
    %c0_2 = arith.constant 0 : index
    %c0_3 = arith.constant 0 : index
    %c0_4 = arith.constant 0 : index
    %2 = vector.load %arg2[%c0_2, %c0_3, %c0_4] : memref<1x1x8xf32, #tpu.memory_space<vmem>>, vector<1x1x8xf32>
    %3 = vector.broadcast %2 : vector<1x1x8xf32> to vector<16x8x8xf32>
    %4 = arith.mulf %1, %3 : vector<16x8x8xf32>
    %c0_5 = arith.constant 0 : index
    %c0_6 = arith.constant 0 : index
    %c0_7 = arith.constant 0 : index
    %5 = vector.load %arg3[%c0_5, %c0_6, %c0_7] : memref<1x1x8xf32, #tpu.memory_space<vmem>>, vector<1x1x8xf32>
    %6 = vector.broadcast %5 : vector<1x1x8xf32> to vector<16x8x8xf32>
    %7 = arith.addf %4, %6 : vector<16x8x8xf32>
    %cst = arith.constant 0.000000e+00 : f32
    %8 = vector.broadcast %cst : f32 to vector<16x8x8xf32>
    %9 = arith.maximumf %7, %8 : vector<16x8x8xf32>
    %c0_8 = arith.constant 0 : index
    %c0_9 = arith.constant 0 : index
    %c0_10 = arith.constant 0 : index
    %10 = vector.load %arg4[%c0_8, %c0_9, %c0_10] : memref<16x8x8xf32, #tpu.memory_space<vmem>>, vector<16x8x8xf32>
    tpu.vector_store %arg4[%c0_8, %c0_9, %c0_10], %9 {strides = array<i32>} : memref<16x8x8xf32, #tpu.memory_space<vmem>>, vector<16x8x8xf32>,
    return
  }
  func.func @transform_0(%arg0: i32) -> (i32, i32, i32) {
    %c0_i32 = arith.constant 0 : i32
    %c0_i32_0 = arith.constant 0 : i32
    %c0_i32_1 = arith.constant 0 : i32
    return %arg0, %c0_i32, %c0_i32_0 : i32, i32, i32
  }
  func.func @transform_1(%arg0: i32) -> (i32, i32, i32) {
    %c0_i32 = arith.constant 0 : i32
    %c0_i32_0 = arith.constant 0 : i32
    %c0_i32_1 = arith.constant 0 : i32
    %c0_i32_2 = arith.constant 0 : i32
    return %c0_i32, %c0_i32_0, %c0_i32_1 : i32, i32, i32
  }
  func.func @transform_2(%arg0: i32) -> (i32, i32, i32) {
    %c0_i32 = arith.constant 0 : i32
    %c0_i32_0 = arith.constant 0 : i32
    %c0_i32_1 = arith.constant 0 : i32
    %c0_i32_2 = arith.constant 0 : i32
    return %c0_i32, %c0_i32_0, %c0_i32_1 : i32, i32, i32
  }
  func.func @transform_3(%arg0: i32) -> (i32, i32, i32) {
    %c0_i32 = arith.constant 0 : i32
    %c0_i32_0 = arith.constant 0 : i32
    %c0_i32_1 = arith.constant 0 : i32
    return %arg0, %c0_i32, %c0_i32_0 : i32, i32, i32
  }
}

module attributes {stable_mosaic.version = 11 : i64} {
  func.func @_conv3x3_kernel(%arg0: i32, %arg1: i32, %arg2: memref<1x8x8x8xbf16, #tpu.memory_space<vmem>>, %arg3: memref<1x1x8x8xbf16, #tpu.memory_space<vmem>>, %arg4: memref<1x1x8x8xbf16, #tpu.memory_space<vmem>>, %arg5: memref<3x3x8x8xbf16, #tpu.memory_space<vmem>>, %arg6: memref<1x1x8xf32, #tpu.memory_space<vmem>>, %arg7: memref<1x1x8xf32, #tpu.memory_space<vmem>>, %arg8: memref<1x8x8x8xbf16, #tpu.memory_space<vmem>>, %arg9: memref<1x1x2x8xf32, #tpu.memory_space<vmem>>, %arg10: memref<10x10x8xbf16, #tpu.memory_space<vmem>>) attributes {dimension_semantics = [#tpu.dimension_semantics<parallel>, #tpu.dimension_semantics<parallel>], iteration_bounds = array<i64: 2, 1>, scalar_prefetch = 0 : i64, scratch_operands = 1 : i64, tpu.core_type = #tpu.core_type<tc>, window_params = [{transform_indices = @transform_0, window_bounds = array<i64: 1, 8, 8, 8>}, {transform_indices = @transform_1, window_bounds = array<i64: 1, 1, 8, 8>}, {transform_indices = @transform_2, window_bounds = array<i64: 1, 1, 8, 8>}, {pipeline_mode = #tpu.pipeline_mode<synchronous>, transform_indices = @transform_3, window_bounds = array<i64: 3, 3, 8, 8>}, {pipeline_mode = #tpu.pipeline_mode<synchronous>, transform_indices = @transform_4, window_bounds = array<i64: 1, 1, 8>}, {pipeline_mode = #tpu.pipeline_mode<synchronous>, transform_indices = @transform_5, window_bounds = array<i64: 1, 1, 8>}, {transform_indices = @transform_6, window_bounds = array<i64: 1, 8, 8, 8>}, {transform_indices = @transform_7, window_bounds = array<i64: 1, 1, 2, 8>}]} {
    %cst = arith.constant 0.000000e+00 : bf16
    %0 = vector.broadcast %cst : bf16 to vector<10x1x8xbf16>
    %cst_0 = arith.constant 0.000000e+00 : bf16
    %1 = vector.broadcast %cst_0 : bf16 to vector<1x8x8xbf16>
    %c0 = arith.constant 0 : index
    %c0_1 = arith.constant 0 : index
    %c0_2 = arith.constant 0 : index
    %2 = vector.load %arg10[%c0, %c0_1, %c0_2] : memref<10x10x8xbf16, #tpu.memory_space<vmem>>, vector<10x1x8xbf16>
    tpu.vector_store %arg10[%c0, %c0_1, %c0_2], %0 {strides = array<i32>} : memref<10x10x8xbf16, #tpu.memory_space<vmem>>, vector<10x1x8xbf16>,
    %c0_3 = arith.constant 0 : index
    %c9 = arith.constant 9 : index
    %c0_4 = arith.constant 0 : index
    %3 = vector.load %arg10[%c0_3, %c9, %c0_4] : memref<10x10x8xbf16, #tpu.memory_space<vmem>>, vector<10x1x8xbf16>
    tpu.vector_store %arg10[%c0_3, %c9, %c0_4], %0 {strides = array<i32>} : memref<10x10x8xbf16, #tpu.memory_space<vmem>>, vector<10x1x8xbf16>,
    %c0_5 = arith.constant 0 : index
    %c0_6 = arith.constant 0 : index
    %c0_7 = arith.constant 0 : index
    %c0_8 = arith.constant 0 : index
    %4 = vector.load %arg2[%c0_5, %c0_6, %c0_7, %c0_8] : memref<1x8x8x8xbf16, #tpu.memory_space<vmem>>, vector<1x8x8x8xbf16>
    %5 = vector.shape_cast %4 : vector<1x8x8x8xbf16> to vector<8x8x8xbf16>
    %6 = arith.extf %5 : vector<8x8x8xbf16> to vector<8x8x8xf32>
    %c0_9 = arith.constant 0 : index
    %c0_10 = arith.constant 0 : index
    %c0_11 = arith.constant 0 : index
    %7 = vector.load %arg6[%c0_9, %c0_10, %c0_11] : memref<1x1x8xf32, #tpu.memory_space<vmem>>, vector<1x1x8xf32>
    %8 = vector.broadcast %7 : vector<1x1x8xf32> to vector<8x8x8xf32>
    %9 = arith.mulf %6, %8 : vector<8x8x8xf32>
    %c0_12 = arith.constant 0 : index
    %c0_13 = arith.constant 0 : index
    %c0_14 = arith.constant 0 : index
    %10 = vector.load %arg7[%c0_12, %c0_13, %c0_14] : memref<1x1x8xf32, #tpu.memory_space<vmem>>, vector<1x1x8xf32>
    %11 = vector.broadcast %10 : vector<1x1x8xf32> to vector<8x8x8xf32>
    %12 = arith.addf %9, %11 : vector<8x8x8xf32>
    %cst_15 = arith.constant 0.000000e+00 : f32
    %13 = vector.broadcast %cst_15 : f32 to vector<8x8x8xf32>
    %14 = arith.maximumf %12, %13 : vector<8x8x8xf32>
    %15 = arith.truncf %14 : vector<8x8x8xf32> to vector<8x8x8xbf16>
    %c1 = arith.constant 1 : index
    %c1_16 = arith.constant 1 : index
    %c0_17 = arith.constant 0 : index
    %16 = vector.load %arg10[%c1, %c1_16, %c0_17] : memref<10x10x8xbf16, #tpu.memory_space<vmem>>, vector<8x8x8xbf16>
    tpu.vector_store %arg10[%c1, %c1_16, %c0_17], %15 {strides = array<i32>} : memref<10x10x8xbf16, #tpu.memory_space<vmem>>, vector<8x8x8xbf16>,
    %c0_i32 = arith.constant 0 : i32
    %17 = arith.cmpi eq, %arg1, %c0_i32 : i32
    %18 = arith.extui %17 : i1 to i32
    %c0_i32_18 = arith.constant 0 : i32
    %19 = arith.cmpi ne, %18, %c0_i32_18 : i32
    scf.if %19 {
      %c0_108 = arith.constant 0 : index
      %c1_109 = arith.constant 1 : index
      %c0_110 = arith.constant 0 : index
      %102 = vector.load %arg10[%c0_108, %c1_109, %c0_110] : memref<10x10x8xbf16, #tpu.memory_space<vmem>>, vector<1x8x8xbf16>
      tpu.vector_store %arg10[%c0_108, %c1_109, %c0_110], %1 {strides = array<i32>} : memref<10x10x8xbf16, #tpu.memory_space<vmem>>, vector<1x8x8xbf16>,
    } else {
    }
    %c0_i32_19 = arith.constant 0 : i32
    %20 = arith.cmpi sgt, %arg1, %c0_i32_19 : i32
    %21 = arith.extui %20 : i1 to i32
    %c0_i32_20 = arith.constant 0 : i32
    %22 = arith.cmpi ne, %21, %c0_i32_20 : i32
    scf.if %22 {
      %c0_108 = arith.constant 0 : index
      %c0_109 = arith.constant 0 : index
      %c0_110 = arith.constant 0 : index
      %c0_111 = arith.constant 0 : index
      %102 = vector.load %arg3[%c0_108, %c0_109, %c0_110, %c0_111] : memref<1x1x8x8xbf16, #tpu.memory_space<vmem>>, vector<1x1x8x8xbf16>
      %103 = vector.shape_cast %102 : vector<1x1x8x8xbf16> to vector<1x8x8xbf16>
      %104 = arith.extf %103 : vector<1x8x8xbf16> to vector<1x8x8xf32>
      %c0_112 = arith.constant 0 : index
      %c0_113 = arith.constant 0 : index
      %c0_114 = arith.constant 0 : index
      %105 = vector.load %arg6[%c0_112, %c0_113, %c0_114] : memref<1x1x8xf32, #tpu.memory_space<vmem>>, vector<1x1x8xf32>
      %106 = vector.broadcast %105 : vector<1x1x8xf32> to vector<1x8x8xf32>
      %107 = arith.mulf %104, %106 : vector<1x8x8xf32>
      %c0_115 = arith.constant 0 : index
      %c0_116 = arith.constant 0 : index
      %c0_117 = arith.constant 0 : index
      %108 = vector.load %arg7[%c0_115, %c0_116, %c0_117] : memref<1x1x8xf32, #tpu.memory_space<vmem>>, vector<1x1x8xf32>
      %109 = vector.broadcast %108 : vector<1x1x8xf32> to vector<1x8x8xf32>
      %110 = arith.addf %107, %109 : vector<1x8x8xf32>
      %cst_118 = arith.constant 0.000000e+00 : f32
      %111 = vector.broadcast %cst_118 : f32 to vector<1x8x8xf32>
      %112 = arith.maximumf %110, %111 : vector<1x8x8xf32>
      %113 = arith.truncf %112 : vector<1x8x8xf32> to vector<1x8x8xbf16>
      %c0_119 = arith.constant 0 : index
      %c1_120 = arith.constant 1 : index
      %c0_121 = arith.constant 0 : index
      %114 = vector.load %arg10[%c0_119, %c1_120, %c0_121] : memref<10x10x8xbf16, #tpu.memory_space<vmem>>, vector<1x8x8xbf16>
      tpu.vector_store %arg10[%c0_119, %c1_120, %c0_121], %113 {strides = array<i32>} : memref<10x10x8xbf16, #tpu.memory_space<vmem>>, vector<1x8x8xbf16>,
    } else {
    }
    %c0_i32_21 = arith.constant 0 : i32
    %23 = arith.cmpi eq, %arg1, %c0_i32_21 : i32
    %24 = arith.extui %23 : i1 to i32
    %c0_i32_22 = arith.constant 0 : i32
    %25 = arith.cmpi ne, %24, %c0_i32_22 : i32
    scf.if %25 {
      %c9_108 = arith.constant 9 : index
      %c1_109 = arith.constant 1 : index
      %c0_110 = arith.constant 0 : index
      %102 = vector.load %arg10[%c9_108, %c1_109, %c0_110] : memref<10x10x8xbf16, #tpu.memory_space<vmem>>, vector<1x8x8xbf16>
      tpu.vector_store %arg10[%c9_108, %c1_109, %c0_110], %1 {strides = array<i32>} : memref<10x10x8xbf16, #tpu.memory_space<vmem>>, vector<1x8x8xbf16>,
    } else {
    }
    %c0_i32_23 = arith.constant 0 : i32
    %26 = arith.cmpi slt, %arg1, %c0_i32_23 : i32
    %27 = arith.extui %26 : i1 to i32
    %c0_i32_24 = arith.constant 0 : i32
    %28 = arith.cmpi ne, %27, %c0_i32_24 : i32
    scf.if %28 {
      %c0_108 = arith.constant 0 : index
      %c0_109 = arith.constant 0 : index
      %c0_110 = arith.constant 0 : index
      %c0_111 = arith.constant 0 : index
      %102 = vector.load %arg4[%c0_108, %c0_109, %c0_110, %c0_111] : memref<1x1x8x8xbf16, #tpu.memory_space<vmem>>, vector<1x1x8x8xbf16>
      %103 = vector.shape_cast %102 : vector<1x1x8x8xbf16> to vector<1x8x8xbf16>
      %104 = arith.extf %103 : vector<1x8x8xbf16> to vector<1x8x8xf32>
      %c0_112 = arith.constant 0 : index
      %c0_113 = arith.constant 0 : index
      %c0_114 = arith.constant 0 : index
      %105 = vector.load %arg6[%c0_112, %c0_113, %c0_114] : memref<1x1x8xf32, #tpu.memory_space<vmem>>, vector<1x1x8xf32>
      %106 = vector.broadcast %105 : vector<1x1x8xf32> to vector<1x8x8xf32>
      %107 = arith.mulf %104, %106 : vector<1x8x8xf32>
      %c0_115 = arith.constant 0 : index
      %c0_116 = arith.constant 0 : index
      %c0_117 = arith.constant 0 : index
      %108 = vector.load %arg7[%c0_115, %c0_116, %c0_117] : memref<1x1x8xf32, #tpu.memory_space<vmem>>, vector<1x1x8xf32>
      %109 = vector.broadcast %108 : vector<1x1x8xf32> to vector<1x8x8xf32>
      %110 = arith.addf %107, %109 : vector<1x8x8xf32>
      %cst_118 = arith.constant 0.000000e+00 : f32
      %111 = vector.broadcast %cst_118 : f32 to vector<1x8x8xf32>
      %112 = arith.maximumf %110, %111 : vector<1x8x8xf32>
      %113 = arith.truncf %112 : vector<1x8x8xf32> to vector<1x8x8xbf16>
      %c9_119 = arith.constant 9 : index
      %c1_120 = arith.constant 1 : index
      %c0_121 = arith.constant 0 : index
      %114 = vector.load %arg10[%c9_119, %c1_120, %c0_121] : memref<10x10x8xbf16, #tpu.memory_space<vmem>>, vector<1x8x8xbf16>
      tpu.vector_store %arg10[%c9_119, %c1_120, %c0_121], %113 {strides = array<i32>} : memref<10x10x8xbf16, #tpu.memory_space<vmem>>, vector<1x8x8xbf16>,
    } else {
    }
    %cst_25 = arith.constant 0.000000e+00 : f32
    %29 = vector.broadcast %cst_25 : f32 to vector<64x8xf32>
    %c0_26 = arith.constant 0 : index
    %c0_27 = arith.constant 0 : index
    %c0_28 = arith.constant 0 : index
    %30 = vector.load %arg10[%c0_26, %c0_27, %c0_28] : memref<10x10x8xbf16, #tpu.memory_space<vmem>>, vector<8x8x8xbf16>
    %31 = vector.shape_cast %30 : vector<8x8x8xbf16> to vector<64x8xbf16>
    %c0_29 = arith.constant 0 : index
    %c0_30 = arith.constant 0 : index
    %c0_31 = arith.constant 0 : index
    %c0_32 = arith.constant 0 : index
    %32 = vector.load %arg5[%c0_29, %c0_30, %c0_31, %c0_32] : memref<3x3x8x8xbf16, #tpu.memory_space<vmem>>, vector<1x1x8x8xbf16>
    %33 = vector.shape_cast %32 : vector<1x1x8x8xbf16> to vector<8x8xbf16>
    %cst_33 = arith.constant dense<0.000000e+00> : vector<64x8xf32>
    %34 = tpu.matmul %31, %33, %cst_33 {dimension_numbers = #tpu.dot_dimension_numbers<[1], [0], [0], [1], [0, 0, 1, 1], [], []>} : vector<64x8xbf16>, vector<8x8xbf16>, vector<64x8xf32> -> vector<64x8xf32>
    %35 = arith.addf %29, %34 : vector<64x8xf32>
    %c0_34 = arith.constant 0 : index
    %c1_35 = arith.constant 1 : index
    %c0_36 = arith.constant 0 : index
    %36 = vector.load %arg10[%c0_34, %c1_35, %c0_36] : memref<10x10x8xbf16, #tpu.memory_space<vmem>>, vector<8x8x8xbf16>
    %37 = vector.shape_cast %36 : vector<8x8x8xbf16> to vector<64x8xbf16>
    %c0_37 = arith.constant 0 : index
    %c1_38 = arith.constant 1 : index
    %c0_39 = arith.constant 0 : index
    %c0_40 = arith.constant 0 : index
    %38 = vector.load %arg5[%c0_37, %c1_38, %c0_39, %c0_40] : memref<3x3x8x8xbf16, #tpu.memory_space<vmem>>, vector<1x1x8x8xbf16>
    %39 = vector.shape_cast %38 : vector<1x1x8x8xbf16> to vector<8x8xbf16>
    %cst_41 = arith.constant dense<0.000000e+00> : vector<64x8xf32>
    %40 = tpu.matmul %37, %39, %cst_41 {dimension_numbers = #tpu.dot_dimension_numbers<[1], [0], [0], [1], [0, 0, 1, 1], [], []>} : vector<64x8xbf16>, vector<8x8xbf16>, vector<64x8xf32> -> vector<64x8xf32>
    %41 = arith.addf %35, %40 : vector<64x8xf32>
    %c0_42 = arith.constant 0 : index
    %c2 = arith.constant 2 : index
    %c0_43 = arith.constant 0 : index
    %42 = vector.load %arg10[%c0_42, %c2, %c0_43] : memref<10x10x8xbf16, #tpu.memory_space<vmem>>, vector<8x8x8xbf16>
    %43 = vector.shape_cast %42 : vector<8x8x8xbf16> to vector<64x8xbf16>
    %c0_44 = arith.constant 0 : index
    %c2_45 = arith.constant 2 : index
    %c0_46 = arith.constant 0 : index
    %c0_47 = arith.constant 0 : index
    %44 = vector.load %arg5[%c0_44, %c2_45, %c0_46, %c0_47] : memref<3x3x8x8xbf16, #tpu.memory_space<vmem>>, vector<1x1x8x8xbf16>
    %45 = vector.shape_cast %44 : vector<1x1x8x8xbf16> to vector<8x8xbf16>
    %cst_48 = arith.constant dense<0.000000e+00> : vector<64x8xf32>
    %46 = tpu.matmul %43, %45, %cst_48 {dimension_numbers = #tpu.dot_dimension_numbers<[1], [0], [0], [1], [0, 0, 1, 1], [], []>} : vector<64x8xbf16>, vector<8x8xbf16>, vector<64x8xf32> -> vector<64x8xf32>
    %47 = arith.addf %41, %46 : vector<64x8xf32>
    %c1_49 = arith.constant 1 : index
    %c0_50 = arith.constant 0 : index
    %c0_51 = arith.constant 0 : index
    %48 = vector.load %arg10[%c1_49, %c0_50, %c0_51] : memref<10x10x8xbf16, #tpu.memory_space<vmem>>, vector<8x8x8xbf16>
    %49 = vector.shape_cast %48 : vector<8x8x8xbf16> to vector<64x8xbf16>
    %c1_52 = arith.constant 1 : index
    %c0_53 = arith.constant 0 : index
    %c0_54 = arith.constant 0 : index
    %c0_55 = arith.constant 0 : index
    %50 = vector.load %arg5[%c1_52, %c0_53, %c0_54, %c0_55] : memref<3x3x8x8xbf16, #tpu.memory_space<vmem>>, vector<1x1x8x8xbf16>
    %51 = vector.shape_cast %50 : vector<1x1x8x8xbf16> to vector<8x8xbf16>
    %cst_56 = arith.constant dense<0.000000e+00> : vector<64x8xf32>
    %52 = tpu.matmul %49, %51, %cst_56 {dimension_numbers = #tpu.dot_dimension_numbers<[1], [0], [0], [1], [0, 0, 1, 1], [], []>} : vector<64x8xbf16>, vector<8x8xbf16>, vector<64x8xf32> -> vector<64x8xf32>
    %53 = arith.addf %47, %52 : vector<64x8xf32>
    %c1_57 = arith.constant 1 : index
    %c1_58 = arith.constant 1 : index
    %c0_59 = arith.constant 0 : index
    %54 = vector.load %arg10[%c1_57, %c1_58, %c0_59] : memref<10x10x8xbf16, #tpu.memory_space<vmem>>, vector<8x8x8xbf16>
    %55 = vector.shape_cast %54 : vector<8x8x8xbf16> to vector<64x8xbf16>
    %c1_60 = arith.constant 1 : index
    %c1_61 = arith.constant 1 : index
    %c0_62 = arith.constant 0 : index
    %c0_63 = arith.constant 0 : index
    %56 = vector.load %arg5[%c1_60, %c1_61, %c0_62, %c0_63] : memref<3x3x8x8xbf16, #tpu.memory_space<vmem>>, vector<1x1x8x8xbf16>
    %57 = vector.shape_cast %56 : vector<1x1x8x8xbf16> to vector<8x8xbf16>
    %cst_64 = arith.constant dense<0.000000e+00> : vector<64x8xf32>
    %58 = tpu.matmul %55, %57, %cst_64 {dimension_numbers = #tpu.dot_dimension_numbers<[1], [0], [0], [1], [0, 0, 1, 1], [], []>} : vector<64x8xbf16>, vector<8x8xbf16>, vector<64x8xf32> -> vector<64x8xf32>
    %59 = arith.addf %53, %58 : vector<64x8xf32>
    %c1_65 = arith.constant 1 : index
    %c2_66 = arith.constant 2 : index
    %c0_67 = arith.constant 0 : index
    %60 = vector.load %arg10[%c1_65, %c2_66, %c0_67] : memref<10x10x8xbf16, #tpu.memory_space<vmem>>, vector<8x8x8xbf16>
    %61 = vector.shape_cast %60 : vector<8x8x8xbf16> to vector<64x8xbf16>
    %c1_68 = arith.constant 1 : index
    %c2_69 = arith.constant 2 : index
    %c0_70 = arith.constant 0 : index
    %c0_71 = arith.constant 0 : index
    %62 = vector.load %arg5[%c1_68, %c2_69, %c0_70, %c0_71] : memref<3x3x8x8xbf16, #tpu.memory_space<vmem>>, vector<1x1x8x8xbf16>
    %63 = vector.shape_cast %62 : vector<1x1x8x8xbf16> to vector<8x8xbf16>
    %cst_72 = arith.constant dense<0.000000e+00> : vector<64x8xf32>
    %64 = tpu.matmul %61, %63, %cst_72 {dimension_numbers = #tpu.dot_dimension_numbers<[1], [0], [0], [1], [0, 0, 1, 1], [], []>} : vector<64x8xbf16>, vector<8x8xbf16>, vector<64x8xf32> -> vector<64x8xf32>
    %65 = arith.addf %59, %64 : vector<64x8xf32>
    %c2_73 = arith.constant 2 : index
    %c0_74 = arith.constant 0 : index
    %c0_75 = arith.constant 0 : index
    %66 = vector.load %arg10[%c2_73, %c0_74, %c0_75] : memref<10x10x8xbf16, #tpu.memory_space<vmem>>, vector<8x8x8xbf16>
    %67 = vector.shape_cast %66 : vector<8x8x8xbf16> to vector<64x8xbf16>
    %c2_76 = arith.constant 2 : index
    %c0_77 = arith.constant 0 : index
    %c0_78 = arith.constant 0 : index
    %c0_79 = arith.constant 0 : index
    %68 = vector.load %arg5[%c2_76, %c0_77, %c0_78, %c0_79] : memref<3x3x8x8xbf16, #tpu.memory_space<vmem>>, vector<1x1x8x8xbf16>
    %69 = vector.shape_cast %68 : vector<1x1x8x8xbf16> to vector<8x8xbf16>
    %cst_80 = arith.constant dense<0.000000e+00> : vector<64x8xf32>
    %70 = tpu.matmul %67, %69, %cst_80 {dimension_numbers = #tpu.dot_dimension_numbers<[1], [0], [0], [1], [0, 0, 1, 1], [], []>} : vector<64x8xbf16>, vector<8x8xbf16>, vector<64x8xf32> -> vector<64x8xf32>
    %71 = arith.addf %65, %70 : vector<64x8xf32>
    %c2_81 = arith.constant 2 : index
    %c1_82 = arith.constant 1 : index
    %c0_83 = arith.constant 0 : index
    %72 = vector.load %arg10[%c2_81, %c1_82, %c0_83] : memref<10x10x8xbf16, #tpu.memory_space<vmem>>, vector<8x8x8xbf16>
    %73 = vector.shape_cast %72 : vector<8x8x8xbf16> to vector<64x8xbf16>
    %c2_84 = arith.constant 2 : index
    %c1_85 = arith.constant 1 : index
    %c0_86 = arith.constant 0 : index
    %c0_87 = arith.constant 0 : index
    %74 = vector.load %arg5[%c2_84, %c1_85, %c0_86, %c0_87] : memref<3x3x8x8xbf16, #tpu.memory_space<vmem>>, vector<1x1x8x8xbf16>
    %75 = vector.shape_cast %74 : vector<1x1x8x8xbf16> to vector<8x8xbf16>
    %cst_88 = arith.constant dense<0.000000e+00> : vector<64x8xf32>
    %76 = tpu.matmul %73, %75, %cst_88 {dimension_numbers = #tpu.dot_dimension_numbers<[1], [0], [0], [1], [0, 0, 1, 1], [], []>} : vector<64x8xbf16>, vector<8x8xbf16>, vector<64x8xf32> -> vector<64x8xf32>
    %77 = arith.addf %71, %76 : vector<64x8xf32>
    %c2_89 = arith.constant 2 : index
    %c2_90 = arith.constant 2 : index
    %c0_91 = arith.constant 0 : index
    %78 = vector.load %arg10[%c2_89, %c2_90, %c0_91] : memref<10x10x8xbf16, #tpu.memory_space<vmem>>, vector<8x8x8xbf16>
    %79 = vector.shape_cast %78 : vector<8x8x8xbf16> to vector<64x8xbf16>
    %c2_92 = arith.constant 2 : index
    %c2_93 = arith.constant 2 : index
    %c0_94 = arith.constant 0 : index
    %c0_95 = arith.constant 0 : index
    %80 = vector.load %arg5[%c2_92, %c2_93, %c0_94, %c0_95] : memref<3x3x8x8xbf16, #tpu.memory_space<vmem>>, vector<1x1x8x8xbf16>
    %81 = vector.shape_cast %80 : vector<1x1x8x8xbf16> to vector<8x8xbf16>
    %cst_96 = arith.constant dense<0.000000e+00> : vector<64x8xf32>
    %82 = tpu.matmul %79, %81, %cst_96 {dimension_numbers = #tpu.dot_dimension_numbers<[1], [0], [0], [1], [0, 0, 1, 1], [], []>} : vector<64x8xbf16>, vector<8x8xbf16>, vector<64x8xf32> -> vector<64x8xf32>
    %83 = arith.addf %77, %82 : vector<64x8xf32>
    %84 = vector.shape_cast %83 : vector<64x8xf32> to vector<8x8x8xf32>
    %85 = arith.truncf %84 : vector<8x8x8xf32> to vector<8x8x8xbf16>
    %c0_97 = arith.constant 0 : index
    %c0_98 = arith.constant 0 : index
    %c0_99 = arith.constant 0 : index
    %c0_100 = arith.constant 0 : index
    %86 = vector.load %arg8[%c0_97, %c0_98, %c0_99, %c0_100] : memref<1x8x8x8xbf16, #tpu.memory_space<vmem>>, vector<1x8x8x8xbf16>
    %87 = vector.shape_cast %86 : vector<1x8x8x8xbf16> to vector<8x8x8xbf16>
    %88 = vector.shape_cast %85 : vector<8x8x8xbf16> to vector<1x8x8x8xbf16>
    tpu.vector_store %arg8[%c0_97, %c0_98, %c0_99, %c0_100], %88 {strides = array<i32>} : memref<1x8x8x8xbf16, #tpu.memory_space<vmem>>, vector<1x8x8x8xbf16>,
    %cst_101 = arith.constant dense<0.000000e+00> : vector<8xf32>
    %89 = vector.multi_reduction <add>, %83, %cst_101 [0] : vector<64x8xf32> to vector<8xf32>
    %90 = vector.shape_cast %89 : vector<8xf32> to vector<1x8xf32>
    %cst_102 = arith.constant 6.400000e+01 : f32
    %91 = vector.broadcast %cst_102 : f32 to vector<1x8xf32>
    %92 = arith.divf %90, %91 : vector<1x8xf32>
    %93 = vector.broadcast %92 : vector<1x8xf32> to vector<64x8xf32>
    %94 = arith.subf %83, %93 : vector<64x8xf32>
    %95 = arith.mulf %94, %94 : vector<64x8xf32>
    %cst_103 = arith.constant dense<0.000000e+00> : vector<8xf32>
    %96 = vector.multi_reduction <add>, %95, %cst_103 [0] : vector<64x8xf32> to vector<8xf32>
    %97 = vector.shape_cast %96 : vector<8xf32> to vector<1x8xf32>
    %98 = tpu.concatenate %90, %97 in 0 : vector<1x8xf32>, vector<1x8xf32> -> vector<2x8xf32>
    %c0_104 = arith.constant 0 : index
    %c0_105 = arith.constant 0 : index
    %c0_106 = arith.constant 0 : index
    %c0_107 = arith.constant 0 : index
    %99 = vector.load %arg9[%c0_104, %c0_105, %c0_106, %c0_107] : memref<1x1x2x8xf32, #tpu.memory_space<vmem>>, vector<1x1x2x8xf32>
    %100 = vector.shape_cast %99 : vector<1x1x2x8xf32> to vector<2x8xf32>
    %101 = vector.shape_cast %98 : vector<2x8xf32> to vector<1x1x2x8xf32>
    tpu.vector_store %arg9[%c0_104, %c0_105, %c0_106, %c0_107], %101 {strides = array<i32>} : memref<1x1x2x8xf32, #tpu.memory_space<vmem>>, vector<1x1x2x8xf32>,
    return
  }
  func.func @transform_0(%arg0: i32, %arg1: i32) -> (i32, i32, i32, i32) {
    %c0_i32 = arith.constant 0 : i32
    %c0_i32_0 = arith.constant 0 : i32
    %c0_i32_1 = arith.constant 0 : i32
    return %arg0, %arg1, %c0_i32, %c0_i32_0 : i32, i32, i32, i32
  }
  func.func @transform_1(%arg0: i32, %arg1: i32) -> (i32, i32, i32, i32) {
    %c8_i32 = arith.constant 8 : i32
    %0 = arith.muli %arg1, %c8_i32 : i32
    %c1_i32 = arith.constant 1 : i32
    %1 = arith.subi %0, %c1_i32 : i32
    %c0_i32 = arith.constant 0 : i32
    %2 = arith.maxsi %1, %c0_i32 : i32
    %c0_i32_0 = arith.constant 0 : i32
    %c0_i32_1 = arith.constant 0 : i32
    %c0_i32_2 = arith.constant 0 : i32
    return %arg0, %2, %c0_i32_0, %c0_i32_1 : i32, i32, i32, i32
  }
  func.func @transform_2(%arg0: i32, %arg1: i32) -> (i32, i32, i32, i32) {
    %c1_i32 = arith.constant 1 : i32
    %0 = arith.addi %arg1, %c1_i32 : i32
    %c8_i32 = arith.constant 8 : i32
    %1 = arith.muli %0, %c8_i32 : i32
    %c7_i32 = arith.constant 7 : i32
    %2 = arith.minsi %1, %c7_i32 : i32
    %c0_i32 = arith.constant 0 : i32
    %c0_i32_0 = arith.constant 0 : i32
    %c0_i32_1 = arith.constant 0 : i32
    return %arg0, %2, %c0_i32, %c0_i32_0 : i32, i32, i32, i32
  }
  func.func @transform_3(%arg0: i32, %arg1: i32) -> (i32, i32, i32, i32) {
    %c0_i32 = arith.constant 0 : i32
    %c0_i32_0 = arith.constant 0 : i32
    %c0_i32_1 = arith.constant 0 : i32
    %c0_i32_2 = arith.constant 0 : i32
    %c0_i32_3 = arith.constant 0 : i32
    return %c0_i32, %c0_i32_0, %c0_i32_1, %c0_i32_2 : i32, i32, i32, i32
  }
  func.func @transform_4(%arg0: i32, %arg1: i32) -> (i32, i32, i32) {
    %c0_i32 = arith.constant 0 : i32
    %c0_i32_0 = arith.constant 0 : i32
    %c0_i32_1 = arith.constant 0 : i32
    %c0_i32_2 = arith.constant 0 : i32
    return %c0_i32, %c0_i32_0, %c0_i32_1 : i32, i32, i32
  }
  func.func @transform_5(%arg0: i32, %arg1: i32) -> (i32, i32, i32) {
    %c0_i32 = arith.constant 0 : i32
    %c0_i32_0 = arith.constant 0 : i32
    %c0_i32_1 = arith.constant 0 : i32
    %c0_i32_2 = arith.constant 0 : i32
    return %c0_i32, %c0_i32_0, %c0_i32_1 : i32, i32, i32
  }
  func.func @transform_6(%arg0: i32, %arg1: i32) -> (i32, i32, i32, i32) {
    %c0_i32 = arith.constant 0 : i32
    %c0_i32_0 = arith.constant 0 : i32
    %c0_i32_1 = arith.constant 0 : i32
    return %arg0, %arg1, %c0_i32, %c0_i32_0 : i32, i32, i32, i32
  }
  func.func @transform_7(%arg0: i32, %arg1: i32) -> (i32, i32, i32, i32) {
    %c0_i32 = arith.constant 0 : i32
    %c0_i32_0 = arith.constant 0 : i32
    %c0_i32_1 = arith.constant 0 : i32
    return %arg0, %arg1, %c0_i32, %c0_i32_0 : i32, i32, i32, i32
  }
}

</mosaic_0001>

<llo_original>
// kernel: down2.4
$region0: #{down2.4}
  #allocation0 [shape = 'u32[]', space=smem, size = 0x4, offset = 0x4, fixed_abs, tag = 'smem constant byte address 0x4 - core index']
  #allocation1 [shape = 'u32[72,128]{1,0:T(1,128)}', space=vmem, size = 0x9000, scoped, tag = 'internal scratch']
  %s0 = inlined_call_operand.vmem [shape: f32[16,2,8,8], index: 0, kind: input, shape index: {}]
  %s1 = inlined_call_operand.vmem [shape: bf16[16,8,4], index: 1, kind: output, shape index: {}]
  %s2 = sld [smem:[#allocation0]]
  $region14: #{down2.4} parent=0
    _
  %s4 = ssub.s32 1, %s2
  %s5 = scalar_select 0, %s4, %s2
  // Predicated region
  $region2: #{down2.4} parent=0 // pred_check
    _
  $region3: #{down2.4} parent=0 // pred_check_branch
    %7 = sbr.rel (0) target = $region5
  $region4: #{down2.4} parent=0 // pred_region
    _
  $region5: #{down2.4} parent=0 // pred_fallthru
    _
  %v8 = vld [vmem:[%s0] sm:$0xff]
  %v9 = vld [vmem:[%s0 + $0x8] sm:$0xff]
  %v10 = vld [vmem:[%s0 + $0x10] sm:$0xff]
  %v11 = vld [vmem:[%s0 + $0x18] sm:$0xff]
  %v12 = vld [vmem:[%s0 + $0x20] sm:$0xff]
  %v13 = vld [vmem:[%s0 + $0x28] sm:$0xff]
  %v14 = vld [vmem:[%s0 + $0x30] sm:$0xff]
  %v15 = vld [vmem:[%s0 + $0x38] sm:$0xff]
  %v16 = vld [vmem:[%s0 + $0x40] sm:$0xff]
  %v17 = vld [vmem:[%s0 + $0x48] sm:$0xff]
  %v18 = vld [vmem:[%s0 + $0x50] sm:$0xff]
  %v19 = vld [vmem:[%s0 + $0x58] sm:$0xff]
  %v20 = vld [vmem:[%s0 + $0x60] sm:$0xff]
  %v21 = vld [vmem:[%s0 + $0x68] sm:$0xff]
  %v22 = vld [vmem:[%s0 + $0x70] sm:$0xff]
  %v23 = vld [vmem:[%s0 + $0x78] sm:$0xff]
  %v24 = vld [vmem:[%s0 + $0x80] sm:$0xff]
  %v25 = vld [vmem:[%s0 + $0x88] sm:$0xff]
  %v26 = vld [vmem:[%s0 + $0x90] sm:$0xff]
  %v27 = vld [vmem:[%s0 + $0x98] sm:$0xff]
  %v28 = vld [vmem:[%s0 + $0xa0] sm:$0xff]
  %v29 = vld [vmem:[%s0 + $0xa8] sm:$0xff]
  %v30 = vld [vmem:[%s0 + $0xb0] sm:$0xff]
  %v31 = vld [vmem:[%s0 + $0xb8] sm:$0xff]
  %v32 = vld [vmem:[%s0 + $0xc0] sm:$0xff]
  %v33 = vld [vmem:[%s0 + $0xc8] sm:$0xff]
  %v34 = vld [vmem:[%s0 + $0xd0] sm:$0xff]
  %v35 = vld [vmem:[%s0 + $0xd8] sm:$0xff]
  %v36 = vld [vmem:[%s0 + $0xe0] sm:$0xff]
  %v37 = vld [vmem:[%s0 + $0xe8] sm:$0xff]
  %v38 = vld [vmem:[%s0 + $0xf0] sm:$0xff]
  %v39 = vld [vmem:[%s0 + $0xf8] sm:$0xff]
  %72 = vrot.lane.b32.xlu0 %v8, 124
  %v73 = vpop.permute.xlu0 %72
  %74 = vrot.lane.b32.xlu0 %v9, 124
  %v75 = vpop.permute.xlu0 %74
  %76 = vrot.lane.b32.xlu0 %v10, 124
  %v77 = vpop.permute.xlu0 %76
  %78 = vrot.lane.b32.xlu0 %v11, 124
  %v79 = vpop.permute.xlu0 %78
  %80 = vrot.lane.b32.xlu0 %v12, 124
  %v81 = vpop.permute.xlu0 %80
  %82 = vrot.lane.b32.xlu0 %v13, 124
  %v83 = vpop.permute.xlu0 %82
  %84 = vrot.lane.b32.xlu0 %v14, 124
  %v85 = vpop.permute.xlu0 %84
  %86 = vrot.lane.b32.xlu0 %v15, 124
  %v87 = vpop.permute.xlu0 %86
  %88 = vrot.lane.b32.xlu0 %v16, 124
  %v89 = vpop.permute.xlu0 %88
  %90 = vrot.lane.b32.xlu0 %v17, 124
  %v91 = vpop.permute.xlu0 %90
  %92 = vrot.lane.b32.xlu0 %v18, 124
  %v93 = vpop.permute.xlu0 %92
  %94 = vrot.lane.b32.xlu0 %v19, 124
  %v95 = vpop.permute.xlu0 %94
  %96 = vrot.lane.b32.xlu0 %v20, 124
  %v97 = vpop.permute.xlu0 %96
  %98 = vrot.lane.b32.xlu0 %v21, 124
  %v99 = vpop.permute.xlu0 %98
  %100 = vrot.lane.b32.xlu0 %v22, 124
  %v101 = vpop.permute.xlu0 %100
  %102 = vrot.lane.b32.xlu0 %v23, 124
  %v103 = vpop.permute.xlu0 %102
  %104 = vrot.lane.b32.xlu0 %v24, 124
  %v105 = vpop.permute.xlu0 %104
  %106 = vrot.lane.b32.xlu0 %v25, 124
  %v107 = vpop.permute.xlu0 %106
  %108 = vrot.lane.b32.xlu0 %v26, 124
  %v109 = vpop.permute.xlu0 %108
  %110 = vrot.lane.b32.xlu0 %v27, 124
  %v111 = vpop.permute.xlu0 %110
  %112 = vrot.lane.b32.xlu0 %v28, 124
  %v113 = vpop.permute.xlu0 %112
  %114 = vrot.lane.b32.xlu0 %v29, 124
  %v115 = vpop.permute.xlu0 %114
  %116 = vrot.lane.b32.xlu0 %v30, 124
  %v117 = vpop.permute.xlu0 %116
  %118 = vrot.lane.b32.xlu0 %v31, 124
  %v119 = vpop.permute.xlu0 %118
  %120 = vrot.lane.b32.xlu0 %v32, 124
  %v121 = vpop.permute.xlu0 %120
  %122 = vrot.lane.b32.xlu0 %v33, 124
  %v123 = vpop.permute.xlu0 %122
  %124 = vrot.lane.b32.xlu0 %v34, 124
  %v125 = vpop.permute.xlu0 %124
  %126 = vrot.lane.b32.xlu0 %v35, 124
  %v127 = vpop.permute.xlu0 %126
  %128 = vrot.lane.b32.xlu0 %v36, 124
  %v129 = vpop.permute.xlu0 %128
  %130 = vrot.lane.b32.xlu0 %v37, 124
  %v131 = vpop.permute.xlu0 %130
  %132 = vrot.lane.b32.xlu0 %v38, 124
  %v133 = vpop.permute.xlu0 %132
  %134 = vrot.lane.b32.xlu0 %v39, 124
  %v135 = vpop.permute.xlu0 %134
  %v168 = vmax.f32 %v8, %v73
  %v169 = vmax.f32 %v9, %v75
  %v170 = vmax.f32 %v10, %v77
  %v171 = vmax.f32 %v11, %v79
  %v172 = vmax.f32 %v12, %v81
  %v173 = vmax.f32 %v13, %v83
  %v174 = vmax.f32 %v14, %v85
  %v175 = vmax.f32 %v15, %v87
  %v176 = vmax.f32 %v16, %v89
  %v177 = vmax.f32 %v17, %v91
  %v178 = vmax.f32 %v18, %v93
  %v179 = vmax.f32 %v19, %v95
  %v180 = vmax.f32 %v20, %v97
  %v181 = vmax.f32 %v21, %v99
  %v182 = vmax.f32 %v22, %v101
  %v183 = vmax.f32 %v23, %v103
  %v184 = vmax.f32 %v24, %v105
  %v185 = vmax.f32 %v25, %v107
  %v186 = vmax.f32 %v26, %v109
  %v187 = vmax.f32 %v27, %v111
  %v188 = vmax.f32 %v28, %v113
  %v189 = vmax.f32 %v29, %v115
  %v190 = vmax.f32 %v30, %v117
  %v191 = vmax.f32 %v31, %v119
  %v192 = vmax.f32 %v32, %v121
  %v193 = vmax.f32 %v33, %v123
  %v194 = vmax.f32 %v34, %v125
  %v195 = vmax.f32 %v35, %v127
  %v196 = vmax.f32 %v36, %v129
  %v197 = vmax.f32 %v37, %v131
  %v198 = vmax.f32 %v38, %v133
  %v199 = vmax.f32 %v39, %v135
  %v200 = vmax.f32 %v168, %v169
  %v201 = vmax.f32 %v170, %v171
  %v202 = vmax.f32 %v172, %v173
  %v203 = vmax.f32 %v174, %v175
  %v204 = vmax.f32 %v176, %v177
  %v205 = vmax.f32 %v178, %v179
  %v206 = vmax.f32 %v180, %v181
  %v207 = vmax.f32 %v182, %v183
  %v208 = vmax.f32 %v184, %v185
  %v209 = vmax.f32 %v186, %v187
  %v210 = vmax.f32 %v188, %v189
  %v211 = vmax.f32 %v190, %v191
  %v212 = vmax.f32 %v192, %v193
  %v213 = vmax.f32 %v194, %v195
  %v214 = vmax.f32 %v196, %v197
  %v215 = vmax.f32 %v198, %v199
  %v216 = vpack.c.bf16 %v200, %v200
  %v217 = vpack.c.bf16 %v201, %v201
  %v218 = vpack.c.bf16 %v202, %v202
  %v219 = vpack.c.bf16 %v203, %v203
  %v220 = vpack.c.bf16 %v204, %v204
  %v221 = vpack.c.bf16 %v205, %v205
  %v222 = vpack.c.bf16 %v206, %v206
  %v223 = vpack.c.bf16 %v207, %v207
  %v224 = vpack.c.bf16 %v208, %v208
  %v225 = vpack.c.bf16 %v209, %v209
  %v226 = vpack.c.bf16 %v210, %v210
  %v227 = vpack.c.bf16 %v211, %v211
  %v228 = vpack.c.bf16 %v212, %v212
  %v229 = vpack.c.bf16 %v213, %v213
  %v230 = vpack.c.bf16 %v214, %v214
  %v231 = vpack.c.bf16 %v215, %v215
  %vm232 = vcmask 27648
  %233 = vst.msk [vmem:[%s1] sm:$0xf] %vm232, %v216
  %234 = vst.msk [vmem:[%s1 + $0x4] sm:$0xf] %vm232, %v217
  %235 = vst.msk [vmem:[%s1 + $0x8] sm:$0xf] %vm232, %v218
  %236 = vst.msk [vmem:[%s1 + $0xc] sm:$0xf] %vm232, %v219
  %237 = vst.msk [vmem:[%s1 + $0x10] sm:$0xf] %vm232, %v220
  %238 = vst.msk [vmem:[%s1 + $0x14] sm:$0xf] %vm232, %v221
  %239 = vst.msk [vmem:[%s1 + $0x18] sm:$0xf] %vm232, %v222
  %240 = vst.msk [vmem:[%s1 + $0x1c] sm:$0xf] %vm232, %v223
  %241 = vst.msk [vmem:[%s1 + $0x20] sm:$0xf] %vm232, %v224
  %242 = vst.msk [vmem:[%s1 + $0x24] sm:$0xf] %vm232, %v225
  %243 = vst.msk [vmem:[%s1 + $0x28] sm:$0xf] %vm232, %v226
  %244 = vst.msk [vmem:[%s1 + $0x2c] sm:$0xf] %vm232, %v227
  %245 = vst.msk [vmem:[%s1 + $0x30] sm:$0xf] %vm232, %v228
  %246 = vst.msk [vmem:[%s1 + $0x34] sm:$0xf] %vm232, %v229
  %247 = vst.msk [vmem:[%s1 + $0x38] sm:$0xf] %vm232, %v230
  %248 = vst.msk [vmem:[%s1 + $0x3c] sm:$0xf] %vm232, %v231
  // Predicated region
  $region6: #{down2.4} parent=0 // pred_check
    _
  $region7: #{down2.4} parent=0 // pred_check_branch
    %250 = sbr.rel (0) target = $region9
  $region8: #{down2.4} parent=0 // pred_region
    _
  $region9: #{down2.4} parent=0 // pred_fallthru
    _
  // Predicated region
  $region10: #{down2.4} parent=0 // pred_check
    _
  $region11: #{down2.4} parent=0 // pred_check_branch
    %252 = sbr.rel (0) target = $region13
  $region12: #{down2.4} parent=0 // pred_region
    _
  $region13: #{down2.4} parent=0 // pred_fallthru
    _

// kernel: down2.7
$region0: #{down2.7}
  #allocation0 [shape = 'u32[]', space=smem, size = 0x4, offset = 0x4, fixed_abs, tag = 'smem constant byte address 0x4 - core index']
  #allocation1 [shape = 'u32[72,128]{1,0:T(1,128)}', space=vmem, size = 0x9000, scoped, tag = 'internal scratch']
  %s0 = inlined_call_operand.vmem [shape: bf16[16,8,8], index: 0, kind: input, shape index: {}]
  %s1 = inlined_call_operand.vmem [shape: f32[1,1,8], index: 1, kind: input, shape index: {}]
  %s2 = inlined_call_operand.vmem [shape: f32[1,1,8], index: 2, kind: input, shape index: {}]
  %s3 = inlined_call_operand.vmem [shape: f32[16,8,8], index: 3, kind: output, shape index: {}]
  %s4 = sld [smem:[#allocation0]]
  $region22: #{down2.7} parent=0
    _
  %s6 = ssub.s32 1, %s4
  %s7 = scalar_select 0, %s6, %s4
  // Predicated region
  $region2: #{down2.7} parent=0 // pred_check
    _
  $region3: #{down2.7} parent=0 // pred_check_branch
    %9 = sbr.rel (0) target = $region5
  $region4: #{down2.7} parent=0 // pred_region
    _
  $region5: #{down2.7} parent=0 // pred_fallthru
    _
  // Predicated region
  $region6: #{down2.7} parent=0 // pred_check
    _
  $region7: #{down2.7} parent=0 // pred_check_branch
    %11 = sbr.rel (0) target = $region9
  $region8: #{down2.7} parent=0 // pred_region
    _
  $region9: #{down2.7} parent=0 // pred_fallthru
    _
  // Predicated region
  $region10: #{down2.7} parent=0 // pred_check
    _
  $region11: #{down2.7} parent=0 // pred_check_branch
    %13 = sbr.rel (0) target = $region13
  $region12: #{down2.7} parent=0 // pred_region
    _
  $region13: #{down2.7} parent=0 // pred_fallthru
    _
  %v14 = vld [vmem:[%s0] sm:$0xf]
  %v15 = vld [vmem:[%s0 + $0x4] sm:$0xf]
  %v16 = vld [vmem:[%s0 + $0x8] sm:$0xf]
  %v17 = vld [vmem:[%s0 + $0xc] sm:$0xf]
  %v18 = vld [vmem:[%s0 + $0x10] sm:$0xf]
  %v19 = vld [vmem:[%s0 + $0x14] sm:$0xf]
  %v20 = vld [vmem:[%s0 + $0x18] sm:$0xf]
  %v21 = vld [vmem:[%s0 + $0x1c] sm:$0xf]
  %v22 = vld [vmem:[%s0 + $0x20] sm:$0xf]
  %v23 = vld [vmem:[%s0 + $0x24] sm:$0xf]
  %v24 = vld [vmem:[%s0 + $0x28] sm:$0xf]
  %v25 = vld [vmem:[%s0 + $0x2c] sm:$0xf]
  %v26 = vld [vmem:[%s0 + $0x30] sm:$0xf]
  %v27 = vld [vmem:[%s0 + $0x34] sm:$0xf]
  %v28 = vld [vmem:[%s0 + $0x38] sm:$0xf]
  %v29 = vld [vmem:[%s0 + $0x3c] sm:$0xf]
  %v30 = vunpack.c.l.bf16 %v14
  %v31 = vunpack.c.l.bf16 %v15
  %v32 = vunpack.c.l.bf16 %v16
  %v33 = vunpack.c.l.bf16 %v17
  %v34 = vunpack.c.l.bf16 %v18
  %v35 = vunpack.c.l.bf16 %v19
  %v36 = vunpack.c.l.bf16 %v20
  %v37 = vunpack.c.l.bf16 %v21
  %v38 = vunpack.c.l.bf16 %v22
  %v39 = vunpack.c.l.bf16 %v23
  %v40 = vunpack.c.l.bf16 %v24
  %v41 = vunpack.c.l.bf16 %v25
  %v42 = vunpack.c.l.bf16 %v26
  %v43 = vunpack.c.l.bf16 %v27
  %v44 = vunpack.c.l.bf16 %v28
  %v45 = vunpack.c.l.bf16 %v29
  %v46 = vld [vmem:[%s1] sm:$0x1]
  %v48 = vperm.slane %v46, 0
  %v50 = vmul.f32 %v30, %v48
  %v51 = vmul.f32 %v31, %v48
  %v52 = vmul.f32 %v32, %v48
  %v53 = vmul.f32 %v33, %v48
  %v54 = vmul.f32 %v34, %v48
  %v55 = vmul.f32 %v35, %v48
  %v56 = vmul.f32 %v36, %v48
  %v57 = vmul.f32 %v37, %v48
  %v58 = vmul.f32 %v38, %v48
  %v59 = vmul.f32 %v39, %v48
  %v60 = vmul.f32 %v40, %v48
  %v61 = vmul.f32 %v41, %v48
  %v62 = vmul.f32 %v42, %v48
  %v63 = vmul.f32 %v43, %v48
  %v64 = vmul.f32 %v44, %v48
  %v65 = vmul.f32 %v45, %v48
  %v66 = vld [vmem:[%s2] sm:$0x1]
  %v68 = vperm.slane %v66, 0
  %v70 = vadd.f32 %v50, %v68
  %v71 = vadd.f32 %v51, %v68
  %v72 = vadd.f32 %v52, %v68
  %v73 = vadd.f32 %v53, %v68
  %v74 = vadd.f32 %v54, %v68
  %v75 = vadd.f32 %v55, %v68
  %v76 = vadd.f32 %v56, %v68
  %v77 = vadd.f32 %v57, %v68
  %v78 = vadd.f32 %v58, %v68
  %v79 = vadd.f32 %v59, %v68
  %v80 = vadd.f32 %v60, %v68
  %v81 = vadd.f32 %v61, %v68
  %v82 = vadd.f32 %v62, %v68
  %v83 = vadd.f32 %v63, %v68
  %v84 = vadd.f32 %v64, %v68
  %v85 = vadd.f32 %v65, %v68
  %v86 = vmax.f32 %v70, 0.0
  %v87 = vmax.f32 %v71, 0.0
  %v88 = vmax.f32 %v72, 0.0
  %v89 = vmax.f32 %v73, 0.0
  %v90 = vmax.f32 %v74, 0.0
  %v91 = vmax.f32 %v75, 0.0
  %v92 = vmax.f32 %v76, 0.0
  %v93 = vmax.f32 %v77, 0.0
  %v94 = vmax.f32 %v78, 0.0
  %v95 = vmax.f32 %v79, 0.0
  %v96 = vmax.f32 %v80, 0.0
  %v97 = vmax.f32 %v81, 0.0
  %v98 = vmax.f32 %v82, 0.0
  %v99 = vmax.f32 %v83, 0.0
  %v100 = vmax.f32 %v84, 0.0
  %v101 = vmax.f32 %v85, 0.0
  %vm102 = vcmask 64512
  %103 = vst.msk [vmem:[%s3] sm:$0xff] %vm102, %v86
  %104 = vst.msk [vmem:[%s3 + $0x8] sm:$0xff] %vm102, %v87
  %105 = vst.msk [vmem:[%s3 + $0x10] sm:$0xff] %vm102, %v88
  %106 = vst.msk [vmem:[%s3 + $0x18] sm:$0xff] %vm102, %v89
  %107 = vst.msk [vmem:[%s3 + $0x20] sm:$0xff] %vm102, %v90
  %108 = vst.msk [vmem:[%s3 + $0x28] sm:$0xff] %vm102, %v91
  %109 = vst.msk [vmem:[%s3 + $0x30] sm:$0xff] %vm102, %v92
  %110 = vst.msk [vmem:[%s3 + $0x38] sm:$0xff] %vm102, %v93
  %111 = vst.msk [vmem:[%s3 + $0x40] sm:$0xff] %vm102, %v94
  %112 = vst.msk [vmem:[%s3 + $0x48] sm:$0xff] %vm102, %v95
  %113 = vst.msk [vmem:[%s3 + $0x50] sm:$0xff] %vm102, %v96
  %114 = vst.msk [vmem:[%s3 + $0x58] sm:$0xff] %vm102, %v97
  %115 = vst.msk [vmem:[%s3 + $0x60] sm:$0xff] %vm102, %v98
  %116 = vst.msk [vmem:[%s3 + $0x68] sm:$0xff] %vm102, %v99
  %117 = vst.msk [vmem:[%s3 + $0x70] sm:$0xff] %vm102, %v100
  %118 = vst.msk [vmem:[%s3 + $0x78] sm:$0xff] %vm102, %v101
  // Predicated region
  $region14: #{down2.7} parent=0 // pred_check
    _
  $region15: #{down2.7} parent=0 // pred_check_branch
    %120 = sbr.rel (0) target = $region17
  $region16: #{down2.7} parent=0 // pred_region
    _
  $region17: #{down2.7} parent=0 // pred_fallthru
    _
  // Predicated region
  $region18: #{down2.7} parent=0 // pred_check
    _
  $region19: #{down2.7} parent=0 // pred_check_branch
    %122 = sbr.rel (0) target = $region21
  $region20: #{down2.7} parent=0 // pred_region
    _
  $region21: #{down2.7} parent=0 // pred_fallthru
    _

// kernel: down2.5
$region0: #{down2.5}
  #allocation0 [shape = 'u32[]', space=smem, size = 0x4, offset = 0x4, fixed_abs, tag = 'smem constant byte address 0x4 - core index']
  #allocation1 [shape = 'u32[72,128]{1,0:T(1,128)}', space=vmem, size = 0x9000, scoped, tag = 'internal scratch']
  #allocation2 [shape = 'bf16[10,10,4]{2,1,0:T(8,128)(2,1)}', space=vmem, size = 0xa000, scoped, tag = 'scratch operand']
  %s0 = inlined_call_operand.vmem [shape: bf16[2,8,8,4], index: 0, kind: input, shape index: {}, may-alias: {0,1,2}]
  %s1 = inlined_call_operand.vmem [shape: bf16[2,8,8,4], index: 1, kind: input, shape index: {}, may-alias: {0,1,2}]
  %s2 = inlined_call_operand.vmem [shape: bf16[2,8,8,4], index: 2, kind: input, shape index: {}, may-alias: {0,1,2}]
  %s3 = inlined_call_operand.vmem [shape: bf16[3,3,4,8], index: 3, kind: input, shape index: {}]
  %s4 = inlined_call_operand.vmem [shape: f32[1,1,4], index: 4, kind: input, shape index: {}]
  %s5 = inlined_call_operand.vmem [shape: f32[1,1,4], index: 5, kind: input, shape index: {}]
  %s6 = inlined_call_operand.vmem [shape: bf16[2,8,8,8], index: 6, kind: output, shape index: {0}]
  %s7 = inlined_call_operand.vmem [shape: f32[2,1,2,8], index: 7, kind: output, shape index: {1}]
  %8 = xla_tuple %s6, %s7
  %s9 = sld [smem:[#allocation0]]
  $region81: #{down2.5} parent=0
    _
  %s11 = ssub.s32 1, %s9
  %s12 = scalar_select 0, %s11, %s9
  loop: start=0, step=1, limit=4
  $region2: #{down2.5} parent=0 // loop_pre_header
    _
  $region3: #{down2.5} parent=0 // loop_header
    %s14 = sphi 0, %s18
    %p15 = scmp.ge.s32.totalorder %s14, 4
    %s21 = sphi 0, %s33
    %s22 = sphi 0, %s29
    %s23 = sphi 0, %s21
    %s24 = sphi 0, %s22
    %s25 = sphi 0, %s23
    %s26 = sphi 0, %s24
    %s38 = sphi 0, %s40
    %s41 = sphi 0, %s38
    %s42 = sphi 0, %s41
    %s58 = sphi 0, %s42
    %s74 = sphi 0, %s76
    %s77 = sphi 0, %s74
    %s78 = sphi 0, %s77
    %s94 = sphi 0, %s78
    %s110 = sphi 0, %s112
    %s113 = sphi 0, %s110
    %s114 = sphi 0, %s113
    %s130 = sphi 0, %s114
    %s134 = sphi 0, %s134
    %s136 = sphi 0, %s134
    %s137 = sphi 0, %s136
    %s151 = sphi 0, %s137
    %s155 = sphi 0, %s155
    %s157 = sphi 0, %s155
    %s158 = sphi 0, %s157
    %s172 = sphi 0, %s158
    %s176 = sphi 0, %s176
    %s178 = sphi 0, %s176
    %s179 = sphi 0, %s178
    %s193 = sphi 0, %s179
    %s201 = sphi 0, %s203
    %s204 = sphi 0, %s201
    %s205 = sphi 0, %s204
    %s221 = sphi 0, %s205
    %s229 = sphi 0, %s231
    %s232 = sphi 0, %s229
    %s233 = sphi 0, %s232
    %s249 = sphi 0, %s233
  $region4: #{down2.5} parent=0 // loop_header_branch
    %17 = sbr.rel (%p15) target = $region8
  $region5: #{down2.5} parent=0 // loop_body
    %s19 = ssub.s32 %s14, 1
    %s20 = ssub.s32 %s14, 2
    %s27 = sadd.s32 1, %s22
    %p28 = scmp.ge.s32.totalorder %s27, 1
    %s29 = scalar_select %p28, 0, %s27
    %s30 = sadd.s32 1, %s21
    %s31 = scalar_select %p28, %s30, %s21
    %p32 = scmp.ge.s32.totalorder %s31, 2
    %s33 = scalar_select %p32, 0, %s31
    %s34 = ssub.s32 %s21, %s33
    %s35 = ssub.s32 %s22, %s29
    %s36 = sor.u32 %s34, %s35
    %p37 = scmp.eq.s32.totalorder %s36, 0
    %s39 = sadd.s32 %s38, 1
    %s40 = scalar_select %p37, %s38, %s39
    %p43 = pneg %p37
    %p44 = scmp.eq.s32.totalorder %s14, 1
    %p45 = por %p43, %p44
    %p46 = scmp.ne.s32.totalorder %s38, %s41
    %p47 = scmp.eq.s32.totalorder %s14, 0
    %p48 = por %p46, %p47
    %p49 = scmp.ne.s32.totalorder %s38, %s41
    %p50 = scmp.eq.s32.totalorder %s19, 1
    %p51 = por %p49, %p50
    %p52 = scmp.ne.s32.totalorder %s41, %s42
    %p53 = scmp.eq.s32.totalorder %s19, 0
    %p54 = por %p52, %p53
    %p55 = scmp.ne.s32.totalorder %s41, %s42
    %p56 = scmp.eq.s32.totalorder %s20, 1
    %p57 = por %p55, %p56
    %p59 = scmp.ne.s32.totalorder %s42, %s58
    %p60 = scmp.eq.s32.totalorder %s20, 0
    %p61 = por %p59, %p60
    %s62 = smul.u32 %s22, 8
    %s63 = ssub.s32 %s62, 1
    %p64 = scmp.gt.s32.totalorder %s63, 0
    %s65 = scalar_select %p64, %s63, 0
    %s66 = smul.u32 %s29, 8
    %s67 = ssub.s32 %s66, 1
    %p68 = scmp.gt.s32.totalorder %s67, 0
    %s69 = scalar_select %p68, %s67, 0
    %s70 = ssub.s32 %s21, %s33
    %s71 = ssub.s32 %s65, %s69
    %s72 = sor.u32 %s70, %s71
    %p73 = scmp.eq.s32.totalorder %s72, 0
    %s75 = sadd.s32 %s74, 1
    %s76 = scalar_select %p73, %s74, %s75
    %p79 = pneg %p73
    %p80 = scmp.eq.s32.totalorder %s14, 1
    %p81 = por %p79, %p80
    %p82 = scmp.ne.s32.totalorder %s74, %s77
    %p83 = scmp.eq.s32.totalorder %s14, 0
    %p84 = por %p82, %p83
    %p85 = scmp.ne.s32.totalorder %s74, %s77
    %p86 = scmp.eq.s32.totalorder %s19, 1
    %p87 = por %p85, %p86
    %p88 = scmp.ne.s32.totalorder %s77, %s78
    %p89 = scmp.eq.s32.totalorder %s19, 0
    %p90 = por %p88, %p89
    %p91 = scmp.ne.s32.totalorder %s77, %s78
    %p92 = scmp.eq.s32.totalorder %s20, 1
    %p93 = por %p91, %p92
    %p95 = scmp.ne.s32.totalorder %s78, %s94
    %p96 = scmp.eq.s32.totalorder %s20, 0
    %p97 = por %p95, %p96
    %s98 = sadd.s32 %s22, 1
    %s99 = smul.u32 %s98, 8
    %p100 = scmp.lt.s32.totalorder %s99, 7
    %s101 = scalar_select %p100, %s99, 7
    %s102 = sadd.s32 %s29, 1
    %s103 = smul.u32 %s102, 8
    %p104 = scmp.lt.s32.totalorder %s103, 7
    %s105 = scalar_select %p104, %s103, 7
    %s106 = ssub.s32 %s21, %s33
    %s107 = ssub.s32 %s101, %s105
    %s108 = sor.u32 %s106, %s107
    %p109 = scmp.eq.s32.totalorder %s108, 0
    %s111 = sadd.s32 %s110, 1
    %s112 = scalar_select %p109, %s110, %s111
    %p115 = pneg %p109
    %p116 = scmp.eq.s32.totalorder %s14, 1
    %p117 = por %p115, %p116
    %p118 = scmp.ne.s32.totalorder %s110, %s113
    %p119 = scmp.eq.s32.totalorder %s14, 0
    %p120 = por %p118, %p119
    %p121 = scmp.ne.s32.totalorder %s110, %s113
    %p122 = scmp.eq.s32.totalorder %s19, 1
    %p123 = por %p121, %p122
    %p124 = scmp.ne.s32.totalorder %s113, %s114
    %p125 = scmp.eq.s32.totalorder %s19, 0
    %p126 = por %p124, %p125
    %p127 = scmp.ne.s32.totalorder %s113, %s114
    %p128 = scmp.eq.s32.totalorder %s20, 1
    %p129 = por %p127, %p128
    %p131 = scmp.ne.s32.totalorder %s114, %s130
    %p132 = scmp.eq.s32.totalorder %s20, 0
    %p133 = por %p131, %p132
    %s135 = sadd.s32 %s134, 1
    %p138 = scmp.eq.s32.totalorder %s14, 1
    %p139 = scmp.ne.s32.totalorder %s134, %s136
    %p140 = scmp.eq.s32.totalorder %s14, 0
    %p141 = por %p139, %p140
    %p142 = scmp.ne.s32.totalorder %s134, %s136
    %p143 = scmp.eq.s32.totalorder %s19, 1
    %p144 = por %p142, %p143
    %p145 = scmp.ne.s32.totalorder %s136, %s137
    %p146 = scmp.eq.s32.totalorder %s19, 0
    %p147 = por %p145, %p146
    %p148 = scmp.ne.s32.totalorder %s136, %s137
    %p149 = scmp.eq.s32.totalorder %s20, 1
    %p150 = por %p148, %p149
    %p152 = scmp.ne.s32.totalorder %s137, %s151
    %p153 = scmp.eq.s32.totalorder %s20, 0
    %p154 = por %p152, %p153
    %s156 = sadd.s32 %s155, 1
    %p159 = scmp.eq.s32.totalorder %s14, 1
    %p160 = scmp.ne.s32.totalorder %s155, %s157
    %p161 = scmp.eq.s32.totalorder %s14, 0
    %p162 = por %p160, %p161
    %p163 = scmp.ne.s32.totalorder %s155, %s157
    %p164 = scmp.eq.s32.totalorder %s19, 1
    %p165 = por %p163, %p164
    %p166 = scmp.ne.s32.totalorder %s157, %s158
    %p167 = scmp.eq.s32.totalorder %s19, 0
    %p168 = por %p166, %p167
    %p169 = scmp.ne.s32.totalorder %s157, %s158
    %p170 = scmp.eq.s32.totalorder %s20, 1
    %p171 = por %p169, %p170
    %p173 = scmp.ne.s32.totalorder %s158, %s172
    %p174 = scmp.eq.s32.totalorder %s20, 0
    %p175 = por %p173, %p174
    %s177 = sadd.s32 %s176, 1
    %p180 = scmp.eq.s32.totalorder %s14, 1
    %p181 = scmp.ne.s32.totalorder %s176, %s178
    %p182 = scmp.eq.s32.totalorder %s14, 0
    %p183 = por %p181, %p182
    %p184 = scmp.ne.s32.totalorder %s176, %s178
    %p185 = scmp.eq.s32.totalorder %s19, 1
    %p186 = por %p184, %p185
    %p187 = scmp.ne.s32.totalorder %s178, %s179
    %p188 = scmp.eq.s32.totalorder %s19, 0
    %p189 = por %p187, %p188
    %p190 = scmp.ne.s32.totalorder %s178, %s179
    %p191 = scmp.eq.s32.totalorder %s20, 1
    %p192 = por %p190, %p191
    %p194 = scmp.ne.s32.totalorder %s179, %s193
    %p195 = scmp.eq.s32.totalorder %s20, 0
    %p196 = por %p194, %p195
    %s197 = ssub.s32 %s21, %s33
    %s198 = ssub.s32 %s22, %s29
    %s199 = sor.u32 %s197, %s198
    %p200 = scmp.eq.s32.totalorder %s199, 0
    %s202 = sadd.s32 %s201, 1
    %s203 = scalar_select %p200, %s201, %s202
    %p206 = pneg %p200
    %p207 = scmp.eq.s32.totalorder %s14, 1
    %p208 = por %p206, %p207
    %p209 = scmp.ne.s32.totalorder %s201, %s204
    %p210 = scmp.eq.s32.totalorder %s14, 0
    %p211 = por %p209, %p210
    %p212 = scmp.ne.s32.totalorder %s201, %s204
    %p213 = scmp.eq.s32.totalorder %s19, 1
    %p214 = por %p212, %p213
    %p215 = scmp.ne.s32.totalorder %s204, %s205
    %p216 = scmp.eq.s32.totalorder %s19, 0
    %p217 = por %p215, %p216
    %p218 = scmp.ne.s32.totalorder %s204, %s205
    %p219 = scmp.eq.s32.totalorder %s20, 1
    %p220 = por %p218, %p219
    %p222 = scmp.ne.s32.totalorder %s205, %s221
    %p223 = scmp.eq.s32.totalorder %s20, 0
    %p224 = por %p222, %p223
    %s225 = ssub.s32 %s21, %s33
    %s226 = ssub.s32 %s22, %s29
    %s227 = sor.u32 %s225, %s226
    %p228 = scmp.eq.s32.totalorder %s227, 0
    %s230 = sadd.s32 %s229, 1
    %s231 = scalar_select %p228, %s229, %s230
    %p234 = pneg %p228
    %p235 = scmp.eq.s32.totalorder %s14, 1
    %p236 = por %p234, %p235
    %p237 = scmp.ne.s32.totalorder %s229, %s232
    %p238 = scmp.eq.s32.totalorder %s14, 0
    %p239 = por %p237, %p238
    %p240 = scmp.ne.s32.totalorder %s229, %s232
    %p241 = scmp.eq.s32.totalorder %s19, 1
    %p242 = por %p240, %p241
    %p243 = scmp.ne.s32.totalorder %s232, %s233
    %p244 = scmp.eq.s32.totalorder %s19, 0
    %p245 = por %p243, %p244
    %p246 = scmp.ne.s32.totalorder %s232, %s233
    %p247 = scmp.eq.s32.totalorder %s20, 1
    %p248 = por %p246, %p247
    %p250 = scmp.ne.s32.totalorder %s233, %s249
    %p251 = scmp.eq.s32.totalorder %s20, 0
    %p252 = por %p250, %p251
    %p253 = scmp.le.s32.totalorder 1, %s14
    %p254 = scmp.lt.s32.totalorder %s14, 3
    %p255 = pnand %p253, %p254
    %p256 = pneg %p255
    // Predicated region
    $region9: #{down2.5} parent=5 // pred_check
      _
    $region10: #{down2.5} parent=5 // pred_check_branch
      %258 = sbr.rel (%p255) target = $region12
    $region11: #{down2.5} parent=5 // pred_region
      %s259 = ssub.s32 %s14, 1
      // Predicated region
      $region13: #{down2.5} parent=11 // pred_check
        %p260 = pneg %p147
      $region14: #{down2.5} parent=11 // pred_check_branch
        %262 = sbr.rel (%p260) target = $region16
      $region15: #{down2.5} parent=11 // pred_region
        _
      $region16: #{down2.5} parent=11 // pred_fallthru
        _
      // Predicated region
      $region17: #{down2.5} parent=11 // pred_check
        %p263 = pneg %p168
      $region18: #{down2.5} parent=11 // pred_check_branch
        %265 = sbr.rel (%p263) target = $region20
      $region19: #{down2.5} parent=11 // pred_region
        _
      $region20: #{down2.5} parent=11 // pred_fallthru
        _
      // Predicated region
      $region21: #{down2.5} parent=11 // pred_check
        %p266 = pneg %p189
      $region22: #{down2.5} parent=11 // pred_check_branch
        %268 = sbr.rel (%p266) target = $region24
      $region23: #{down2.5} parent=11 // pred_region
        _
      $region24: #{down2.5} parent=11 // pred_fallthru
        _
    $region12: #{down2.5} parent=5 // pred_fallthru
      _
    %p269 = scmp.lt.s32.totalorder %s14, 2
    // Predicated region
    $region25: #{down2.5} parent=5 // pred_check
      %p270 = pneg %p269
    $region26: #{down2.5} parent=5 // pred_check_branch
      %272 = sbr.rel (%p270) target = $region28
    $region27: #{down2.5} parent=5 // pred_region
      // Predicated region
      $region29: #{down2.5} parent=27 // pred_check
        %p273 = pneg %p48
      $region30: #{down2.5} parent=27 // pred_check_branch
        %275 = sbr.rel (%p273) target = $region32
      $region31: #{down2.5} parent=27 // pred_region
        %s276 = smul.u32 8, %s22
        %p277 = scmp.lt.s32.totalorder %s21, 1
        %s278 = scalar_select %p277, %s21, 1
        %p279 = scmp.lt.s32.totalorder %s276, 7
        %s280 = scalar_select %p279, %s276, 7
        %s281 = smul.addr %s278, 8
        %s282 = sadd.s32 %s280, %s281
        %s283 = smul.addr %s282, 4
        %s284 = scalar_lea.vmem %s0, %s283
        %s285 = smul.u32 8, %s22
      $region32: #{down2.5} parent=27 // pred_fallthru
        _
      // Predicated region
      $region33: #{down2.5} parent=27 // pred_check
        %p286 = pneg %p84
      $region34: #{down2.5} parent=27 // pred_check_branch
        %288 = sbr.rel (%p286) target = $region36
      $region35: #{down2.5} parent=27 // pred_region
        %s289 = smul.u32 %s22, 8
        %s290 = ssub.s32 %s289, 1
        %p291 = scmp.gt.s32.totalorder %s290, 0
        %s292 = scalar_select %p291, %s290, 0
        %p293 = scmp.lt.s32.totalorder %s21, 1
        %s294 = scalar_select %p293, %s21, 1
        %p295 = scmp.lt.s32.totalorder %s292, 7
        %s296 = scalar_select %p295, %s292, 7
        %s297 = smul.addr %s294, 8
        %s298 = sadd.s32 %s296, %s297
        %s299 = smul.addr %s298, 4
        %s300 = scalar_lea.vmem %s1, %s299
        %s301 = smul.u32 %s22, 8
        %s302 = ssub.s32 %s301, 1
        %p303 = scmp.gt.s32.totalorder %s302, 0
        %s304 = scalar_select %p303, %s302, 0
      $region36: #{down2.5} parent=27 // pred_fallthru
        _
      // Predicated region
      $region37: #{down2.5} parent=27 // pred_check
        %p305 = pneg %p120
      $region38: #{down2.5} parent=27 // pred_check_branch
        %307 = sbr.rel (%p305) target = $region40
      $region39: #{down2.5} parent=27 // pred_region
        %s308 = sadd.s32 %s22, 1
        %s309 = smul.u32 %s308, 8
        %p310 = scmp.lt.s32.totalorder %s309, 7
        %s311 = scalar_select %p310, %s309, 7
        %p312 = scmp.lt.s32.totalorder %s21, 1
        %s313 = scalar_select %p312, %s21, 1
        %p314 = scmp.lt.s32.totalorder %s311, 7
        %s315 = scalar_select %p314, %s311, 7
        %s316 = smul.addr %s313, 8
        %s317 = sadd.s32 %s315, %s316
        %s318 = smul.addr %s317, 4
        %s319 = scalar_lea.vmem %s2, %s318
        %s320 = sadd.s32 %s22, 1
        %s321 = smul.u32 %s320, 8
        %p322 = scmp.lt.s32.totalorder %s321, 7
        %s323 = scalar_select %p322, %s321, 7
      $region40: #{down2.5} parent=27 // pred_fallthru
        _
    $region28: #{down2.5} parent=5 // pred_fallthru
      _
    %p324 = scmp.le.s32.totalorder 1, %s14
    %p325 = scmp.lt.s32.totalorder %s14, 3
    %p326 = pnand %p324, %p325
    %p327 = pneg %p326
    // Predicated region
    $region41: #{down2.5} parent=5 // pred_check
      _
    $region42: #{down2.5} parent=5 // pred_check_branch
      %329 = sbr.rel (%p326) target = $region44
    $region43: #{down2.5} parent=5 // pred_region
      %s330 = ssub.s32 %s14, 1
      %s331 = smul.u32 8, %s24
      %p332 = scmp.lt.s32.totalorder %s23, 1
      %s333 = scalar_select %p332, %s23, 1
      %p334 = scmp.lt.s32.totalorder %s331, 7
      %s335 = scalar_select %p334, %s331, 7
      %s336 = smul.addr %s333, 8
      %s337 = sadd.s32 %s335, %s336
      %s338 = smul.addr %s337, 4
      %s339 = scalar_lea.vmem %s0, %s338
      %p340 = pneg %p54
      %p341 = pneg %p51
      %s342 = smul.u32 %s24, 8
      %s343 = ssub.s32 %s342, 1
      %p344 = scmp.gt.s32.totalorder %s343, 0
      %s345 = scalar_select %p344, %s343, 0
      %p346 = scmp.lt.s32.totalorder %s23, 1
      %s347 = scalar_select %p346, %s23, 1
      %p348 = scmp.lt.s32.totalorder %s345, 7
      %s349 = scalar_select %p348, %s345, 7
      %s350 = smul.addr %s347, 8
      %s351 = sadd.s32 %s349, %s350
      %s352 = smul.addr %s351, 4
      %s353 = scalar_lea.vmem %s1, %s352
      %p354 = pneg %p90
      %p355 = pneg %p87
      %s356 = sadd.s32 %s24, 1
      %s357 = smul.u32 %s356, 8
      %p358 = scmp.lt.s32.totalorder %s357, 7
      %s359 = scalar_select %p358, %s357, 7
      %p360 = scmp.lt.s32.totalorder %s23, 1
      %s361 = scalar_select %p360, %s23, 1
      %p362 = scmp.lt.s32.totalorder %s359, 7
      %s363 = scalar_select %p362, %s359, 7
      %s364 = smul.addr %s361, 8
      %s365 = sadd.s32 %s363, %s364
      %s366 = smul.addr %s365, 4
      %s367 = scalar_lea.vmem %s2, %s366
      %p368 = pneg %p126
      %p369 = pneg %p123
      %p370 = pneg %p147
      %p371 = pneg %p144
      %p372 = pneg %p168
      %p373 = pneg %p165
      %p374 = pneg %p189
      %p375 = pneg %p186
      %p376 = pneg %p217
      %p377 = pneg %p214
      %s378 = smul.u32 8, %s24
      %p379 = scmp.lt.s32.totalorder %s23, 1
      %s380 = scalar_select %p379, %s23, 1
      %p381 = scmp.lt.s32.totalorder %s378, 7
      %s382 = scalar_select %p381, %s378, 7
      %s383 = smul.addr %s380, 8
      %s384 = sadd.s32 %s382, %s383
      %s385 = smul.addr %s384, 4
      %s386 = scalar_lea.vmem %s6, %s385
      %p387 = pneg %p245
      %p388 = pneg %p242
      %p389 = scmp.lt.s32.totalorder %s23, 1
      %s390 = scalar_select %p389, %s23, 1
      %p391 = scmp.lt.s32.totalorder %s24, 0
      %s392 = scalar_select %p391, %s24, 0
      %s393 = sadd.s32 %s392, %s390
      %s394 = smul.addr %s393, 2
      %s395 = scalar_lea.vmem %s7, %s394
      %s396 = smul.u32 8, %s24
      %p397 = scmp.lt.s32.totalorder %s23, 1
      %s398 = scalar_select %p397, %s23, 1
      %p399 = scmp.lt.s32.totalorder %s396, 7
      %s400 = scalar_select %p399, %s396, 7
      %s401 = smul.addr %s398, 8
      %s402 = sadd.s32 %s400, %s401
      %s403 = smul.addr %s402, 4
      %s404 = scalar_lea.vmem %s0, %s403
      %s405 = smul.u32 8, %s24
      %s406 = smul.u32 %s24, 8
      %s407 = ssub.s32 %s406, 1
      %p408 = scmp.gt.s32.totalorder %s407, 0
      %s409 = scalar_select %p408, %s407, 0
      %p410 = scmp.lt.s32.totalorder %s23, 1
      %s411 = scalar_select %p410, %s23, 1
      %p412 = scmp.lt.s32.totalorder %s409, 7
      %s413 = scalar_select %p412, %s409, 7
      %s414 = smul.addr %s411, 8
      %s415 = sadd.s32 %s413, %s414
      %s416 = smul.addr %s415, 4
      %s417 = scalar_lea.vmem %s1, %s416
      %s418 = smul.u32 %s24, 8
      %s419 = ssub.s32 %s418, 1
      %p420 = scmp.gt.s32.totalorder %s419, 0
      %s421 = scalar_select %p420, %s419, 0
      %s422 = sadd.s32 %s24, 1
      %s423 = smul.u32 %s422, 8
      %p424 = scmp.lt.s32.totalorder %s423, 7
      %s425 = scalar_select %p424, %s423, 7
      %p426 = scmp.lt.s32.totalorder %s23, 1
      %s427 = scalar_select %p426, %s23, 1
      %p428 = scmp.lt.s32.totalorder %s425, 7
      %s429 = scalar_select %p428, %s425, 7
      %s430 = smul.addr %s427, 8
      %s431 = sadd.s32 %s429, %s430
      %s432 = smul.addr %s431, 4
      %s433 = scalar_lea.vmem %s2, %s432
      %s434 = sadd.s32 %s24, 1
      %s435 = smul.u32 %s434, 8
      %p436 = scmp.lt.s32.totalorder %s435, 7
      %s437 = scalar_select %p436, %s435, 7
      %s438 = smul.u32 8, %s24
      %p439 = scmp.lt.s32.totalorder %s23, 1
      %s440 = scalar_select %p439, %s23, 1
      %p441 = scmp.lt.s32.totalorder %s438, 7
      %s442 = scalar_select %p441, %s438, 7
      %s443 = smul.addr %s440, 8
      %s444 = sadd.s32 %s442, %s443
      %s445 = smul.addr %s444, 4
      %s446 = scalar_lea.vmem %s6, %s445
      %s447 = smul.u32 8, %s24
      %p448 = scmp.lt.s32.totalorder %s23, 1
      %s449 = scalar_select %p448, %s23, 1
      %p450 = scmp.lt.s32.totalorder %s24, 0
      %s451 = scalar_select %p450, %s24, 0
      %s452 = sadd.s32 %s451, %s449
      %s453 = smul.addr %s452, 2
      %s454 = scalar_lea.vmem %s7, %s453
      %vm456 = vcmask 24576
      %vm457 = vsmask.f32 256
      %vm458 = vmand %vm456, %vm457
      %v459 = vld [vmem:[#allocation2] sm:$0x1]
      %v460 = vsel %vm458, 0, %v459
      %461 = vst [vmem:[#allocation2] sm:$0x1] %v460
      %v462 = vld [vmem:[#allocation2 + $0x8] sm:$0x1]
      %v463 = vsel %vm458, 0, %v462
      %464 = vst [vmem:[#allocation2 + $0x8] sm:$0x1] %v463
      %v465 = vld [vmem:[#allocation2 + $0x10] sm:$0x1]
      %v466 = vsel %vm458, 0, %v465
      %467 = vst [vmem:[#allocation2 + $0x10] sm:$0x1] %v466
      %v468 = vld [vmem:[#allocation2 + $0x18] sm:$0x1]
      %v469 = vsel %vm458, 0, %v468
      %470 = vst [vmem:[#allocation2 + $0x18] sm:$0x1] %v469
      %v471 = vld [vmem:[#allocation2 + $0x20] sm:$0x1]
      %v472 = vsel %vm458, 0, %v471
      %473 = vst [vmem:[#allocation2 + $0x20] sm:$0x1] %v472
      %v474 = vld [vmem:[#allocation2 + $0x28] sm:$0x1]
      %v475 = vsel %vm458, 0, %v474
      %476 = vst [vmem:[#allocation2 + $0x28] sm:$0x1] %v475
      %v477 = vld [vmem:[#allocation2 + $0x30] sm:$0x1]
      %v478 = vsel %vm458, 0, %v477
      %479 = vst [vmem:[#allocation2 + $0x30] sm:$0x1] %v478
      %v480 = vld [vmem:[#allocation2 + $0x38] sm:$0x1]
      %v481 = vsel %vm458, 0, %v480
      %482 = vst [vmem:[#allocation2 + $0x38] sm:$0x1] %v481
      %v483 = vld [vmem:[#allocation2 + $0x40] sm:$0x1]
      %v484 = vsel %vm458, 0, %v483
      %485 = vst [vmem:[#allocation2 + $0x40] sm:$0x1] %v484
      %v486 = vld [vmem:[#allocation2 + $0x48] sm:$0x1]
      %v487 = vsel %vm458, 0, %v486
      %488 = vst [vmem:[#allocation2 + $0x48] sm:$0x1] %v487
      %vm489 = vsmask.f32 7938
      %vm490 = vmand %vm456, %vm489
      %v491 = vld [vmem:[#allocation2 + $0x4] sm:$0x1]
      %v492 = vsel %vm490, 0, %v491
      %493 = vst [vmem:[#allocation2 + $0x4] sm:$0x1] %v492
      %v494 = vld [vmem:[#allocation2 + $0xc] sm:$0x1]
      %v495 = vsel %vm490, 0, %v494
      %496 = vst [vmem:[#allocation2 + $0xc] sm:$0x1] %v495
      %v497 = vld [vmem:[#allocation2 + $0x14] sm:$0x1]
      %v498 = vsel %vm490, 0, %v497
      %499 = vst [vmem:[#allocation2 + $0x14] sm:$0x1] %v498
      %v500 = vld [vmem:[#allocation2 + $0x1c] sm:$0x1]
      %v501 = vsel %vm490, 0, %v500
      %502 = vst [vmem:[#allocation2 + $0x1c] sm:$0x1] %v501
      %v503 = vld [vmem:[#allocation2 + $0x24] sm:$0x1]
      %v504 = vsel %vm490, 0, %v503
      %505 = vst [vmem:[#allocation2 + $0x24] sm:$0x1] %v504
      %v506 = vld [vmem:[#allocation2 + $0x2c] sm:$0x1]
      %v507 = vsel %vm490, 0, %v506
      %508 = vst [vmem:[#allocation2 + $0x2c] sm:$0x1] %v507
      %v509 = vld [vmem:[#allocation2 + $0x34] sm:$0x1]
      %v510 = vsel %vm490, 0, %v509
      %511 = vst [vmem:[#allocation2 + $0x34] sm:$0x1] %v510
      %v512 = vld [vmem:[#allocation2 + $0x3c] sm:$0x1]
      %v513 = vsel %vm490, 0, %v512
      %514 = vst [vmem:[#allocation2 + $0x3c] sm:$0x1] %v513
      %v515 = vld [vmem:[#allocation2 + $0x44] sm:$0x1]
      %v516 = vsel %vm490, 0, %v515
      %517 = vst [vmem:[#allocation2 + $0x44] sm:$0x1] %v516
      %v518 = vld [vmem:[#allocation2 + $0x4c] sm:$0x1]
      %v519 = vsel %vm490, 0, %v518
      %520 = vst [vmem:[#allocation2 + $0x4c] sm:$0x1] %v519
      %v521 = vld [vmem:[%s404] sm:$0xf]
      %v522 = vld [vmem:[%s404 + $0x4] sm:$0xf]
      %v523 = vld [vmem:[%s404 + $0x8] sm:$0xf]
      %v524 = vld [vmem:[%s404 + $0xc] sm:$0xf]
      %v525 = vld [vmem:[%s404 + $0x10] sm:$0xf]
      %v526 = vld [vmem:[%s404 + $0x14] sm:$0xf]
      %v527 = vld [vmem:[%s404 + $0x18] sm:$0xf]
      %v528 = vld [vmem:[%s404 + $0x1c] sm:$0xf]
      %v530 = vshrl.u32 %v521, 16
      %v532 = vrot.slane %v530, 7
      %v533 = vshll.u32 %v521, 16
      %v535 = vor.u32 %v532, %v533
      %v536 = vrot.slane %v532, 4
      %v538 = vshrl.u32 %v522, 16
      %v540 = vrot.slane %v538, 7
      %v541 = vshll.u32 %v522, 16
      %v543 = vor.u32 %v540, %v541
      %v544 = vrot.slane %v540, 4
      %v546 = vshrl.u32 %v523, 16
      %v548 = vrot.slane %v546, 7
      %v549 = vshll.u32 %v523, 16
      %v551 = vor.u32 %v548, %v549
      %v552 = vrot.slane %v548, 4
      %v554 = vshrl.u32 %v524, 16
      %v556 = vrot.slane %v554, 7
      %v557 = vshll.u32 %v524, 16
      %v559 = vor.u32 %v556, %v557
      %v560 = vrot.slane %v556, 4
      %v562 = vshrl.u32 %v525, 16
      %v564 = vrot.slane %v562, 7
      %v565 = vshll.u32 %v525, 16
      %v567 = vor.u32 %v564, %v565
      %v568 = vrot.slane %v564, 4
      %v570 = vshrl.u32 %v526, 16
      %v572 = vrot.slane %v570, 7
      %v573 = vshll.u32 %v526, 16
      %v575 = vor.u32 %v572, %v573
      %v576 = vrot.slane %v572, 4
      %v578 = vshrl.u32 %v527, 16
      %v580 = vrot.slane %v578, 7
      %v581 = vshll.u32 %v527, 16
      %v583 = vor.u32 %v580, %v581
      %v584 = vrot.slane %v580, 4
      %v586 = vshrl.u32 %v528, 16
      %v588 = vrot.slane %v586, 7
      %v589 = vshll.u32 %v528, 16
      %v591 = vor.u32 %v588, %v589
      %v592 = vrot.slane %v588, 4
      %s609 = scalar_lea.vmem [#allocation2], 8
      %vm610 = vcmask 27648
      %vm611 = vmand %vm610, %vm489
      %v612 = vld [vmem:[%s609] sm:$0xf]
      %v613 = vsel %vm611, %v535, %v612
      %614 = vst [vmem:[%s609] sm:$0xf] %v613
      %v615 = vld [vmem:[%s609 + $0x4] sm:$0x1]
      %v616 = vsel %vm458, %v536, %v615
      %617 = vst [vmem:[%s609 + $0x4] sm:$0x1] %v616
      %v618 = vld [vmem:[%s609 + $0x8] sm:$0xf]
      %v619 = vsel %vm611, %v543, %v618
      %620 = vst [vmem:[%s609 + $0x8] sm:$0xf] %v619
      %v621 = vld [vmem:[%s609 + $0xc] sm:$0x1]
      %v622 = vsel %vm458, %v544, %v621
      %623 = vst [vmem:[%s609 + $0xc] sm:$0x1] %v622
      %v624 = vld [vmem:[%s609 + $0x10] sm:$0xf]
      %v625 = vsel %vm611, %v551, %v624
      %626 = vst [vmem:[%s609 + $0x10] sm:$0xf] %v625
      %v627 = vld [vmem:[%s609 + $0x14] sm:$0x1]
      %v628 = vsel %vm458, %v552, %v627
      %629 = vst [vmem:[%s609 + $0x14] sm:$0x1] %v628
      %v630 = vld [vmem:[%s609 + $0x18] sm:$0xf]
      %v631 = vsel %vm611, %v559, %v630
      %632 = vst [vmem:[%s609 + $0x18] sm:$0xf] %v631
      %v633 = vld [vmem:[%s609 + $0x1c] sm:$0x1]
      %v634 = vsel %vm458, %v560, %v633
      %635 = vst [vmem:[%s609 + $0x1c] sm:$0x1] %v634
      %v636 = vld [vmem:[%s609 + $0x20] sm:$0xf]
      %v637 = vsel %vm611, %v567, %v636
      %638 = vst [vmem:[%s609 + $0x20] sm:$0xf] %v637
      %v639 = vld [vmem:[%s609 + $0x24] sm:$0x1]
      %v640 = vsel %vm458, %v568, %v639
      %641 = vst [vmem:[%s609 + $0x24] sm:$0x1] %v640
      %v642 = vld [vmem:[%s609 + $0x28] sm:$0xf]
      %v643 = vsel %vm611, %v575, %v642
      %644 = vst [vmem:[%s609 + $0x28] sm:$0xf] %v643
      %v645 = vld [vmem:[%s609 + $0x2c] sm:$0x1]
      %v646 = vsel %vm458, %v576, %v645
      %647 = vst [vmem:[%s609 + $0x2c] sm:$0x1] %v646
      %v648 = vld [vmem:[%s609 + $0x30] sm:$0xf]
      %v649 = vsel %vm611, %v583, %v648
      %650 = vst [vmem:[%s609 + $0x30] sm:$0xf] %v649
      %v651 = vld [vmem:[%s609 + $0x34] sm:$0x1]
      %v652 = vsel %vm458, %v584, %v651
      %653 = vst [vmem:[%s609 + $0x34] sm:$0x1] %v652
      %v654 = vld [vmem:[%s609 + $0x38] sm:$0xf]
      %v655 = vsel %vm611, %v591, %v654
      %656 = vst [vmem:[%s609 + $0x38] sm:$0xf] %v655
      %v657 = vld [vmem:[%s609 + $0x3c] sm:$0x1]
      %v658 = vsel %vm458, %v592, %v657
      %659 = vst [vmem:[%s609 + $0x3c] sm:$0x1] %v658
      %p660 = scmp.eq.s32.totalorder %s24, 0
      // Predicated region
      $region45: #{down2.5} parent=43 // pred_check
        %p661 = pneg %p660
      $region46: #{down2.5} parent=43 // pred_check_branch
        %663 = sbr.rel (%p661) target = $region48
      $region47: #{down2.5} parent=43 // pred_region
        %v664 = vld [vmem:[#allocation2] sm:$0xf]
        %v665 = vsel %vm611, 0, %v664
        %666 = vst [vmem:[#allocation2] sm:$0xf] %v665
        %v667 = vld [vmem:[#allocation2 + $0x4] sm:$0x1]
        %v668 = vsel %vm458, 0, %v667
        %669 = vst [vmem:[#allocation2 + $0x4] sm:$0x1] %v668
      $region48: #{down2.5} parent=43 // pred_fallthru
        _
      %p670 = scmp.gt.s32.totalorder %s24, 0
      // Predicated region
      $region49: #{down2.5} parent=43 // pred_check
        %p671 = pneg %p670
      $region50: #{down2.5} parent=43 // pred_check_branch
        %673 = sbr.rel (%p671) target = $region52
      $region51: #{down2.5} parent=43 // pred_region
        %v674 = vld [vmem:[%s417] sm:$0xf]
        %v676 = vshrl.u32 %v674, 16
        %v678 = vrot.slane %v676, 7
        %v679 = vshll.u32 %v674, 16
        %v681 = vor.u32 %v678, %v679
        %v682 = vrot.slane %v678, 4
        %v685 = vld [vmem:[#allocation2] sm:$0xf]
        %v686 = vsel %vm611, %v681, %v685
        %687 = vst [vmem:[#allocation2] sm:$0xf] %v686
        %v688 = vld [vmem:[#allocation2 + $0x4] sm:$0x1]
        %v689 = vsel %vm458, %v682, %v688
        %690 = vst [vmem:[#allocation2 + $0x4] sm:$0x1] %v689
      $region52: #{down2.5} parent=43 // pred_fallthru
        _
      // Predicated region
      $region53: #{down2.5} parent=43 // pred_check
        %p691 = pneg %p660
      $region54: #{down2.5} parent=43 // pred_check_branch
        %693 = sbr.rel (%p691) target = $region56
      $region55: #{down2.5} parent=43 // pred_region
        %s694 = scalar_lea.vmem [#allocation2], 72
        %v695 = vld [vmem:[%s694] sm:$0xf]
        %v696 = vsel %vm611, 0, %v695
        %697 = vst [vmem:[%s694] sm:$0xf] %v696
        %v698 = vld [vmem:[%s694 + $0x4] sm:$0x1]
        %v699 = vsel %vm458, 0, %v698
        %700 = vst [vmem:[%s694 + $0x4] sm:$0x1] %v699
      $region56: #{down2.5} parent=43 // pred_fallthru
        _
      %p701 = scmp.lt.s32.totalorder %s24, 0
      // Predicated region
      $region57: #{down2.5} parent=43 // pred_check
        %p702 = pneg %p701
      $region58: #{down2.5} parent=43 // pred_check_branch
        %704 = sbr.rel (%p702) target = $region60
      $region59: #{down2.5} parent=43 // pred_region
        %v705 = vld [vmem:[%s433] sm:$0xf]
        %v707 = vshrl.u32 %v705, 16
        %v709 = vrot.slane %v707, 7
        %v710 = vshll.u32 %v705, 16
        %v712 = vor.u32 %v709, %v710
        %v713 = vrot.slane %v709, 4
        %s716 = scalar_lea.vmem [#allocation2], 72
        %v717 = vld [vmem:[%s716] sm:$0xf]
        %v718 = vsel %vm611, %v712, %v717
        %719 = vst [vmem:[%s716] sm:$0xf] %v718
        %v720 = vld [vmem:[%s716 + $0x4] sm:$0x1]
        %v721 = vsel %vm458, %v713, %v720
        %722 = vst [vmem:[%s716 + $0x4] sm:$0x1] %v721
      $region60: #{down2.5} parent=43 // pred_fallthru
        _
      %v723 = vld [vmem:[#allocation2] sm:$0xf]
      %v724 = vld [vmem:[#allocation2 + $0x8] sm:$0xf]
      %v725 = vld [vmem:[#allocation2 + $0x10] sm:$0xf]
      %v726 = vld [vmem:[#allocation2 + $0x18] sm:$0xf]
      %v727 = vld [vmem:[#allocation2 + $0x20] sm:$0xf]
      %v728 = vld [vmem:[#allocation2 + $0x28] sm:$0xf]
      %v729 = vld [vmem:[#allocation2 + $0x30] sm:$0xf]
      %v730 = vld [vmem:[#allocation2 + $0x38] sm:$0xf]
      %v731 = vld [vmem:[%s3] sm:$0x3]
      %v732 = vld [vmem:[#allocation2 + $0x4] sm:$0x1]
      %v733 = vld [vmem:[#allocation2 + $0xc] sm:$0x1]
      %v734 = vld [vmem:[#allocation2 + $0x14] sm:$0x1]
      %v735 = vld [vmem:[#allocation2 + $0x1c] sm:$0x1]
      %v736 = vld [vmem:[#allocation2 + $0x24] sm:$0x1]
      %v737 = vld [vmem:[#allocation2 + $0x2c] sm:$0x1]
      %v738 = vld [vmem:[#allocation2 + $0x34] sm:$0x1]
      %v739 = vld [vmem:[#allocation2 + $0x3c] sm:$0x1]
      %vm740 = vsmask.f32 3328
      %vm741 = vsmask.f32 7440
      %vm742 = vmor %vm740, %vm741
      %v744 = vshrl.u32 %v723, 16
      %v746 = vrot.slane %v744, 4
      %v747 = vshll.u32 %v723, 16
      %v749 = vrot.slane %v747, 5
      %v750 = vor.u32 %v746, %v749
      %v751 = vrot.slane %v750, 4
      %v753 = vshll.u32 %v732, 16
      %v755 = vrot.slane %v753, 5
      %v756 = vsel %vm742, %v751, %v755
      %v758 = vshrl.u32 %v724, 16
      %v760 = vrot.slane %v758, 4
      %v761 = vshll.u32 %v724, 16
      %v763 = vrot.slane %v761, 5
      %v764 = vor.u32 %v760, %v763
      %v765 = vrot.slane %v764, 4
      %v767 = vshll.u32 %v733, 16
      %v769 = vrot.slane %v767, 5
      %v770 = vsel %vm742, %v765, %v769
      %v772 = vshrl.u32 %v725, 16
      %v774 = vrot.slane %v772, 4
      %v775 = vshll.u32 %v725, 16
      %v777 = vrot.slane %v775, 5
      %v778 = vor.u32 %v774, %v777
      %v779 = vrot.slane %v778, 4
      %v781 = vshll.u32 %v734, 16
      %v783 = vrot.slane %v781, 5
      %v784 = vsel %vm742, %v779, %v783
      %v786 = vshrl.u32 %v726, 16
      %v788 = vrot.slane %v786, 4
      %v789 = vshll.u32 %v726, 16
      %v791 = vrot.slane %v789, 5
      %v792 = vor.u32 %v788, %v791
      %v793 = vrot.slane %v792, 4
      %v795 = vshll.u32 %v735, 16
      %v797 = vrot.slane %v795, 5
      %v798 = vsel %vm742, %v793, %v797
      %v800 = vshrl.u32 %v727, 16
      %v802 = vrot.slane %v800, 4
      %v803 = vshll.u32 %v727, 16
      %v805 = vrot.slane %v803, 5
      %v806 = vor.u32 %v802, %v805
      %v807 = vrot.slane %v806, 4
      %v809 = vshll.u32 %v736, 16
      %v811 = vrot.slane %v809, 5
      %v812 = vsel %vm742, %v807, %v811
      %v814 = vshrl.u32 %v728, 16
      %v816 = vrot.slane %v814, 4
      %v817 = vshll.u32 %v728, 16
      %v819 = vrot.slane %v817, 5
      %v820 = vor.u32 %v816, %v819
      %v821 = vrot.slane %v820, 4
      %v823 = vshll.u32 %v737, 16
      %v825 = vrot.slane %v823, 5
      %v826 = vsel %vm742, %v821, %v825
      %v828 = vshrl.u32 %v729, 16
      %v830 = vrot.slane %v828, 4
      %v831 = vshll.u32 %v729, 16
      %v833 = vrot.slane %v831, 5
      %v834 = vor.u32 %v830, %v833
      %v835 = vrot.slane %v834, 4
      %v837 = vshll.u32 %v738, 16
      %v839 = vrot.slane %v837, 5
      %v840 = vsel %vm742, %v835, %v839
      %v842 = vshrl.u32 %v730, 16
      %v844 = vrot.slane %v842, 4
      %v845 = vshll.u32 %v730, 16
      %v847 = vrot.slane %v845, 5
      %v848 = vor.u32 %v844, %v847
      %v849 = vrot.slane %v848, 4
      %v851 = vshll.u32 %v739, 16
      %v853 = vrot.slane %v851, 5
      %v854 = vsel %vm742, %v849, %v853
      %s855 = scalar_lea.vmem %s3, 2
      %v856 = vld [vmem:[%s855] sm:$0x3]
      %v857 = vunpack.c.l.b16 %v756
      %v858 = vunpack.c.l.b16 %v770
      %v859 = vunpack.c.l.b16 %v784
      %v860 = vunpack.c.l.b16 %v798
      %v861 = vunpack.c.l.b16 %v812
      %v862 = vunpack.c.l.b16 %v826
      %v863 = vunpack.c.l.b16 %v840
      %v864 = vunpack.c.l.b16 %v854
      %v865 = vpack.c.b16 %v858, %v857
      %v866 = vpack.c.b16 %v860, %v859
      %v867 = vpack.c.b16 %v862, %v861
      %v868 = vpack.c.b16 %v864, %v863
      %vm869 = vcmask 31744
      %v871 = vsel %vm869, %v865, 0
      %v874 = vsel %vm869, %v866, 0
      %v877 = vsel %vm869, %v867, 0
      %v880 = vsel %vm869, %v868, 0
      %vm882 = vcmask 1041408
      %v884 = vsel %vm882, %v856, 0
      %886 = vmatpush.bf16.msra.mxu0 0
      %887 = vmatpush.bf16.msra.mxu0 0
      %888 = vmatpush.bf16.msra.mxu0 0
      %889 = vmatpush.bf16.msra.mxu0 0
      %890 = vmatpush.bf16.msra.mxu0 0
      %891 = vmatpush.bf16.msra.mxu0 0
      %892 = vmatpush.bf16.msra.mxu0 0
      %893 = vmatpush.bf16.msra.mxu0 %v884
      %894 = vmatmul.bf16.gmra.mxu0 %v871
      %v895 = vpop.f32.mrf.mxu0
      %v896 = vadd.f32 0.0, %v895
      %v897 = vpop.f32.mrf.mxu0
      %v898 = vadd.f32 0.0, %v897
      %899 = vmatmul.bf16.gmra.mxu0 %v874
      %v900 = vpop.f32.mrf.mxu0
      %v901 = vadd.f32 0.0, %v900
      %v902 = vpop.f32.mrf.mxu0
      %v903 = vadd.f32 0.0, %v902
      %904 = vmatmul.bf16.gmra.mxu0 %v877
      %v905 = vpop.f32.mrf.mxu0
      %v906 = vadd.f32 0.0, %v905
      %v907 = vpop.f32.mrf.mxu0
      %v908 = vadd.f32 0.0, %v907
      %909 = vmatmul.bf16.gmra.mxu0 %v880
      %v910 = vpop.f32.mrf.mxu0
      %v911 = vadd.f32 0.0, %v910
      %v912 = vpop.f32.mrf.mxu0
      %v913 = vadd.f32 0.0, %v912
      %914 = vdwg.mxu0
      %v923 = vunpack.c.l.b16 %v723
      %v924 = vunpack.c.l.b16 %v724
      %v925 = vunpack.c.l.b16 %v725
      %v926 = vunpack.c.l.b16 %v726
      %v927 = vunpack.c.l.b16 %v727
      %v928 = vunpack.c.l.b16 %v728
      %v929 = vunpack.c.l.b16 %v729
      %v930 = vunpack.c.l.b16 %v730
      %v931 = vpack.c.b16 %v924, %v923
      %v932 = vpack.c.b16 %v926, %v925
      %v933 = vpack.c.b16 %v928, %v927
      %v934 = vpack.c.b16 %v930, %v929
      %v936 = vsel %vm869, %v931, 0
      %v939 = vsel %vm869, %v932, 0
      %v942 = vsel %vm869, %v933, 0
      %v945 = vsel %vm869, %v934, 0
      %v948 = vsel %vm882, %v731, 0
      %950 = vmatpush.bf16.msra.mxu0 0
      %951 = vmatpush.bf16.msra.mxu0 0
      %952 = vmatpush.bf16.msra.mxu0 0
      %953 = vmatpush.bf16.msra.mxu0 0
      %954 = vmatpush.bf16.msra.mxu0 0
      %955 = vmatpush.bf16.msra.mxu0 0
      %956 = vmatpush.bf16.msra.mxu0 0
      %957 = vmatpush.bf16.msra.mxu0 %v948
      %958 = vmatmul.bf16.gmra.mxu0 %v936
      %v959 = vpop.f32.mrf.mxu0
      %v960 = vadd.f32 %v896, %v959
      %v961 = vpop.f32.mrf.mxu0
      %v962 = vadd.f32 %v898, %v961
      %963 = vmatmul.bf16.gmra.mxu0 %v939
      %v964 = vpop.f32.mrf.mxu0
      %v965 = vadd.f32 %v901, %v964
      %v966 = vpop.f32.mrf.mxu0
      %v967 = vadd.f32 %v903, %v966
      %968 = vmatmul.bf16.gmra.mxu0 %v942
      %v969 = vpop.f32.mrf.mxu0
      %v970 = vadd.f32 %v906, %v969
      %v971 = vpop.f32.mrf.mxu0
      %v972 = vadd.f32 %v908, %v971
      %973 = vmatmul.bf16.gmra.mxu0 %v945
      %v974 = vpop.f32.mrf.mxu0
      %v975 = vadd.f32 %v911, %v974
      %v976 = vpop.f32.mrf.mxu0
      %v977 = vadd.f32 %v913, %v976
      %978 = vdwg.mxu0
      %v979 = vld [vmem:[#allocation2] sm:$0xe]
      %v980 = vld [vmem:[#allocation2 + $0x8] sm:$0xe]
      %v981 = vld [vmem:[#allocation2 + $0x10] sm:$0xe]
      %v982 = vld [vmem:[#allocation2 + $0x18] sm:$0xe]
      %v983 = vld [vmem:[#allocation2 + $0x20] sm:$0xe]
      %v984 = vld [vmem:[#allocation2 + $0x28] sm:$0xe]
      %v985 = vld [vmem:[#allocation2 + $0x30] sm:$0xe]
      %v986 = vld [vmem:[#allocation2 + $0x38] sm:$0xe]
      %vm1003 = vcmask 1042432
      %vm1004 = vcmask 1046532
      %vm1005 = vmor %vm1003, %vm1004
      %v1006 = vrot.slane %v979, 5
      %v1007 = vrot.slane %v1006, 4
      %v1008 = vrot.slane %v732, 5
      %v1009 = vsel %vm1005, %v1007, %v1008
      %v1010 = vrot.slane %v980, 5
      %v1011 = vrot.slane %v1010, 4
      %v1012 = vrot.slane %v733, 5
      %v1013 = vsel %vm1005, %v1011, %v1012
      %v1014 = vrot.slane %v981, 5
      %v1015 = vrot.slane %v1014, 4
      %v1016 = vrot.slane %v734, 5
      %v1017 = vsel %vm1005, %v1015, %v1016
      %v1018 = vrot.slane %v982, 5
      %v1019 = vrot.slane %v1018, 4
      %v1020 = vrot.slane %v735, 5
      %v1021 = vsel %vm1005, %v1019, %v1020
      %v1022 = vrot.slane %v983, 5
      %v1023 = vrot.slane %v1022, 4
      %v1024 = vrot.slane %v736, 5
      %v1025 = vsel %vm1005, %v1023, %v1024
      %v1026 = vrot.slane %v984, 5
      %v1027 = vrot.slane %v1026, 4
      %v1028 = vrot.slane %v737, 5
      %v1029 = vsel %vm1005, %v1027, %v1028
      %v1030 = vrot.slane %v985, 5
      %v1031 = vrot.slane %v1030, 4
      %v1032 = vrot.slane %v738, 5
      %v1033 = vsel %vm1005, %v1031, %v1032
      %v1034 = vrot.slane %v986, 5
      %v1035 = vrot.slane %v1034, 4
      %v1036 = vrot.slane %v739, 5
      %v1037 = vsel %vm1005, %v1035, %v1036
      %s1038 = scalar_lea.vmem %s3, 4
      %v1039 = vld [vmem:[%s1038] sm:$0x3]
      %v1040 = vunpack.c.l.b16 %v1009
      %v1041 = vunpack.c.l.b16 %v1013
      %v1042 = vunpack.c.l.b16 %v1017
      %v1043 = vunpack.c.l.b16 %v1021
      %v1044 = vunpack.c.l.b16 %v1025
      %v1045 = vunpack.c.l.b16 %v1029
      %v1046 = vunpack.c.l.b16 %v1033
      %v1047 = vunpack.c.l.b16 %v1037
      %v1048 = vpack.c.b16 %v1041, %v1040
      %v1049 = vpack.c.b16 %v1043, %v1042
      %v1050 = vpack.c.b16 %v1045, %v1044
      %v1051 = vpack.c.b16 %v1047, %v1046
      %v1053 = vsel %vm869, %v1048, 0
      %v1056 = vsel %vm869, %v1049, 0
      %v1059 = vsel %vm869, %v1050, 0
      %v1062 = vsel %vm869, %v1051, 0
      %v1065 = vsel %vm882, %v1039, 0
      %1067 = vmatpush.bf16.msra.mxu0 0
      %1068 = vmatpush.bf16.msra.mxu0 0
      %1069 = vmatpush.bf16.msra.mxu0 0
      %1070 = vmatpush.bf16.msra.mxu0 0
      %1071 = vmatpush.bf16.msra.mxu0 0
      %1072 = vmatpush.bf16.msra.mxu0 0
      %1073 = vmatpush.bf16.msra.mxu0 0
      %1074 = vmatpush.bf16.msra.mxu0 %v1065
      %1075 = vmatmul.bf16.gmra.mxu0 %v1053
      %v1076 = vpop.f32.mrf.mxu0
      %v1077 = vadd.f32 0.0, %v1076
      %v1078 = vpop.f32.mrf.mxu0
      %v1079 = vadd.f32 0.0, %v1078
      %1080 = vmatmul.bf16.gmra.mxu0 %v1056
      %v1081 = vpop.f32.mrf.mxu0
      %v1082 = vadd.f32 0.0, %v1081
      %v1083 = vpop.f32.mrf.mxu0
      %v1084 = vadd.f32 0.0, %v1083
      %1085 = vmatmul.bf16.gmra.mxu0 %v1059
      %v1086 = vpop.f32.mrf.mxu0
      %v1087 = vadd.f32 0.0, %v1086
      %v1088 = vpop.f32.mrf.mxu0
      %v1089 = vadd.f32 0.0, %v1088
      %1090 = vmatmul.bf16.gmra.mxu0 %v1062
      %v1091 = vpop.f32.mrf.mxu0
      %v1092 = vadd.f32 0.0, %v1091
      %v1093 = vpop.f32.mrf.mxu0
      %v1094 = vadd.f32 0.0, %v1093
      %1095 = vdwg.mxu0
      %v1096 = vadd.f32 %v960, %v1077
      %v1097 = vadd.f32 %v962, %v1079
      %v1098 = vadd.f32 %v965, %v1082
      %v1099 = vadd.f32 %v967, %v1084
      %v1100 = vadd.f32 %v970, %v1087
      %v1101 = vadd.f32 %v972, %v1089
      %v1102 = vadd.f32 %v975, %v1092
      %v1103 = vadd.f32 %v977, %v1094
      %v1104 = vld [vmem:[%s609] sm:$0xf]
      %v1105 = vld [vmem:[%s609 + $0x8] sm:$0xf]
      %v1106 = vld [vmem:[%s609 + $0x10] sm:$0xf]
      %v1107 = vld [vmem:[%s609 + $0x18] sm:$0xf]
      %v1108 = vld [vmem:[%s609 + $0x20] sm:$0xf]
      %v1109 = vld [vmem:[%s609 + $0x28] sm:$0xf]
      %v1110 = vld [vmem:[%s609 + $0x30] sm:$0xf]
      %v1111 = vld [vmem:[%s609 + $0x38] sm:$0xf]
      %s1112 = scalar_lea.vmem %s3, 6
      %v1113 = vld [vmem:[%s1112] sm:$0x3]
      %v1122 = vunpack.c.l.b16 %v1104
      %v1123 = vunpack.c.l.b16 %v1105
      %v1124 = vunpack.c.l.b16 %v1106
      %v1125 = vunpack.c.l.b16 %v1107
      %v1126 = vunpack.c.l.b16 %v1108
      %v1127 = vunpack.c.l.b16 %v1109
      %v1128 = vunpack.c.l.b16 %v1110
      %v1129 = vunpack.c.l.b16 %v1111
      %v1130 = vpack.c.b16 %v1123, %v1122
      %v1131 = vpack.c.b16 %v1125, %v1124
      %v1132 = vpack.c.b16 %v1127, %v1126
      %v1133 = vpack.c.b16 %v1129, %v1128
      %v1135 = vsel %vm869, %v1130, 0
      %v1138 = vsel %vm869, %v1131, 0
      %v1141 = vsel %vm869, %v1132, 0
      %v1144 = vsel %vm869, %v1133, 0
      %v1147 = vsel %vm882, %v1113, 0
      %1149 = vmatpush.bf16.msra.mxu0 0
      %1150 = vmatpush.bf16.msra.mxu0 0
      %1151 = vmatpush.bf16.msra.mxu0 0
      %1152 = vmatpush.bf16.msra.mxu0 0
      %1153 = vmatpush.bf16.msra.mxu0 0
      %1154 = vmatpush.bf16.msra.mxu0 0
      %1155 = vmatpush.bf16.msra.mxu0 0
      %1156 = vmatpush.bf16.msra.mxu0 %v1147
      %1157 = vmatmul.bf16.gmra.mxu0 %v1135
      %v1158 = vpop.f32.mrf.mxu0
      %v1159 = vadd.f32 0.0, %v1158
      %v1160 = vpop.f32.mrf.mxu0
      %v1161 = vadd.f32 0.0, %v1160
      %1162 = vmatmul.bf16.gmra.mxu0 %v1138
      %v1163 = vpop.f32.mrf.mxu0
      %v1164 = vadd.f32 0.0, %v1163
      %v1165 = vpop.f32.mrf.mxu0
      %v1166 = vadd.f32 0.0, %v1165
      %1167 = vmatmul.bf16.gmra.mxu0 %v1141
      %v1168 = vpop.f32.mrf.mxu0
      %v1169 = vadd.f32 0.0, %v1168
      %v1170 = vpop.f32.mrf.mxu0
      %v1171 = vadd.f32 0.0, %v1170
      %1172 = vmatmul.bf16.gmra.mxu0 %v1144
      %v1173 = vpop.f32.mrf.mxu0
      %v1174 = vadd.f32 0.0, %v1173
      %v1175 = vpop.f32.mrf.mxu0
      %v1176 = vadd.f32 0.0, %v1175
      %1177 = vdwg.mxu0
      %v1178 = vadd.f32 %v1096, %v1159
      %v1179 = vadd.f32 %v1097, %v1161
      %v1180 = vadd.f32 %v1098, %v1164
      %v1181 = vadd.f32 %v1099, %v1166
      %v1182 = vadd.f32 %v1100, %v1169
      %v1183 = vadd.f32 %v1101, %v1171
      %v1184 = vadd.f32 %v1102, %v1174
      %v1185 = vadd.f32 %v1103, %v1176
      %v1186 = vld [vmem:[%s609] sm:$0xf]
      %v1187 = vld [vmem:[%s609 + $0x4] sm:$0x1]
      %v1188 = vld [vmem:[%s609 + $0x8] sm:$0xf]
      %v1189 = vld [vmem:[%s609 + $0xc] sm:$0x1]
      %v1190 = vld [vmem:[%s609 + $0x10] sm:$0xf]
      %v1191 = vld [vmem:[%s609 + $0x14] sm:$0x1]
      %v1192 = vld [vmem:[%s609 + $0x18] sm:$0xf]
      %v1193 = vld [vmem:[%s609 + $0x1c] sm:$0x1]
      %v1194 = vld [vmem:[%s609 + $0x20] sm:$0xf]
      %v1195 = vld [vmem:[%s609 + $0x24] sm:$0x1]
      %v1196 = vld [vmem:[%s609 + $0x28] sm:$0xf]
      %v1197 = vld [vmem:[%s609 + $0x2c] sm:$0x1]
      %v1198 = vld [vmem:[%s609 + $0x30] sm:$0xf]
      %v1199 = vld [vmem:[%s609 + $0x34] sm:$0x1]
      %v1200 = vld [vmem:[%s609 + $0x38] sm:$0xf]
      %v1201 = vld [vmem:[%s609 + $0x3c] sm:$0x1]
      %v1203 = vshrl.u32 %v1186, 16
      %v1205 = vrot.slane %v1203, 4
      %v1206 = vshll.u32 %v1186, 16
      %v1208 = vrot.slane %v1206, 5
      %v1209 = vor.u32 %v1205, %v1208
      %v1210 = vrot.slane %v1209, 4
      %v1212 = vshll.u32 %v1187, 16
      %v1214 = vrot.slane %v1212, 5
      %v1215 = vsel %vm742, %v1210, %v1214
      %v1217 = vshrl.u32 %v1188, 16
      %v1219 = vrot.slane %v1217, 4
      %v1220 = vshll.u32 %v1188, 16
      %v1222 = vrot.slane %v1220, 5
      %v1223 = vor.u32 %v1219, %v1222
      %v1224 = vrot.slane %v1223, 4
      %v1226 = vshll.u32 %v1189, 16
      %v1228 = vrot.slane %v1226, 5
      %v1229 = vsel %vm742, %v1224, %v1228
      %v1231 = vshrl.u32 %v1190, 16
      %v1233 = vrot.slane %v1231, 4
      %v1234 = vshll.u32 %v1190, 16
      %v1236 = vrot.slane %v1234, 5
      %v1237 = vor.u32 %v1233, %v1236
      %v1238 = vrot.slane %v1237, 4
      %v1240 = vshll.u32 %v1191, 16
      %v1242 = vrot.slane %v1240, 5
      %v1243 = vsel %vm742, %v1238, %v1242
      %v1245 = vshrl.u32 %v1192, 16
      %v1247 = vrot.slane %v1245, 4
      %v1248 = vshll.u32 %v1192, 16
      %v1250 = vrot.slane %v1248, 5
      %v1251 = vor.u32 %v1247, %v1250
      %v1252 = vrot.slane %v1251, 4
      %v1254 = vshll.u32 %v1193, 16
      %v1256 = vrot.slane %v1254, 5
      %v1257 = vsel %vm742, %v1252, %v1256
      %v1259 = vshrl.u32 %v1194, 16
      %v1261 = vrot.slane %v1259, 4
      %v1262 = vshll.u32 %v1194, 16
      %v1264 = vrot.slane %v1262, 5
      %v1265 = vor.u32 %v1261, %v1264
      %v1266 = vrot.slane %v1265, 4
      %v1268 = vshll.u32 %v1195, 16
      %v1270 = vrot.slane %v1268, 5
      %v1271 = vsel %vm742, %v1266, %v1270
      %v1273 = vshrl.u32 %v1196, 16
      %v1275 = vrot.slane %v1273, 4
      %v1276 = vshll.u32 %v1196, 16
      %v1278 = vrot.slane %v1276, 5
      %v1279 = vor.u32 %v1275, %v1278
      %v1280 = vrot.slane %v1279, 4
      %v1282 = vshll.u32 %v1197, 16
      %v1284 = vrot.slane %v1282, 5
      %v1285 = vsel %vm742, %v1280, %v1284
      %v1287 = vshrl.u32 %v1198, 16
      %v1289 = vrot.slane %v1287, 4
      %v1290 = vshll.u32 %v1198, 16
      %v1292 = vrot.slane %v1290, 5
      %v1293 = vor.u32 %v1289, %v1292
      %v1294 = vrot.slane %v1293, 4
      %v1296 = vshll.u32 %v1199, 16
      %v1298 = vrot.slane %v1296, 5
      %v1299 = vsel %vm742, %v1294, %v1298
      %v1301 = vshrl.u32 %v1200, 16
      %v1303 = vrot.slane %v1301, 4
      %v1304 = vshll.u32 %v1200, 16
      %v1306 = vrot.slane %v1304, 5
      %v1307 = vor.u32 %v1303, %v1306
      %v1308 = vrot.slane %v1307, 4
      %v1310 = vshll.u32 %v1201, 16
      %v1312 = vrot.slane %v1310, 5
      %v1313 = vsel %vm742, %v1308, %v1312
      %s1314 = scalar_lea.vmem %s3, 8
      %v1315 = vld [vmem:[%s1314] sm:$0x3]
      %v1316 = vunpack.c.l.b16 %v1215
      %v1317 = vunpack.c.l.b16 %v1229
      %v1318 = vunpack.c.l.b16 %v1243
      %v1319 = vunpack.c.l.b16 %v1257
      %v1320 = vunpack.c.l.b16 %v1271
      %v1321 = vunpack.c.l.b16 %v1285
      %v1322 = vunpack.c.l.b16 %v1299
      %v1323 = vunpack.c.l.b16 %v1313
      %v1324 = vpack.c.b16 %v1317, %v1316
      %v1325 = vpack.c.b16 %v1319, %v1318
      %v1326 = vpack.c.b16 %v1321, %v1320
      %v1327 = vpack.c.b16 %v1323, %v1322
      %v1329 = vsel %vm869, %v1324, 0
      %v1332 = vsel %vm869, %v1325, 0
      %v1335 = vsel %vm869, %v1326, 0
      %v1338 = vsel %vm869, %v1327, 0
      %v1341 = vsel %vm882, %v1315, 0
      %1343 = vmatpush.bf16.msra.mxu0 0
      %1344 = vmatpush.bf16.msra.mxu0 0
      %1345 = vmatpush.bf16.msra.mxu0 0
      %1346 = vmatpush.bf16.msra.mxu0 0
      %1347 = vmatpush.bf16.msra.mxu0 0
      %1348 = vmatpush.bf16.msra.mxu0 0
      %1349 = vmatpush.bf16.msra.mxu0 0
      %1350 = vmatpush.bf16.msra.mxu0 %v1341
      %1351 = vmatmul.bf16.gmra.mxu0 %v1329
      %v1352 = vpop.f32.mrf.mxu0
      %v1353 = vadd.f32 0.0, %v1352
      %v1354 = vpop.f32.mrf.mxu0
      %v1355 = vadd.f32 0.0, %v1354
      %1356 = vmatmul.bf16.gmra.mxu0 %v1332
      %v1357 = vpop.f32.mrf.mxu0
      %v1358 = vadd.f32 0.0, %v1357
      %v1359 = vpop.f32.mrf.mxu0
      %v1360 = vadd.f32 0.0, %v1359
      %1361 = vmatmul.bf16.gmra.mxu0 %v1335
      %v1362 = vpop.f32.mrf.mxu0
      %v1363 = vadd.f32 0.0, %v1362
      %v1364 = vpop.f32.mrf.mxu0
      %v1365 = vadd.f32 0.0, %v1364
      %1366 = vmatmul.bf16.gmra.mxu0 %v1338
      %v1367 = vpop.f32.mrf.mxu0
      %v1368 = vadd.f32 0.0, %v1367
      %v1369 = vpop.f32.mrf.mxu0
      %v1370 = vadd.f32 0.0, %v1369
      %1371 = vdwg.mxu0
      %v1372 = vadd.f32 %v1178, %v1353
      %v1373 = vadd.f32 %v1179, %v1355
      %v1374 = vadd.f32 %v1180, %v1358
      %v1375 = vadd.f32 %v1181, %v1360
      %v1376 = vadd.f32 %v1182, %v1363
      %v1377 = vadd.f32 %v1183, %v1365
      %v1378 = vadd.f32 %v1184, %v1368
      %v1379 = vadd.f32 %v1185, %v1370
      %v1380 = vld [vmem:[%s609] sm:$0xe]
      %v1381 = vld [vmem:[%s609 + $0x8] sm:$0xe]
      %v1382 = vld [vmem:[%s609 + $0x10] sm:$0xe]
      %v1383 = vld [vmem:[%s609 + $0x18] sm:$0xe]
      %v1384 = vld [vmem:[%s609 + $0x20] sm:$0xe]
      %v1385 = vld [vmem:[%s609 + $0x28] sm:$0xe]
      %v1386 = vld [vmem:[%s609 + $0x30] sm:$0xe]
      %v1387 = vld [vmem:[%s609 + $0x38] sm:$0xe]
      %v1404 = vrot.slane %v1380, 5
      %v1405 = vrot.slane %v1404, 4
      %v1406 = vrot.slane %v1187, 5
      %v1407 = vsel %vm1005, %v1405, %v1406
      %v1408 = vrot.slane %v1381, 5
      %v1409 = vrot.slane %v1408, 4
      %v1410 = vrot.slane %v1189, 5
      %v1411 = vsel %vm1005, %v1409, %v1410
      %v1412 = vrot.slane %v1382, 5
      %v1413 = vrot.slane %v1412, 4
      %v1414 = vrot.slane %v1191, 5
      %v1415 = vsel %vm1005, %v1413, %v1414
      %v1416 = vrot.slane %v1383, 5
      %v1417 = vrot.slane %v1416, 4
      %v1418 = vrot.slane %v1193, 5
      %v1419 = vsel %vm1005, %v1417, %v1418
      %v1420 = vrot.slane %v1384, 5
      %v1421 = vrot.slane %v1420, 4
      %v1422 = vrot.slane %v1195, 5
      %v1423 = vsel %vm1005, %v1421, %v1422
      %v1424 = vrot.slane %v1385, 5
      %v1425 = vrot.slane %v1424, 4
      %v1426 = vrot.slane %v1197, 5
      %v1427 = vsel %vm1005, %v1425, %v1426
      %v1428 = vrot.slane %v1386, 5
      %v1429 = vrot.slane %v1428, 4
      %v1430 = vrot.slane %v1199, 5
      %v1431 = vsel %vm1005, %v1429, %v1430
      %v1432 = vrot.slane %v1387, 5
      %v1433 = vrot.slane %v1432, 4
      %v1434 = vrot.slane %v1201, 5
      %v1435 = vsel %vm1005, %v1433, %v1434
      %s1436 = scalar_lea.vmem %s3, 10
      %v1437 = vld [vmem:[%s1436] sm:$0x3]
      %v1438 = vunpack.c.l.b16 %v1407
      %v1439 = vunpack.c.l.b16 %v1411
      %v1440 = vunpack.c.l.b16 %v1415
      %v1441 = vunpack.c.l.b16 %v1419
      %v1442 = vunpack.c.l.b16 %v1423
      %v1443 = vunpack.c.l.b16 %v1427
      %v1444 = vunpack.c.l.b16 %v1431
      %v1445 = vunpack.c.l.b16 %v1435
      %v1446 = vpack.c.b16 %v1439, %v1438
      %v1447 = vpack.c.b16 %v1441, %v1440
      %v1448 = vpack.c.b16 %v1443, %v1442
      %v1449 = vpack.c.b16 %v1445, %v1444
      %v1451 = vsel %vm869, %v1446, 0
      %v1454 = vsel %vm869, %v1447, 0
      %v1457 = vsel %vm869, %v1448, 0
      %v1460 = vsel %vm869, %v1449, 0
      %v1463 = vsel %vm882, %v1437, 0
      %1465 = vmatpush.bf16.msra.mxu0 0
      %1466 = vmatpush.bf16.msra.mxu0 0
      %1467 = vmatpush.bf16.msra.mxu0 0
      %1468 = vmatpush.bf16.msra.mxu0 0
      %1469 = vmatpush.bf16.msra.mxu0 0
      %1470 = vmatpush.bf16.msra.mxu0 0
      %1471 = vmatpush.bf16.msra.mxu0 0
      %1472 = vmatpush.bf16.msra.mxu0 %v1463
      %1473 = vmatmul.bf16.gmra.mxu0 %v1451
      %v1474 = vpop.f32.mrf.mxu0
      %v1475 = vadd.f32 0.0, %v1474
      %v1476 = vpop.f32.mrf.mxu0
      %v1477 = vadd.f32 0.0, %v1476
      %1478 = vmatmul.bf16.gmra.mxu0 %v1454
      %v1479 = vpop.f32.mrf.mxu0
      %v1480 = vadd.f32 0.0, %v1479
      %v1481 = vpop.f32.mrf.mxu0
      %v1482 = vadd.f32 0.0, %v1481
      %1483 = vmatmul.bf16.gmra.mxu0 %v1457
      %v1484 = vpop.f32.mrf.mxu0
      %v1485 = vadd.f32 0.0, %v1484
      %v1486 = vpop.f32.mrf.mxu0
      %v1487 = vadd.f32 0.0, %v1486
      %1488 = vmatmul.bf16.gmra.mxu0 %v1460
      %v1489 = vpop.f32.mrf.mxu0
      %v1490 = vadd.f32 0.0, %v1489
      %v1491 = vpop.f32.mrf.mxu0
      %v1492 = vadd.f32 0.0, %v1491
      %1493 = vdwg.mxu0
      %v1494 = vadd.f32 %v1372, %v1475
      %v1495 = vadd.f32 %v1373, %v1477
      %v1496 = vadd.f32 %v1374, %v1480
      %v1497 = vadd.f32 %v1375, %v1482
      %v1498 = vadd.f32 %v1376, %v1485
      %v1499 = vadd.f32 %v1377, %v1487
      %v1500 = vadd.f32 %v1378, %v1490
      %v1501 = vadd.f32 %v1379, %v1492
      %s1502 = scalar_lea.vmem [#allocation2], 16
      %v1503 = vld [vmem:[%s1502] sm:$0xf]
      %v1504 = vld [vmem:[%s1502 + $0x8] sm:$0xf]
      %v1505 = vld [vmem:[%s1502 + $0x10] sm:$0xf]
      %v1506 = vld [vmem:[%s1502 + $0x18] sm:$0xf]
      %v1507 = vld [vmem:[%s1502 + $0x20] sm:$0xf]
      %v1508 = vld [vmem:[%s1502 + $0x28] sm:$0xf]
      %v1509 = vld [vmem:[%s1502 + $0x30] sm:$0xf]
      %v1510 = vld [vmem:[%s1502 + $0x38] sm:$0xf]
      %s1511 = scalar_lea.vmem %s3, 12
      %v1512 = vld [vmem:[%s1511] sm:$0x3]
      %v1521 = vunpack.c.l.b16 %v1503
      %v1522 = vunpack.c.l.b16 %v1504
      %v1523 = vunpack.c.l.b16 %v1505
      %v1524 = vunpack.c.l.b16 %v1506
      %v1525 = vunpack.c.l.b16 %v1507
      %v1526 = vunpack.c.l.b16 %v1508
      %v1527 = vunpack.c.l.b16 %v1509
      %v1528 = vunpack.c.l.b16 %v1510
      %v1529 = vpack.c.b16 %v1522, %v1521
      %v1530 = vpack.c.b16 %v1524, %v1523
      %v1531 = vpack.c.b16 %v1526, %v1525
      %v1532 = vpack.c.b16 %v1528, %v1527
      %v1534 = vsel %vm869, %v1529, 0
      %v1537 = vsel %vm869, %v1530, 0
      %v1540 = vsel %vm869, %v1531, 0
      %v1543 = vsel %vm869, %v1532, 0
      %v1546 = vsel %vm882, %v1512, 0
      %1548 = vmatpush.bf16.msra.mxu0 0
      %1549 = vmatpush.bf16.msra.mxu0 0
      %1550 = vmatpush.bf16.msra.mxu0 0
      %1551 = vmatpush.bf16.msra.mxu0 0
      %1552 = vmatpush.bf16.msra.mxu0 0
      %1553 = vmatpush.bf16.msra.mxu0 0
      %1554 = vmatpush.bf16.msra.mxu0 0
      %1555 = vmatpush.bf16.msra.mxu0 %v1546
      %1556 = vmatmul.bf16.gmra.mxu0 %v1534
      %v1557 = vpop.f32.mrf.mxu0
      %v1558 = vadd.f32 0.0, %v1557
      %v1559 = vpop.f32.mrf.mxu0
      %v1560 = vadd.f32 0.0, %v1559
      %1561 = vmatmul.bf16.gmra.mxu0 %v1537
      %v1562 = vpop.f32.mrf.mxu0
      %v1563 = vadd.f32 0.0, %v1562
      %v1564 = vpop.f32.mrf.mxu0
      %v1565 = vadd.f32 0.0, %v1564
      %1566 = vmatmul.bf16.gmra.mxu0 %v1540
      %v1567 = vpop.f32.mrf.mxu0
      %v1568 = vadd.f32 0.0, %v1567
      %v1569 = vpop.f32.mrf.mxu0
      %v1570 = vadd.f32 0.0, %v1569
      %1571 = vmatmul.bf16.gmra.mxu0 %v1543
      %v1572 = vpop.f32.mrf.mxu0
      %v1573 = vadd.f32 0.0, %v1572
      %v1574 = vpop.f32.mrf.mxu0
      %v1575 = vadd.f32 0.0, %v1574
      %1576 = vdwg.mxu0
      %v1577 = vadd.f32 %v1494, %v1558
      %v1578 = vadd.f32 %v1495, %v1560
      %v1579 = vadd.f32 %v1496, %v1563
      %v1580 = vadd.f32 %v1497, %v1565
      %v1581 = vadd.f32 %v1498, %v1568
      %v1582 = vadd.f32 %v1499, %v1570
      %v1583 = vadd.f32 %v1500, %v1573
      %v1584 = vadd.f32 %v1501, %v1575
      %v1585 = vld [vmem:[%s1502] sm:$0xf]
      %v1586 = vld [vmem:[%s1502 + $0x4] sm:$0x1]
      %v1587 = vld [vmem:[%s1502 + $0x8] sm:$0xf]
      %v1588 = vld [vmem:[%s1502 + $0xc] sm:$0x1]
      %v1589 = vld [vmem:[%s1502 + $0x10] sm:$0xf]
      %v1590 = vld [vmem:[%s1502 + $0x14] sm:$0x1]
      %v1591 = vld [vmem:[%s1502 + $0x18] sm:$0xf]
      %v1592 = vld [vmem:[%s1502 + $0x1c] sm:$0x1]
      %v1593 = vld [vmem:[%s1502 + $0x20] sm:$0xf]
      %v1594 = vld [vmem:[%s1502 + $0x24] sm:$0x1]
      %v1595 = vld [vmem:[%s1502 + $0x28] sm:$0xf]
      %v1596 = vld [vmem:[%s1502 + $0x2c] sm:$0x1]
      %v1597 = vld [vmem:[%s1502 + $0x30] sm:$0xf]
      %v1598 = vld [vmem:[%s1502 + $0x34] sm:$0x1]
      %v1599 = vld [vmem:[%s1502 + $0x38] sm:$0xf]
      %v1600 = vld [vmem:[%s1502 + $0x3c] sm:$0x1]
      %v1602 = vshrl.u32 %v1585, 16
      %v1604 = vrot.slane %v1602, 4
      %v1605 = vshll.u32 %v1585, 16
      %v1607 = vrot.slane %v1605, 5
      %v1608 = vor.u32 %v1604, %v1607
      %v1609 = vrot.slane %v1608, 4
      %v1611 = vshll.u32 %v1586, 16
      %v1613 = vrot.slane %v1611, 5
      %v1614 = vsel %vm742, %v1609, %v1613
      %v1616 = vshrl.u32 %v1587, 16
      %v1618 = vrot.slane %v1616, 4
      %v1619 = vshll.u32 %v1587, 16
      %v1621 = vrot.slane %v1619, 5
      %v1622 = vor.u32 %v1618, %v1621
      %v1623 = vrot.slane %v1622, 4
      %v1625 = vshll.u32 %v1588, 16
      %v1627 = vrot.slane %v1625, 5
      %v1628 = vsel %vm742, %v1623, %v1627
      %v1630 = vshrl.u32 %v1589, 16
      %v1632 = vrot.slane %v1630, 4
      %v1633 = vshll.u32 %v1589, 16
      %v1635 = vrot.slane %v1633, 5
      %v1636 = vor.u32 %v1632, %v1635
      %v1637 = vrot.slane %v1636, 4
      %v1639 = vshll.u32 %v1590, 16
      %v1641 = vrot.slane %v1639, 5
      %v1642 = vsel %vm742, %v1637, %v1641
      %v1644 = vshrl.u32 %v1591, 16
      %v1646 = vrot.slane %v1644, 4
      %v1647 = vshll.u32 %v1591, 16
      %v1649 = vrot.slane %v1647, 5
      %v1650 = vor.u32 %v1646, %v1649
      %v1651 = vrot.slane %v1650, 4
      %v1653 = vshll.u32 %v1592, 16
      %v1655 = vrot.slane %v1653, 5
      %v1656 = vsel %vm742, %v1651, %v1655
      %v1658 = vshrl.u32 %v1593, 16
      %v1660 = vrot.slane %v1658, 4
      %v1661 = vshll.u32 %v1593, 16
      %v1663 = vrot.slane %v1661, 5
      %v1664 = vor.u32 %v1660, %v1663
      %v1665 = vrot.slane %v1664, 4
      %v1667 = vshll.u32 %v1594, 16
      %v1669 = vrot.slane %v1667, 5
      %v1670 = vsel %vm742, %v1665, %v1669
      %v1672 = vshrl.u32 %v1595, 16
      %v1674 = vrot.slane %v1672, 4
      %v1675 = vshll.u32 %v1595, 16
      %v1677 = vrot.slane %v1675, 5
      %v1678 = vor.u32 %v1674, %v1677
      %v1679 = vrot.slane %v1678, 4
      %v1681 = vshll.u32 %v1596, 16
      %v1683 = vrot.slane %v1681, 5
      %v1684 = vsel %vm742, %v1679, %v1683
      %v1686 = vshrl.u32 %v1597, 16
      %v1688 = vrot.slane %v1686, 4
      %v1689 = vshll.u32 %v1597, 16
      %v1691 = vrot.slane %v1689, 5
      %v1692 = vor.u32 %v1688, %v1691
      %v1693 = vrot.slane %v1692, 4
      %v1695 = vshll.u32 %v1598, 16
      %v1697 = vrot.slane %v1695, 5
      %v1698 = vsel %vm742, %v1693, %v1697
      %v1700 = vshrl.u32 %v1599, 16
      %v1702 = vrot.slane %v1700, 4
      %v1703 = vshll.u32 %v1599, 16
      %v1705 = vrot.slane %v1703, 5
      %v1706 = vor.u32 %v1702, %v1705
      %v1707 = vrot.slane %v1706, 4
      %v1709 = vshll.u32 %v1600, 16
      %v1711 = vrot.slane %v1709, 5
      %v1712 = vsel %vm742, %v1707, %v1711
      %s1713 = scalar_lea.vmem %s3, 14
      %v1714 = vld [vmem:[%s1713] sm:$0x3]
      %v1715 = vunpack.c.l.b16 %v1614
      %v1716 = vunpack.c.l.b16 %v1628
      %v1717 = vunpack.c.l.b16 %v1642
      %v1718 = vunpack.c.l.b16 %v1656
      %v1719 = vunpack.c.l.b16 %v1670
      %v1720 = vunpack.c.l.b16 %v1684
      %v1721 = vunpack.c.l.b16 %v1698
      %v1722 = vunpack.c.l.b16 %v1712
      %v1723 = vpack.c.b16 %v1716, %v1715
      %v1724 = vpack.c.b16 %v1718, %v1717
      %v1725 = vpack.c.b16 %v1720, %v1719
      %v1726 = vpack.c.b16 %v1722, %v1721
      %v1728 = vsel %vm869, %v1723, 0
      %v1731 = vsel %vm869, %v1724, 0
      %v1734 = vsel %vm869, %v1725, 0
      %v1737 = vsel %vm869, %v1726, 0
      %v1740 = vsel %vm882, %v1714, 0
      %1742 = vmatpush.bf16.msra.mxu0 0
      %1743 = vmatpush.bf16.msra.mxu0 0
      %1744 = vmatpush.bf16.msra.mxu0 0
      %1745 = vmatpush.bf16.msra.mxu0 0
      %1746 = vmatpush.bf16.msra.mxu0 0
      %1747 = vmatpush.bf16.msra.mxu0 0
      %1748 = vmatpush.bf16.msra.mxu0 0
      %1749 = vmatpush.bf16.msra.mxu0 %v1740
      %1750 = vmatmul.bf16.gmra.mxu0 %v1728
      %v1751 = vpop.f32.mrf.mxu0
      %v1752 = vadd.f32 0.0, %v1751
      %v1753 = vpop.f32.mrf.mxu0
      %v1754 = vadd.f32 0.0, %v1753
      %1755 = vmatmul.bf16.gmra.mxu0 %v1731
      %v1756 = vpop.f32.mrf.mxu0
      %v1757 = vadd.f32 0.0, %v1756
      %v1758 = vpop.f32.mrf.mxu0
      %v1759 = vadd.f32 0.0, %v1758
      %1760 = vmatmul.bf16.gmra.mxu0 %v1734
      %v1761 = vpop.f32.mrf.mxu0
      %v1762 = vadd.f32 0.0, %v1761
      %v1763 = vpop.f32.mrf.mxu0
      %v1764 = vadd.f32 0.0, %v1763
      %1765 = vmatmul.bf16.gmra.mxu0 %v1737
      %v1766 = vpop.f32.mrf.mxu0
      %v1767 = vadd.f32 0.0, %v1766
      %v1768 = vpop.f32.mrf.mxu0
      %v1769 = vadd.f32 0.0, %v1768
      %1770 = vdwg.mxu0
      %v1771 = vadd.f32 %v1577, %v1752
      %v1772 = vadd.f32 %v1578, %v1754
      %v1773 = vadd.f32 %v1579, %v1757
      %v1774 = vadd.f32 %v1580, %v1759
      %v1775 = vadd.f32 %v1581, %v1762
      %v1776 = vadd.f32 %v1582, %v1764
      %v1777 = vadd.f32 %v1583, %v1767
      %v1778 = vadd.f32 %v1584, %v1769
      %v1779 = vld [vmem:[%s1502] sm:$0xe]
      %v1780 = vld [vmem:[%s1502 + $0x8] sm:$0xe]
      %v1781 = vld [vmem:[%s1502 + $0x10] sm:$0xe]
      %v1782 = vld [vmem:[%s1502 + $0x18] sm:$0xe]
      %v1783 = vld [vmem:[%s1502 + $0x20] sm:$0xe]
      %v1784 = vld [vmem:[%s1502 + $0x28] sm:$0xe]
      %v1785 = vld [vmem:[%s1502 + $0x30] sm:$0xe]
      %v1786 = vld [vmem:[%s1502 + $0x38] sm:$0xe]
      %v1803 = vrot.slane %v1779, 5
      %v1804 = vrot.slane %v1803, 4
      %v1805 = vrot.slane %v1586, 5
      %v1806 = vsel %vm1005, %v1804, %v1805
      %v1807 = vrot.slane %v1780, 5
      %v1808 = vrot.slane %v1807, 4
      %v1809 = vrot.slane %v1588, 5
      %v1810 = vsel %vm1005, %v1808, %v1809
      %v1811 = vrot.slane %v1781, 5
      %v1812 = vrot.slane %v1811, 4
      %v1813 = vrot.slane %v1590, 5
      %v1814 = vsel %vm1005, %v1812, %v1813
      %v1815 = vrot.slane %v1782, 5
      %v1816 = vrot.slane %v1815, 4
      %v1817 = vrot.slane %v1592, 5
      %v1818 = vsel %vm1005, %v1816, %v1817
      %v1819 = vrot.slane %v1783, 5
      %v1820 = vrot.slane %v1819, 4
      %v1821 = vrot.slane %v1594, 5
      %v1822 = vsel %vm1005, %v1820, %v1821
      %v1823 = vrot.slane %v1784, 5
      %v1824 = vrot.slane %v1823, 4
      %v1825 = vrot.slane %v1596, 5
      %v1826 = vsel %vm1005, %v1824, %v1825
      %v1827 = vrot.slane %v1785, 5
      %v1828 = vrot.slane %v1827, 4
      %v1829 = vrot.slane %v1598, 5
      %v1830 = vsel %vm1005, %v1828, %v1829
      %v1831 = vrot.slane %v1786, 5
      %v1832 = vrot.slane %v1831, 4
      %v1833 = vrot.slane %v1600, 5
      %v1834 = vsel %vm1005, %v1832, %v1833
      %s1835 = scalar_lea.vmem %s3, 16
      %v1836 = vld [vmem:[%s1835] sm:$0x3]
      %v1837 = vunpack.c.l.b16 %v1806
      %v1838 = vunpack.c.l.b16 %v1810
      %v1839 = vunpack.c.l.b16 %v1814
      %v1840 = vunpack.c.l.b16 %v1818
      %v1841 = vunpack.c.l.b16 %v1822
      %v1842 = vunpack.c.l.b16 %v1826
      %v1843 = vunpack.c.l.b16 %v1830
      %v1844 = vunpack.c.l.b16 %v1834
      %v1845 = vpack.c.b16 %v1838, %v1837
      %v1846 = vpack.c.b16 %v1840, %v1839
      %v1847 = vpack.c.b16 %v1842, %v1841
      %v1848 = vpack.c.b16 %v1844, %v1843
      %v1850 = vsel %vm869, %v1845, 0
      %v1853 = vsel %vm869, %v1846, 0
      %v1856 = vsel %vm869, %v1847, 0
      %v1859 = vsel %vm869, %v1848, 0
      %v1862 = vsel %vm882, %v1836, 0
      %1864 = vmatpush.bf16.msra.mxu0 0
      %1865 = vmatpush.bf16.msra.mxu0 0
      %1866 = vmatpush.bf16.msra.mxu0 0
      %1867 = vmatpush.bf16.msra.mxu0 0
      %1868 = vmatpush.bf16.msra.mxu0 0
      %1869 = vmatpush.bf16.msra.mxu0 0
      %1870 = vmatpush.bf16.msra.mxu0 0
      %1871 = vmatpush.bf16.msra.mxu0 %v1862
      %1872 = vmatmul.bf16.gmra.mxu0 %v1850
      %v1873 = vpop.f32.mrf.mxu0
      %v1874 = vadd.f32 0.0, %v1873
      %v1875 = vpop.f32.mrf.mxu0
      %v1876 = vadd.f32 0.0, %v1875
      %1877 = vmatmul.bf16.gmra.mxu0 %v1853
      %v1878 = vpop.f32.mrf.mxu0
      %v1879 = vadd.f32 0.0, %v1878
      %v1880 = vpop.f32.mrf.mxu0
      %v1881 = vadd.f32 0.0, %v1880
      %1882 = vmatmul.bf16.gmra.mxu0 %v1856
      %v1883 = vpop.f32.mrf.mxu0
      %v1884 = vadd.f32 0.0, %v1883
      %v1885 = vpop.f32.mrf.mxu0
      %v1886 = vadd.f32 0.0, %v1885
      %1887 = vmatmul.bf16.gmra.mxu0 %v1859
      %v1888 = vpop.f32.mrf.mxu0
      %v1889 = vadd.f32 0.0, %v1888
      %v1890 = vpop.f32.mrf.mxu0
      %v1891 = vadd.f32 0.0, %v1890
      %1892 = vdwg.mxu0
      %v1893 = vadd.f32 %v1771, %v1874
      %v1894 = vadd.f32 %v1772, %v1876
      %v1895 = vadd.f32 %v1773, %v1879
      %v1896 = vadd.f32 %v1774, %v1881
      %v1897 = vadd.f32 %v1775, %v1884
      %v1898 = vadd.f32 %v1776, %v1886
      %v1899 = vadd.f32 %v1777, %v1889
      %v1900 = vadd.f32 %v1778, %v1891
      %v1901 = vpack.c.bf16 %v1893, %v1893
      %v1902 = vpack.c.bf16 %v1894, %v1894
      %v1903 = vpack.c.bf16 %v1895, %v1895
      %v1904 = vpack.c.bf16 %v1896, %v1896
      %v1905 = vpack.c.bf16 %v1897, %v1897
      %v1906 = vpack.c.bf16 %v1898, %v1898
      %v1907 = vpack.c.bf16 %v1899, %v1899
      %v1908 = vpack.c.bf16 %v1900, %v1900
      %vm1909 = vcmask 60416
      %1910 = vst.msk [vmem:[%s446] sm:$0xf] %vm1909, %v1901
      %1911 = vst.msk [vmem:[%s446 + $0x4] sm:$0xf] %vm1909, %v1902
      %1912 = vst.msk [vmem:[%s446 + $0x8] sm:$0xf] %vm1909, %v1903
      %1913 = vst.msk [vmem:[%s446 + $0xc] sm:$0xf] %vm1909, %v1904
      %1914 = vst.msk [vmem:[%s446 + $0x10] sm:$0xf] %vm1909, %v1905
      %1915 = vst.msk [vmem:[%s446 + $0x14] sm:$0xf] %vm1909, %v1906
      %1916 = vst.msk [vmem:[%s446 + $0x18] sm:$0xf] %vm1909, %v1907
      %1917 = vst.msk [vmem:[%s446 + $0x1c] sm:$0xf] %vm1909, %v1908
      %vm1918 = vcmask 64512
      %v1919 = vsel %vm1918, %v1893, 0.0
      %v1920 = vsel %vm1918, %v1894, 0.0
      %v1921 = vadd.f32 %v1919, %v1920
      %v1922 = vsel %vm1918, %v1895, 0.0
      %v1923 = vadd.f32 %v1921, %v1922
      %v1924 = vsel %vm1918, %v1896, 0.0
      %v1925 = vadd.f32 %v1923, %v1924
      %v1926 = vsel %vm1918, %v1897, 0.0
      %v1927 = vadd.f32 %v1925, %v1926
      %v1928 = vsel %vm1918, %v1898, 0.0
      %v1929 = vadd.f32 %v1927, %v1928
      %v1930 = vsel %vm1918, %v1899, 0.0
      %v1931 = vadd.f32 %v1929, %v1930
      %v1932 = vsel %vm1918, %v1900, 0.0
      %v1933 = vadd.f32 %v1931, %v1932
      %v1934 = vrot.slane %v1933, 4
      %v1935 = vadd.f32 %v1933, %v1934
      %v1936 = vrot.slane %v1935, 2
      %v1937 = vadd.f32 %v1935, %v1936
      %v1938 = vrot.slane %v1937, 1
      %v1939 = vadd.f32 %v1937, %v1938
      %v1940 = vrcp.pop 64.0
      %v1941 = vmul.f32 64.0, %v1940
      %v1942 = vsub.f32 1.0, %v1941
      %v1943 = vmul.f32 %v1940, %v1942
      %v1944 = vadd.f32 %v1940, %v1943
      %vm1945 = vweird.f32 %v1940
      %v1946 = vsel %vm1945, %v1940, %v1944
      %v1947 = vmul.f32 %v1939, %v1946
      %v1948 = vsub.f32 %v1893, %v1947
      %v1949 = vsub.f32 %v1894, %v1947
      %v1950 = vsub.f32 %v1895, %v1947
      %v1951 = vsub.f32 %v1896, %v1947
      %v1952 = vsub.f32 %v1897, %v1947
      %v1953 = vsub.f32 %v1898, %v1947
      %v1954 = vsub.f32 %v1899, %v1947
      %v1955 = vsub.f32 %v1900, %v1947
      %v1956 = vmul.f32 %v1948, %v1948
      %v1957 = vmul.f32 %v1949, %v1949
      %v1958 = vmul.f32 %v1950, %v1950
      %v1959 = vmul.f32 %v1951, %v1951
      %v1960 = vmul.f32 %v1952, %v1952
      %v1961 = vmul.f32 %v1953, %v1953
      %v1962 = vmul.f32 %v1954, %v1954
      %v1963 = vmul.f32 %v1955, %v1955
      %v1964 = vsel %vm1918, %v1956, 0.0
      %v1965 = vsel %vm1918, %v1957, 0.0
      %v1966 = vadd.f32 %v1964, %v1965
      %v1967 = vsel %vm1918, %v1958, 0.0
      %v1968 = vadd.f32 %v1966, %v1967
      %v1969 = vsel %vm1918, %v1959, 0.0
      %v1970 = vadd.f32 %v1968, %v1969
      %v1971 = vsel %vm1918, %v1960, 0.0
      %v1972 = vadd.f32 %v1970, %v1971
      %v1973 = vsel %vm1918, %v1961, 0.0
      %v1974 = vadd.f32 %v1972, %v1973
      %v1975 = vsel %vm1918, %v1962, 0.0
      %v1976 = vadd.f32 %v1974, %v1975
      %v1977 = vsel %vm1918, %v1963, 0.0
      %v1978 = vadd.f32 %v1976, %v1977
      %v1979 = vrot.slane %v1978, 4
      %v1980 = vadd.f32 %v1978, %v1979
      %v1981 = vrot.slane %v1980, 2
      %v1982 = vadd.f32 %v1980, %v1981
      %v1983 = vrot.slane %v1982, 1
      %v1984 = vadd.f32 %v1982, %v1983
      %vm1985 = vcmask 1040384
      %v1986 = vsel %vm1985, %v1939, %v1984
      %vm1987 = vcmask 58368
      %1988 = vst.msk [vmem:[%s454] sm:$0x3] %vm1987, %v1986
      %s1989 = smul.u32 8, %s24
      %p1990 = scmp.lt.s32.totalorder %s23, 1
      %s1991 = scalar_select %p1990, %s23, 1
      %p1992 = scmp.lt.s32.totalorder %s1989, 7
      %s1993 = scalar_select %p1992, %s1989, 7
      %s1994 = smul.addr %s1991, 8
      %s1995 = sadd.s32 %s1993, %s1994
      %s1996 = smul.addr %s1995, 4
      %s1997 = scalar_lea.vmem %s6, %s1996
      %p1998 = scmp.lt.s32.totalorder %s23, 1
      %s1999 = scalar_select %p1998, %s23, 1
      %p2000 = scmp.lt.s32.totalorder %s24, 0
      %s2001 = scalar_select %p2000, %s24, 0
      %s2002 = sadd.s32 %s2001, %s1999
      %s2003 = smul.addr %s2002, 2
      %s2004 = scalar_lea.vmem %s7, %s2003
      // Predicated region
      $region61: #{down2.5} parent=43 // pred_check
        %p2005 = pneg %p214
      $region62: #{down2.5} parent=43 // pred_check_branch
        %2007 = sbr.rel (%p2005) target = $region64
      $region63: #{down2.5} parent=43 // pred_region
        %s2008 = smul.u32 8, %s24
      $region64: #{down2.5} parent=43 // pred_fallthru
        _
      // Predicated region
      $region65: #{down2.5} parent=43 // pred_check
        %p2009 = pneg %p242
      $region66: #{down2.5} parent=43 // pred_check_branch
        %2011 = sbr.rel (%p2009) target = $region68
      $region67: #{down2.5} parent=43 // pred_region
        _
      $region68: #{down2.5} parent=43 // pred_fallthru
        _
    $region44: #{down2.5} parent=5 // pred_fallthru
      _
    %p2012 = scmp.le.s32.totalorder 2, %s14
    // Predicated region
    $region69: #{down2.5} parent=5 // pred_check
      %p2013 = pneg %p2012
    $region70: #{down2.5} parent=5 // pred_check_branch
      %2015 = sbr.rel (%p2013) target = $region72
    $region71: #{down2.5} parent=5 // pred_region
      %s2016 = ssub.s32 %s14, 2
      // Predicated region
      $region73: #{down2.5} parent=71 // pred_check
        %p2017 = pneg %p220
      $region74: #{down2.5} parent=71 // pred_check_branch
        %2019 = sbr.rel (%p2017) target = $region76
      $region75: #{down2.5} parent=71 // pred_region
        %s2020 = smul.u32 8, %s26
        %p2021 = scmp.lt.s32.totalorder %s25, 1
        %s2022 = scalar_select %p2021, %s25, 1
        %p2023 = scmp.lt.s32.totalorder %s2020, 7
        %s2024 = scalar_select %p2023, %s2020, 7
        %s2025 = smul.addr %s2022, 8
        %s2026 = sadd.s32 %s2024, %s2025
        %s2027 = smul.addr %s2026, 4
        %s2028 = scalar_lea.vmem %s6, %s2027
      $region76: #{down2.5} parent=71 // pred_fallthru
        _
      // Predicated region
      $region77: #{down2.5} parent=71 // pred_check
        %p2029 = pneg %p248
      $region78: #{down2.5} parent=71 // pred_check_branch
        %2031 = sbr.rel (%p2029) target = $region80
      $region79: #{down2.5} parent=71 // pred_region
        %p2032 = scmp.lt.s32.totalorder %s25, 1
        %s2033 = scalar_select %p2032, %s25, 1
        %p2034 = scmp.lt.s32.totalorder %s26, 0
        %s2035 = scalar_select %p2034, %s26, 0
        %s2036 = sadd.s32 %s2035, %s2033
        %s2037 = smul.addr %s2036, 2
        %s2038 = scalar_lea.vmem %s7, %s2037
      $region80: #{down2.5} parent=71 // pred_fallthru
        _
    $region72: #{down2.5} parent=5 // pred_fallthru
      _
  $region6: #{down2.5} parent=0 // loop_footer
    %s18 = sadd.s32 1, %s14
  $region7: #{down2.5} parent=0 // loop_footer_branch
    %13 = sbr.rel target = $region3
  $region8: #{down2.5} parent=0 // loop_exit
    _

// kernel: down2.6
$region0: #{down2.6}
  #allocation0 [shape = 'u32[]', space=smem, size = 0x4, offset = 0x4, fixed_abs, tag = 'smem constant byte address 0x4 - core index']
  #allocation1 [shape = 'u32[72,128]{1,0:T(1,128)}', space=vmem, size = 0x9000, scoped, tag = 'internal scratch']
  #allocation2 [shape = 'bf16[10,10,8]{2,1,0:T(8,128)(2,1)}', space=vmem, size = 0xa000, scoped, tag = 'scratch operand']
  %s0 = inlined_call_operand.vmem [shape: bf16[2,8,8,8], index: 0, kind: input, shape index: {}, may-alias: {0,1,2}]
  %s1 = inlined_call_operand.vmem [shape: bf16[2,8,8,8], index: 1, kind: input, shape index: {}, may-alias: {0,1,2}]
  %s2 = inlined_call_operand.vmem [shape: bf16[2,8,8,8], index: 2, kind: input, shape index: {}, may-alias: {0,1,2}]
  %s3 = inlined_call_operand.vmem [shape: bf16[3,3,8,8], index: 3, kind: input, shape index: {}]
  %s4 = inlined_call_operand.vmem [shape: f32[1,1,8], index: 4, kind: input, shape index: {}]
  %s5 = inlined_call_operand.vmem [shape: f32[1,1,8], index: 5, kind: input, shape index: {}]
  %s6 = inlined_call_operand.vmem [shape: bf16[2,8,8,8], index: 6, kind: output, shape index: {0}]
  %s7 = inlined_call_operand.vmem [shape: f32[2,1,2,8], index: 7, kind: output, shape index: {1}]
  %8 = xla_tuple %s6, %s7
  %s9 = sld [smem:[#allocation0]]
  $region81: #{down2.6} parent=0
    _
  %s11 = ssub.s32 1, %s9
  %s12 = scalar_select 0, %s11, %s9
  loop: start=0, step=1, limit=4
  $region2: #{down2.6} parent=0 // loop_pre_header
    _
  $region3: #{down2.6} parent=0 // loop_header
    %s14 = sphi 0, %s18
    %p15 = scmp.ge.s32.totalorder %s14, 4
    %s21 = sphi 0, %s33
    %s22 = sphi 0, %s29
    %s23 = sphi 0, %s21
    %s24 = sphi 0, %s22
    %s25 = sphi 0, %s23
    %s26 = sphi 0, %s24
    %s38 = sphi 0, %s40
    %s41 = sphi 0, %s38
    %s42 = sphi 0, %s41
    %s58 = sphi 0, %s42
    %s74 = sphi 0, %s76
    %s77 = sphi 0, %s74
    %s78 = sphi 0, %s77
    %s94 = sphi 0, %s78
    %s110 = sphi 0, %s112
    %s113 = sphi 0, %s110
    %s114 = sphi 0, %s113
    %s130 = sphi 0, %s114
    %s134 = sphi 0, %s134
    %s136 = sphi 0, %s134
    %s137 = sphi 0, %s136
    %s151 = sphi 0, %s137
    %s155 = sphi 0, %s155
    %s157 = sphi 0, %s155
    %s158 = sphi 0, %s157
    %s172 = sphi 0, %s158
    %s176 = sphi 0, %s176
    %s178 = sphi 0, %s176
    %s179 = sphi 0, %s178
    %s193 = sphi 0, %s179
    %s201 = sphi 0, %s203
    %s204 = sphi 0, %s201
    %s205 = sphi 0, %s204
    %s221 = sphi 0, %s205
    %s229 = sphi 0, %s231
    %s232 = sphi 0, %s229
    %s233 = sphi 0, %s232
    %s249 = sphi 0, %s233
  $region4: #{down2.6} parent=0 // loop_header_branch
    %17 = sbr.rel (%p15) target = $region8
  $region5: #{down2.6} parent=0 // loop_body
    %s19 = ssub.s32 %s14, 1
    %s20 = ssub.s32 %s14, 2
    %s27 = sadd.s32 1, %s22
    %p28 = scmp.ge.s32.totalorder %s27, 1
    %s29 = scalar_select %p28, 0, %s27
    %s30 = sadd.s32 1, %s21
    %s31 = scalar_select %p28, %s30, %s21
    %p32 = scmp.ge.s32.totalorder %s31, 2
    %s33 = scalar_select %p32, 0, %s31
    %s34 = ssub.s32 %s21, %s33
    %s35 = ssub.s32 %s22, %s29
    %s36 = sor.u32 %s34, %s35
    %p37 = scmp.eq.s32.totalorder %s36, 0
    %s39 = sadd.s32 %s38, 1
    %s40 = scalar_select %p37, %s38, %s39
    %p43 = pneg %p37
    %p44 = scmp.eq.s32.totalorder %s14, 1
    %p45 = por %p43, %p44
    %p46 = scmp.ne.s32.totalorder %s38, %s41
    %p47 = scmp.eq.s32.totalorder %s14, 0
    %p48 = por %p46, %p47
    %p49 = scmp.ne.s32.totalorder %s38, %s41
    %p50 = scmp.eq.s32.totalorder %s19, 1
    %p51 = por %p49, %p50
    %p52 = scmp.ne.s32.totalorder %s41, %s42
    %p53 = scmp.eq.s32.totalorder %s19, 0
    %p54 = por %p52, %p53
    %p55 = scmp.ne.s32.totalorder %s41, %s42
    %p56 = scmp.eq.s32.totalorder %s20, 1
    %p57 = por %p55, %p56
    %p59 = scmp.ne.s32.totalorder %s42, %s58
    %p60 = scmp.eq.s32.totalorder %s20, 0
    %p61 = por %p59, %p60
    %s62 = smul.u32 %s22, 8
    %s63 = ssub.s32 %s62, 1
    %p64 = scmp.gt.s32.totalorder %s63, 0
    %s65 = scalar_select %p64, %s63, 0
    %s66 = smul.u32 %s29, 8
    %s67 = ssub.s32 %s66, 1
    %p68 = scmp.gt.s32.totalorder %s67, 0
    %s69 = scalar_select %p68, %s67, 0
    %s70 = ssub.s32 %s21, %s33
    %s71 = ssub.s32 %s65, %s69
    %s72 = sor.u32 %s70, %s71
    %p73 = scmp.eq.s32.totalorder %s72, 0
    %s75 = sadd.s32 %s74, 1
    %s76 = scalar_select %p73, %s74, %s75
    %p79 = pneg %p73
    %p80 = scmp.eq.s32.totalorder %s14, 1
    %p81 = por %p79, %p80
    %p82 = scmp.ne.s32.totalorder %s74, %s77
    %p83 = scmp.eq.s32.totalorder %s14, 0
    %p84 = por %p82, %p83
    %p85 = scmp.ne.s32.totalorder %s74, %s77
    %p86 = scmp.eq.s32.totalorder %s19, 1
    %p87 = por %p85, %p86
    %p88 = scmp.ne.s32.totalorder %s77, %s78
    %p89 = scmp.eq.s32.totalorder %s19, 0
    %p90 = por %p88, %p89
    %p91 = scmp.ne.s32.totalorder %s77, %s78
    %p92 = scmp.eq.s32.totalorder %s20, 1
    %p93 = por %p91, %p92
    %p95 = scmp.ne.s32.totalorder %s78, %s94
    %p96 = scmp.eq.s32.totalorder %s20, 0
    %p97 = por %p95, %p96
    %s98 = sadd.s32 %s22, 1
    %s99 = smul.u32 %s98, 8
    %p100 = scmp.lt.s32.totalorder %s99, 7
    %s101 = scalar_select %p100, %s99, 7
    %s102 = sadd.s32 %s29, 1
    %s103 = smul.u32 %s102, 8
    %p104 = scmp.lt.s32.totalorder %s103, 7
    %s105 = scalar_select %p104, %s103, 7
    %s106 = ssub.s32 %s21, %s33
    %s107 = ssub.s32 %s101, %s105
    %s108 = sor.u32 %s106, %s107
    %p109 = scmp.eq.s32.totalorder %s108, 0
    %s111 = sadd.s32 %s110, 1
    %s112 = scalar_select %p109, %s110, %s111
    %p115 = pneg %p109
    %p116 = scmp.eq.s32.totalorder %s14, 1
    %p117 = por %p115, %p116
    %p118 = scmp.ne.s32.totalorder %s110, %s113
    %p119 = scmp.eq.s32.totalorder %s14, 0
    %p120 = por %p118, %p119
    %p121 = scmp.ne.s32.totalorder %s110, %s113
    %p122 = scmp.eq.s32.totalorder %s19, 1
    %p123 = por %p121, %p122
    %p124 = scmp.ne.s32.totalorder %s113, %s114
    %p125 = scmp.eq.s32.totalorder %s19, 0
    %p126 = por %p124, %p125
    %p127 = scmp.ne.s32.totalorder %s113, %s114
    %p128 = scmp.eq.s32.totalorder %s20, 1
    %p129 = por %p127, %p128
    %p131 = scmp.ne.s32.totalorder %s114, %s130
    %p132 = scmp.eq.s32.totalorder %s20, 0
    %p133 = por %p131, %p132
    %s135 = sadd.s32 %s134, 1
    %p138 = scmp.eq.s32.totalorder %s14, 1
    %p139 = scmp.ne.s32.totalorder %s134, %s136
    %p140 = scmp.eq.s32.totalorder %s14, 0
    %p141 = por %p139, %p140
    %p142 = scmp.ne.s32.totalorder %s134, %s136
    %p143 = scmp.eq.s32.totalorder %s19, 1
    %p144 = por %p142, %p143
    %p145 = scmp.ne.s32.totalorder %s136, %s137
    %p146 = scmp.eq.s32.totalorder %s19, 0
    %p147 = por %p145, %p146
    %p148 = scmp.ne.s32.totalorder %s136, %s137
    %p149 = scmp.eq.s32.totalorder %s20, 1
    %p150 = por %p148, %p149
    %p152 = scmp.ne.s32.totalorder %s137, %s151
    %p153 = scmp.eq.s32.totalorder %s20, 0
    %p154 = por %p152, %p153
    %s156 = sadd.s32 %s155, 1
    %p159 = scmp.eq.s32.totalorder %s14, 1
    %p160 = scmp.ne.s32.totalorder %s155, %s157
    %p161 = scmp.eq.s32.totalorder %s14, 0
    %p162 = por %p160, %p161
    %p163 = scmp.ne.s32.totalorder %s155, %s157
    %p164 = scmp.eq.s32.totalorder %s19, 1
    %p165 = por %p163, %p164
    %p166 = scmp.ne.s32.totalorder %s157, %s158
    %p167 = scmp.eq.s32.totalorder %s19, 0
    %p168 = por %p166, %p167
    %p169 = scmp.ne.s32.totalorder %s157, %s158
    %p170 = scmp.eq.s32.totalorder %s20, 1
    %p171 = por %p169, %p170
    %p173 = scmp.ne.s32.totalorder %s158, %s172
    %p174 = scmp.eq.s32.totalorder %s20, 0
    %p175 = por %p173, %p174
    %s177 = sadd.s32 %s176, 1
    %p180 = scmp.eq.s32.totalorder %s14, 1
    %p181 = scmp.ne.s32.totalorder %s176, %s178
    %p182 = scmp.eq.s32.totalorder %s14, 0
    %p183 = por %p181, %p182
    %p184 = scmp.ne.s32.totalorder %s176, %s178
    %p185 = scmp.eq.s32.totalorder %s19, 1
    %p186 = por %p184, %p185
    %p187 = scmp.ne.s32.totalorder %s178, %s179
    %p188 = scmp.eq.s32.totalorder %s19, 0
    %p189 = por %p187, %p188
    %p190 = scmp.ne.s32.totalorder %s178, %s179
    %p191 = scmp.eq.s32.totalorder %s20, 1
    %p192 = por %p190, %p191
    %p194 = scmp.ne.s32.totalorder %s179, %s193
    %p195 = scmp.eq.s32.totalorder %s20, 0
    %p196 = por %p194, %p195
    %s197 = ssub.s32 %s21, %s33
    %s198 = ssub.s32 %s22, %s29
    %s199 = sor.u32 %s197, %s198
    %p200 = scmp.eq.s32.totalorder %s199, 0
    %s202 = sadd.s32 %s201, 1
    %s203 = scalar_select %p200, %s201, %s202
    %p206 = pneg %p200
    %p207 = scmp.eq.s32.totalorder %s14, 1
    %p208 = por %p206, %p207
    %p209 = scmp.ne.s32.totalorder %s201, %s204
    %p210 = scmp.eq.s32.totalorder %s14, 0
    %p211 = por %p209, %p210
    %p212 = scmp.ne.s32.totalorder %s201, %s204
    %p213 = scmp.eq.s32.totalorder %s19, 1
    %p214 = por %p212, %p213
    %p215 = scmp.ne.s32.totalorder %s204, %s205
    %p216 = scmp.eq.s32.totalorder %s19, 0
    %p217 = por %p215, %p216
    %p218 = scmp.ne.s32.totalorder %s204, %s205
    %p219 = scmp.eq.s32.totalorder %s20, 1
    %p220 = por %p218, %p219
    %p222 = scmp.ne.s32.totalorder %s205, %s221
    %p223 = scmp.eq.s32.totalorder %s20, 0
    %p224 = por %p222, %p223
    %s225 = ssub.s32 %s21, %s33
    %s226 = ssub.s32 %s22, %s29
    %s227 = sor.u32 %s225, %s226
    %p228 = scmp.eq.s32.totalorder %s227, 0
    %s230 = sadd.s32 %s229, 1
    %s231 = scalar_select %p228, %s229, %s230
    %p234 = pneg %p228
    %p235 = scmp.eq.s32.totalorder %s14, 1
    %p236 = por %p234, %p235
    %p237 = scmp.ne.s32.totalorder %s229, %s232
    %p238 = scmp.eq.s32.totalorder %s14, 0
    %p239 = por %p237, %p238
    %p240 = scmp.ne.s32.totalorder %s229, %s232
    %p241 = scmp.eq.s32.totalorder %s19, 1
    %p242 = por %p240, %p241
    %p243 = scmp.ne.s32.totalorder %s232, %s233
    %p244 = scmp.eq.s32.totalorder %s19, 0
    %p245 = por %p243, %p244
    %p246 = scmp.ne.s32.totalorder %s232, %s233
    %p247 = scmp.eq.s32.totalorder %s20, 1
    %p248 = por %p246, %p247
    %p250 = scmp.ne.s32.totalorder %s233, %s249
    %p251 = scmp.eq.s32.totalorder %s20, 0
    %p252 = por %p250, %p251
    %p253 = scmp.le.s32.totalorder 1, %s14
    %p254 = scmp.lt.s32.totalorder %s14, 3
    %p255 = pnand %p253, %p254
    %p256 = pneg %p255
    // Predicated region
    $region9: #{down2.6} parent=5 // pred_check
      _
    $region10: #{down2.6} parent=5 // pred_check_branch
      %258 = sbr.rel (%p255) target = $region12
    $region11: #{down2.6} parent=5 // pred_region
      %s259 = ssub.s32 %s14, 1
      // Predicated region
      $region13: #{down2.6} parent=11 // pred_check
        %p260 = pneg %p147
      $region14: #{down2.6} parent=11 // pred_check_branch
        %262 = sbr.rel (%p260) target = $region16
      $region15: #{down2.6} parent=11 // pred_region
        _
      $region16: #{down2.6} parent=11 // pred_fallthru
        _
      // Predicated region
      $region17: #{down2.6} parent=11 // pred_check
        %p263 = pneg %p168
      $region18: #{down2.6} parent=11 // pred_check_branch
        %265 = sbr.rel (%p263) target = $region20
      $region19: #{down2.6} parent=11 // pred_region
        _
      $region20: #{down2.6} parent=11 // pred_fallthru
        _
      // Predicated region
      $region21: #{down2.6} parent=11 // pred_check
        %p266 = pneg %p189
      $region22: #{down2.6} parent=11 // pred_check_branch
        %268 = sbr.rel (%p266) target = $region24
      $region23: #{down2.6} parent=11 // pred_region
        _
      $region24: #{down2.6} parent=11 // pred_fallthru
        _
    $region12: #{down2.6} parent=5 // pred_fallthru
      _
    %p269 = scmp.lt.s32.totalorder %s14, 2
    // Predicated region
    $region25: #{down2.6} parent=5 // pred_check
      %p270 = pneg %p269
    $region26: #{down2.6} parent=5 // pred_check_branch
      %272 = sbr.rel (%p270) target = $region28
    $region27: #{down2.6} parent=5 // pred_region
      // Predicated region
      $region29: #{down2.6} parent=27 // pred_check
        %p273 = pneg %p48
      $region30: #{down2.6} parent=27 // pred_check_branch
        %275 = sbr.rel (%p273) target = $region32
      $region31: #{down2.6} parent=27 // pred_region
        %s276 = smul.u32 8, %s22
        %p277 = scmp.lt.s32.totalorder %s21, 1
        %s278 = scalar_select %p277, %s21, 1
        %p279 = scmp.lt.s32.totalorder %s276, 7
        %s280 = scalar_select %p279, %s276, 7
        %s281 = smul.addr %s278, 8
        %s282 = sadd.s32 %s280, %s281
        %s283 = smul.addr %s282, 4
        %s284 = scalar_lea.vmem %s0, %s283
        %s285 = smul.u32 8, %s22
      $region32: #{down2.6} parent=27 // pred_fallthru
        _
      // Predicated region
      $region33: #{down2.6} parent=27 // pred_check
        %p286 = pneg %p84
      $region34: #{down2.6} parent=27 // pred_check_branch
        %288 = sbr.rel (%p286) target = $region36
      $region35: #{down2.6} parent=27 // pred_region
        %s289 = smul.u32 %s22, 8
        %s290 = ssub.s32 %s289, 1
        %p291 = scmp.gt.s32.totalorder %s290, 0
        %s292 = scalar_select %p291, %s290, 0
        %p293 = scmp.lt.s32.totalorder %s21, 1
        %s294 = scalar_select %p293, %s21, 1
        %p295 = scmp.lt.s32.totalorder %s292, 7
        %s296 = scalar_select %p295, %s292, 7
        %s297 = smul.addr %s294, 8
        %s298 = sadd.s32 %s296, %s297
        %s299 = smul.addr %s298, 4
        %s300 = scalar_lea.vmem %s1, %s299
        %s301 = smul.u32 %s22, 8
        %s302 = ssub.s32 %s301, 1
        %p303 = scmp.gt.s32.totalorder %s302, 0
        %s304 = scalar_select %p303, %s302, 0
      $region36: #{down2.6} parent=27 // pred_fallthru
        _
      // Predicated region
      $region37: #{down2.6} parent=27 // pred_check
        %p305 = pneg %p120
      $region38: #{down2.6} parent=27 // pred_check_branch
        %307 = sbr.rel (%p305) target = $region40
      $region39: #{down2.6} parent=27 // pred_region
        %s308 = sadd.s32 %s22, 1
        %s309 = smul.u32 %s308, 8
        %p310 = scmp.lt.s32.totalorder %s309, 7
        %s311 = scalar_select %p310, %s309, 7
        %p312 = scmp.lt.s32.totalorder %s21, 1
        %s313 = scalar_select %p312, %s21, 1
        %p314 = scmp.lt.s32.totalorder %s311, 7
        %s315 = scalar_select %p314, %s311, 7
        %s316 = smul.addr %s313, 8
        %s317 = sadd.s32 %s315, %s316
        %s318 = smul.addr %s317, 4
        %s319 = scalar_lea.vmem %s2, %s318
        %s320 = sadd.s32 %s22, 1
        %s321 = smul.u32 %s320, 8
        %p322 = scmp.lt.s32.totalorder %s321, 7
        %s323 = scalar_select %p322, %s321, 7
      $region40: #{down2.6} parent=27 // pred_fallthru
        _
    $region28: #{down2.6} parent=5 // pred_fallthru
      _
    %p324 = scmp.le.s32.totalorder 1, %s14
    %p325 = scmp.lt.s32.totalorder %s14, 3
    %p326 = pnand %p324, %p325
    %p327 = pneg %p326
    // Predicated region
    $region41: #{down2.6} parent=5 // pred_check
      _
    $region42: #{down2.6} parent=5 // pred_check_branch
      %329 = sbr.rel (%p326) target = $region44
    $region43: #{down2.6} parent=5 // pred_region
      %s330 = ssub.s32 %s14, 1
      %s331 = smul.u32 8, %s24
      %p332 = scmp.lt.s32.totalorder %s23, 1
      %s333 = scalar_select %p332, %s23, 1
      %p334 = scmp.lt.s32.totalorder %s331, 7
      %s335 = scalar_select %p334, %s331, 7
      %s336 = smul.addr %s333, 8
      %s337 = sadd.s32 %s335, %s336
      %s338 = smul.addr %s337, 4
      %s339 = scalar_lea.vmem %s0, %s338
      %p340 = pneg %p54
      %p341 = pneg %p51
      %s342 = smul.u32 %s24, 8
      %s343 = ssub.s32 %s342, 1
      %p344 = scmp.gt.s32.totalorder %s343, 0
      %s345 = scalar_select %p344, %s343, 0
      %p346 = scmp.lt.s32.totalorder %s23, 1
      %s347 = scalar_select %p346, %s23, 1
      %p348 = scmp.lt.s32.totalorder %s345, 7
      %s349 = scalar_select %p348, %s345, 7
      %s350 = smul.addr %s347, 8
      %s351 = sadd.s32 %s349, %s350
      %s352 = smul.addr %s351, 4
      %s353 = scalar_lea.vmem %s1, %s352
      %p354 = pneg %p90
      %p355 = pneg %p87
      %s356 = sadd.s32 %s24, 1
      %s357 = smul.u32 %s356, 8
      %p358 = scmp.lt.s32.totalorder %s357, 7
      %s359 = scalar_select %p358, %s357, 7
      %p360 = scmp.lt.s32.totalorder %s23, 1
      %s361 = scalar_select %p360, %s23, 1
      %p362 = scmp.lt.s32.totalorder %s359, 7
      %s363 = scalar_select %p362, %s359, 7
      %s364 = smul.addr %s361, 8
      %s365 = sadd.s32 %s363, %s364
      %s366 = smul.addr %s365, 4
      %s367 = scalar_lea.vmem %s2, %s366
      %p368 = pneg %p126
      %p369 = pneg %p123
      %p370 = pneg %p147
      %p371 = pneg %p144
      %p372 = pneg %p168
      %p373 = pneg %p165
      %p374 = pneg %p189
      %p375 = pneg %p186
      %p376 = pneg %p217
      %p377 = pneg %p214
      %s378 = smul.u32 8, %s24
      %p379 = scmp.lt.s32.totalorder %s23, 1
      %s380 = scalar_select %p379, %s23, 1
      %p381 = scmp.lt.s32.totalorder %s378, 7
      %s382 = scalar_select %p381, %s378, 7
      %s383 = smul.addr %s380, 8
      %s384 = sadd.s32 %s382, %s383
      %s385 = smul.addr %s384, 4
      %s386 = scalar_lea.vmem %s6, %s385
      %p387 = pneg %p245
      %p388 = pneg %p242
      %p389 = scmp.lt.s32.totalorder %s23, 1
      %s390 = scalar_select %p389, %s23, 1
      %p391 = scmp.lt.s32.totalorder %s24, 0
      %s392 = scalar_select %p391, %s24, 0
      %s393 = sadd.s32 %s392, %s390
      %s394 = smul.addr %s393, 2
      %s395 = scalar_lea.vmem %s7, %s394
      %s396 = smul.u32 8, %s24
      %p397 = scmp.lt.s32.totalorder %s23, 1
      %s398 = scalar_select %p397, %s23, 1
      %p399 = scmp.lt.s32.totalorder %s396, 7
      %s400 = scalar_select %p399, %s396, 7
      %s401 = smul.addr %s398, 8
      %s402 = sadd.s32 %s400, %s401
      %s403 = smul.addr %s402, 4
      %s404 = scalar_lea.vmem %s0, %s403
      %s405 = smul.u32 8, %s24
      %s406 = smul.u32 %s24, 8
      %s407 = ssub.s32 %s406, 1
      %p408 = scmp.gt.s32.totalorder %s407, 0
      %s409 = scalar_select %p408, %s407, 0
      %p410 = scmp.lt.s32.totalorder %s23, 1
      %s411 = scalar_select %p410, %s23, 1
      %p412 = scmp.lt.s32.totalorder %s409, 7
      %s413 = scalar_select %p412, %s409, 7
      %s414 = smul.addr %s411, 8
      %s415 = sadd.s32 %s413, %s414
      %s416 = smul.addr %s415, 4
      %s417 = scalar_lea.vmem %s1, %s416
      %s418 = smul.u32 %s24, 8
      %s419 = ssub.s32 %s418, 1
      %p420 = scmp.gt.s32.totalorder %s419, 0
      %s421 = scalar_select %p420, %s419, 0
      %s422 = sadd.s32 %s24, 1
      %s423 = smul.u32 %s422, 8
      %p424 = scmp.lt.s32.totalorder %s423, 7
      %s425 = scalar_select %p424, %s423, 7
      %p426 = scmp.lt.s32.totalorder %s23, 1
      %s427 = scalar_select %p426, %s23, 1
      %p428 = scmp.lt.s32.totalorder %s425, 7
      %s429 = scalar_select %p428, %s425, 7
      %s430 = smul.addr %s427, 8
      %s431 = sadd.s32 %s429, %s430
      %s432 = smul.addr %s431, 4
      %s433 = scalar_lea.vmem %s2, %s432
      %s434 = sadd.s32 %s24, 1
      %s435 = smul.u32 %s434, 8
      %p436 = scmp.lt.s32.totalorder %s435, 7
      %s437 = scalar_select %p436, %s435, 7
      %s438 = smul.u32 8, %s24
      %p439 = scmp.lt.s32.totalorder %s23, 1
      %s440 = scalar_select %p439, %s23, 1
      %p441 = scmp.lt.s32.totalorder %s438, 7
      %s442 = scalar_select %p441, %s438, 7
      %s443 = smul.addr %s440, 8
      %s444 = sadd.s32 %s442, %s443
      %s445 = smul.addr %s444, 4
      %s446 = scalar_lea.vmem %s6, %s445
      %s447 = smul.u32 8, %s24
      %p448 = scmp.lt.s32.totalorder %s23, 1
      %s449 = scalar_select %p448, %s23, 1
      %p450 = scmp.lt.s32.totalorder %s24, 0
      %s451 = scalar_select %p450, %s24, 0
      %s452 = sadd.s32 %s451, %s449
      %s453 = smul.addr %s452, 2
      %s454 = scalar_lea.vmem %s7, %s453
      %vm456 = vcmask 57344
      %vm457 = vsmask.f32 256
      %vm458 = vmand %vm456, %vm457
      %v459 = vld [vmem:[#allocation2] sm:$0x1]
      %v460 = vsel %vm458, 0, %v459
      %461 = vst [vmem:[#allocation2] sm:$0x1] %v460
      %v462 = vld [vmem:[#allocation2 + $0x8] sm:$0x1]
      %v463 = vsel %vm458, 0, %v462
      %464 = vst [vmem:[#allocation2 + $0x8] sm:$0x1] %v463
      %v465 = vld [vmem:[#allocation2 + $0x10] sm:$0x1]
      %v466 = vsel %vm458, 0, %v465
      %467 = vst [vmem:[#allocation2 + $0x10] sm:$0x1] %v466
      %v468 = vld [vmem:[#allocation2 + $0x18] sm:$0x1]
      %v469 = vsel %vm458, 0, %v468
      %470 = vst [vmem:[#allocation2 + $0x18] sm:$0x1] %v469
      %v471 = vld [vmem:[#allocation2 + $0x20] sm:$0x1]
      %v472 = vsel %vm458, 0, %v471
      %473 = vst [vmem:[#allocation2 + $0x20] sm:$0x1] %v472
      %v474 = vld [vmem:[#allocation2 + $0x28] sm:$0x1]
      %v475 = vsel %vm458, 0, %v474
      %476 = vst [vmem:[#allocation2 + $0x28] sm:$0x1] %v475
      %v477 = vld [vmem:[#allocation2 + $0x30] sm:$0x1]
      %v478 = vsel %vm458, 0, %v477
      %479 = vst [vmem:[#allocation2 + $0x30] sm:$0x1] %v478
      %v480 = vld [vmem:[#allocation2 + $0x38] sm:$0x1]
      %v481 = vsel %vm458, 0, %v480
      %482 = vst [vmem:[#allocation2 + $0x38] sm:$0x1] %v481
      %v483 = vld [vmem:[#allocation2 + $0x40] sm:$0x1]
      %v484 = vsel %vm458, 0, %v483
      %485 = vst [vmem:[#allocation2 + $0x40] sm:$0x1] %v484
      %v486 = vld [vmem:[#allocation2 + $0x48] sm:$0x1]
      %v487 = vsel %vm458, 0, %v486
      %488 = vst [vmem:[#allocation2 + $0x48] sm:$0x1] %v487
      %vm489 = vsmask.f32 7938
      %vm490 = vmand %vm456, %vm489
      %v491 = vld [vmem:[#allocation2 + $0x4] sm:$0x1]
      %v492 = vsel %vm490, 0, %v491
      %493 = vst [vmem:[#allocation2 + $0x4] sm:$0x1] %v492
      %v494 = vld [vmem:[#allocation2 + $0xc] sm:$0x1]
      %v495 = vsel %vm490, 0, %v494
      %496 = vst [vmem:[#allocation2 + $0xc] sm:$0x1] %v495
      %v497 = vld [vmem:[#allocation2 + $0x14] sm:$0x1]
      %v498 = vsel %vm490, 0, %v497
      %499 = vst [vmem:[#allocation2 + $0x14] sm:$0x1] %v498
      %v500 = vld [vmem:[#allocation2 + $0x1c] sm:$0x1]
      %v501 = vsel %vm490, 0, %v500
      %502 = vst [vmem:[#allocation2 + $0x1c] sm:$0x1] %v501
      %v503 = vld [vmem:[#allocation2 + $0x24] sm:$0x1]
      %v504 = vsel %vm490, 0, %v503
      %505 = vst [vmem:[#allocation2 + $0x24] sm:$0x1] %v504
      %v506 = vld [vmem:[#allocation2 + $0x2c] sm:$0x1]
      %v507 = vsel %vm490, 0, %v506
      %508 = vst [vmem:[#allocation2 + $0x2c] sm:$0x1] %v507
      %v509 = vld [vmem:[#allocation2 + $0x34] sm:$0x1]
      %v510 = vsel %vm490, 0, %v509
      %511 = vst [vmem:[#allocation2 + $0x34] sm:$0x1] %v510
      %v512 = vld [vmem:[#allocation2 + $0x3c] sm:$0x1]
      %v513 = vsel %vm490, 0, %v512
      %514 = vst [vmem:[#allocation2 + $0x3c] sm:$0x1] %v513
      %v515 = vld [vmem:[#allocation2 + $0x44] sm:$0x1]
      %v516 = vsel %vm490, 0, %v515
      %517 = vst [vmem:[#allocation2 + $0x44] sm:$0x1] %v516
      %v518 = vld [vmem:[#allocation2 + $0x4c] sm:$0x1]
      %v519 = vsel %vm490, 0, %v518
      %520 = vst [vmem:[#allocation2 + $0x4c] sm:$0x1] %v519
      %v521 = vld [vmem:[%s404] sm:$0xf]
      %v522 = vld [vmem:[%s404 + $0x4] sm:$0xf]
      %v523 = vld [vmem:[%s404 + $0x8] sm:$0xf]
      %v524 = vld [vmem:[%s404 + $0xc] sm:$0xf]
      %v525 = vld [vmem:[%s404 + $0x10] sm:$0xf]
      %v526 = vld [vmem:[%s404 + $0x14] sm:$0xf]
      %v527 = vld [vmem:[%s404 + $0x18] sm:$0xf]
      %v528 = vld [vmem:[%s404 + $0x1c] sm:$0xf]
      %v529 = vunpack.c.l.bf16 %v521
      %v530 = vunpack.c.l.bf16 %v522
      %v531 = vunpack.c.l.bf16 %v523
      %v532 = vunpack.c.l.bf16 %v524
      %v533 = vunpack.c.l.bf16 %v525
      %v534 = vunpack.c.l.bf16 %v526
      %v535 = vunpack.c.l.bf16 %v527
      %v536 = vunpack.c.l.bf16 %v528
      %v537 = vld [vmem:[%s4] sm:$0x1]
      %v539 = vperm.slane %v537, 0
      %v541 = vmul.f32 %v529, %v539
      %v542 = vmul.f32 %v530, %v539
      %v543 = vmul.f32 %v531, %v539
      %v544 = vmul.f32 %v532, %v539
      %v545 = vmul.f32 %v533, %v539
      %v546 = vmul.f32 %v534, %v539
      %v547 = vmul.f32 %v535, %v539
      %v548 = vmul.f32 %v536, %v539
      %v549 = vld [vmem:[%s5] sm:$0x1]
      %v551 = vperm.slane %v549, 0
      %v553 = vadd.f32 %v541, %v551
      %v554 = vadd.f32 %v542, %v551
      %v555 = vadd.f32 %v543, %v551
      %v556 = vadd.f32 %v544, %v551
      %v557 = vadd.f32 %v545, %v551
      %v558 = vadd.f32 %v546, %v551
      %v559 = vadd.f32 %v547, %v551
      %v560 = vadd.f32 %v548, %v551
      %v561 = vmax.f32 %v553, 0.0
      %v562 = vmax.f32 %v554, 0.0
      %v563 = vmax.f32 %v555, 0.0
      %v564 = vmax.f32 %v556, 0.0
      %v565 = vmax.f32 %v557, 0.0
      %v566 = vmax.f32 %v558, 0.0
      %v567 = vmax.f32 %v559, 0.0
      %v568 = vmax.f32 %v560, 0.0
      %v569 = vpack.c.bf16 %v561, %v561
      %v570 = vpack.c.bf16 %v562, %v562
      %v571 = vpack.c.bf16 %v563, %v563
      %v572 = vpack.c.bf16 %v564, %v564
      %v573 = vpack.c.bf16 %v565, %v565
      %v574 = vpack.c.bf16 %v566, %v566
      %v575 = vpack.c.bf16 %v567, %v567
      %v576 = vpack.c.bf16 %v568, %v568
      %v578 = vshrl.u32 %v569, 16
      %v580 = vrot.slane %v578, 7
      %v581 = vshll.u32 %v569, 16
      %v583 = vor.u32 %v580, %v581
      %v584 = vrot.slane %v580, 4
      %v586 = vshrl.u32 %v570, 16
      %v588 = vrot.slane %v586, 7
      %v589 = vshll.u32 %v570, 16
      %v591 = vor.u32 %v588, %v589
      %v592 = vrot.slane %v588, 4
      %v594 = vshrl.u32 %v571, 16
      %v596 = vrot.slane %v594, 7
      %v597 = vshll.u32 %v571, 16
      %v599 = vor.u32 %v596, %v597
      %v600 = vrot.slane %v596, 4
      %v602 = vshrl.u32 %v572, 16
      %v604 = vrot.slane %v602, 7
      %v605 = vshll.u32 %v572, 16
      %v607 = vor.u32 %v604, %v605
      %v608 = vrot.slane %v604, 4
      %v610 = vshrl.u32 %v573, 16
      %v612 = vrot.slane %v610, 7
      %v613 = vshll.u32 %v573, 16
      %v615 = vor.u32 %v612, %v613
      %v616 = vrot.slane %v612, 4
      %v618 = vshrl.u32 %v574, 16
      %v620 = vrot.slane %v618, 7
      %v621 = vshll.u32 %v574, 16
      %v623 = vor.u32 %v620, %v621
      %v624 = vrot.slane %v620, 4
      %v626 = vshrl.u32 %v575, 16
      %v628 = vrot.slane %v626, 7
      %v629 = vshll.u32 %v575, 16
      %v631 = vor.u32 %v628, %v629
      %v632 = vrot.slane %v628, 4
      %v634 = vshrl.u32 %v576, 16
      %v636 = vrot.slane %v634, 7
      %v637 = vshll.u32 %v576, 16
      %v639 = vor.u32 %v636, %v637
      %v640 = vrot.slane %v636, 4
      %s657 = scalar_lea.vmem [#allocation2], 8
      %vm658 = vcmask 60416
      %vm659 = vmand %vm658, %vm489
      %v660 = vld [vmem:[%s657] sm:$0xf]
      %v661 = vsel %vm659, %v583, %v660
      %662 = vst [vmem:[%s657] sm:$0xf] %v661
      %v663 = vld [vmem:[%s657 + $0x4] sm:$0x1]
      %v664 = vsel %vm458, %v584, %v663
      %665 = vst [vmem:[%s657 + $0x4] sm:$0x1] %v664
      %v666 = vld [vmem:[%s657 + $0x8] sm:$0xf]
      %v667 = vsel %vm659, %v591, %v666
      %668 = vst [vmem:[%s657 + $0x8] sm:$0xf] %v667
      %v669 = vld [vmem:[%s657 + $0xc] sm:$0x1]
      %v670 = vsel %vm458, %v592, %v669
      %671 = vst [vmem:[%s657 + $0xc] sm:$0x1] %v670
      %v672 = vld [vmem:[%s657 + $0x10] sm:$0xf]
      %v673 = vsel %vm659, %v599, %v672
      %674 = vst [vmem:[%s657 + $0x10] sm:$0xf] %v673
      %v675 = vld [vmem:[%s657 + $0x14] sm:$0x1]
      %v676 = vsel %vm458, %v600, %v675
      %677 = vst [vmem:[%s657 + $0x14] sm:$0x1] %v676
      %v678 = vld [vmem:[%s657 + $0x18] sm:$0xf]
      %v679 = vsel %vm659, %v607, %v678
      %680 = vst [vmem:[%s657 + $0x18] sm:$0xf] %v679
      %v681 = vld [vmem:[%s657 + $0x1c] sm:$0x1]
      %v682 = vsel %vm458, %v608, %v681
      %683 = vst [vmem:[%s657 + $0x1c] sm:$0x1] %v682
      %v684 = vld [vmem:[%s657 + $0x20] sm:$0xf]
      %v685 = vsel %vm659, %v615, %v684
      %686 = vst [vmem:[%s657 + $0x20] sm:$0xf] %v685
      %v687 = vld [vmem:[%s657 + $0x24] sm:$0x1]
      %v688 = vsel %vm458, %v616, %v687
      %689 = vst [vmem:[%s657 + $0x24] sm:$0x1] %v688
      %v690 = vld [vmem:[%s657 + $0x28] sm:$0xf]
      %v691 = vsel %vm659, %v623, %v690
      %692 = vst [vmem:[%s657 + $0x28] sm:$0xf] %v691
      %v693 = vld [vmem:[%s657 + $0x2c] sm:$0x1]
      %v694 = vsel %vm458, %v624, %v693
      %695 = vst [vmem:[%s657 + $0x2c] sm:$0x1] %v694
      %v696 = vld [vmem:[%s657 + $0x30] sm:$0xf]
      %v697 = vsel %vm659, %v631, %v696
      %698 = vst [vmem:[%s657 + $0x30] sm:$0xf] %v697
      %v699 = vld [vmem:[%s657 + $0x34] sm:$0x1]
      %v700 = vsel %vm458, %v632, %v699
      %701 = vst [vmem:[%s657 + $0x34] sm:$0x1] %v700
      %v702 = vld [vmem:[%s657 + $0x38] sm:$0xf]
      %v703 = vsel %vm659, %v639, %v702
      %704 = vst [vmem:[%s657 + $0x38] sm:$0xf] %v703
      %v705 = vld [vmem:[%s657 + $0x3c] sm:$0x1]
      %v706 = vsel %vm458, %v640, %v705
      %707 = vst [vmem:[%s657 + $0x3c] sm:$0x1] %v706
      %p708 = scmp.eq.s32.totalorder %s24, 0
      // Predicated region
      $region45: #{down2.6} parent=43 // pred_check
        %p709 = pneg %p708
      $region46: #{down2.6} parent=43 // pred_check_branch
        %711 = sbr.rel (%p709) target = $region48
      $region47: #{down2.6} parent=43 // pred_region
        %v712 = vld [vmem:[#allocation2] sm:$0xf]
        %v713 = vsel %vm659, 0, %v712
        %714 = vst [vmem:[#allocation2] sm:$0xf] %v713
        %v715 = vld [vmem:[#allocation2 + $0x4] sm:$0x1]
        %v716 = vsel %vm458, 0, %v715
        %717 = vst [vmem:[#allocation2 + $0x4] sm:$0x1] %v716
      $region48: #{down2.6} parent=43 // pred_fallthru
        _
      %p718 = scmp.gt.s32.totalorder %s24, 0
      // Predicated region
      $region49: #{down2.6} parent=43 // pred_check
        %p719 = pneg %p718
      $region50: #{down2.6} parent=43 // pred_check_branch
        %721 = sbr.rel (%p719) target = $region52
      $region51: #{down2.6} parent=43 // pred_region
        %v722 = vld [vmem:[%s417] sm:$0xf]
        %v723 = vunpack.c.l.bf16 %v722
        %v724 = vld [vmem:[%s4] sm:$0x1]
        %v726 = vperm.slane %v724, 0
        %v728 = vmul.f32 %v723, %v726
        %v729 = vld [vmem:[%s5] sm:$0x1]
        %v731 = vperm.slane %v729, 0
        %v733 = vadd.f32 %v728, %v731
        %v734 = vmax.f32 %v733, 0.0
        %v735 = vpack.c.bf16 %v734, %v734
        %v737 = vshrl.u32 %v735, 16
        %v739 = vrot.slane %v737, 7
        %v740 = vshll.u32 %v735, 16
        %v742 = vor.u32 %v739, %v740
        %v743 = vrot.slane %v739, 4
        %v746 = vld [vmem:[#allocation2] sm:$0xf]
        %v747 = vsel %vm659, %v742, %v746
        %748 = vst [vmem:[#allocation2] sm:$0xf] %v747
        %v749 = vld [vmem:[#allocation2 + $0x4] sm:$0x1]
        %v750 = vsel %vm458, %v743, %v749
        %751 = vst [vmem:[#allocation2 + $0x4] sm:$0x1] %v750
      $region52: #{down2.6} parent=43 // pred_fallthru
        _
      // Predicated region
      $region53: #{down2.6} parent=43 // pred_check
        %p752 = pneg %p708
      $region54: #{down2.6} parent=43 // pred_check_branch
        %754 = sbr.rel (%p752) target = $region56
      $region55: #{down2.6} parent=43 // pred_region
        %s755 = scalar_lea.vmem [#allocation2], 72
        %v756 = vld [vmem:[%s755] sm:$0xf]
        %v757 = vsel %vm659, 0, %v756
        %758 = vst [vmem:[%s755] sm:$0xf] %v757
        %v759 = vld [vmem:[%s755 + $0x4] sm:$0x1]
        %v760 = vsel %vm458, 0, %v759
        %761 = vst [vmem:[%s755 + $0x4] sm:$0x1] %v760
      $region56: #{down2.6} parent=43 // pred_fallthru
        _
      %p762 = scmp.lt.s32.totalorder %s24, 0
      // Predicated region
      $region57: #{down2.6} parent=43 // pred_check
        %p763 = pneg %p762
      $region58: #{down2.6} parent=43 // pred_check_branch
        %765 = sbr.rel (%p763) target = $region60
      $region59: #{down2.6} parent=43 // pred_region
        %v766 = vld [vmem:[%s433] sm:$0xf]
        %v767 = vunpack.c.l.bf16 %v766
        %v768 = vld [vmem:[%s4] sm:$0x1]
        %v770 = vperm.slane %v768, 0
        %v772 = vmul.f32 %v767, %v770
        %v773 = vld [vmem:[%s5] sm:$0x1]
        %v775 = vperm.slane %v773, 0
        %v777 = vadd.f32 %v772, %v775
        %v778 = vmax.f32 %v777, 0.0
        %v779 = vpack.c.bf16 %v778, %v778
        %v781 = vshrl.u32 %v779, 16
        %v783 = vrot.slane %v781, 7
        %v784 = vshll.u32 %v779, 16
        %v786 = vor.u32 %v783, %v784
        %v787 = vrot.slane %v783, 4
        %s790 = scalar_lea.vmem [#allocation2], 72
        %v791 = vld [vmem:[%s790] sm:$0xf]
        %v792 = vsel %vm659, %v786, %v791
        %793 = vst [vmem:[%s790] sm:$0xf] %v792
        %v794 = vld [vmem:[%s790 + $0x4] sm:$0x1]
        %v795 = vsel %vm458, %v787, %v794
        %796 = vst [vmem:[%s790 + $0x4] sm:$0x1] %v795
      $region60: #{down2.6} parent=43 // pred_fallthru
        _
      %v797 = vld [vmem:[#allocation2] sm:$0xf]
      %v798 = vld [vmem:[#allocation2 + $0x8] sm:$0xf]
      %v799 = vld [vmem:[#allocation2 + $0x10] sm:$0xf]
      %v800 = vld [vmem:[#allocation2 + $0x18] sm:$0xf]
      %v801 = vld [vmem:[#allocation2 + $0x20] sm:$0xf]
      %v802 = vld [vmem:[#allocation2 + $0x28] sm:$0xf]
      %v803 = vld [vmem:[#allocation2 + $0x30] sm:$0xf]
      %v804 = vld [vmem:[#allocation2 + $0x38] sm:$0xf]
      %v805 = vld [vmem:[%s3] sm:$0xf]
      %v806 = vld [vmem:[#allocation2 + $0x4] sm:$0x1]
      %v807 = vld [vmem:[#allocation2 + $0xc] sm:$0x1]
      %v808 = vld [vmem:[#allocation2 + $0x14] sm:$0x1]
      %v809 = vld [vmem:[#allocation2 + $0x1c] sm:$0x1]
      %v810 = vld [vmem:[#allocation2 + $0x24] sm:$0x1]
      %v811 = vld [vmem:[#allocation2 + $0x2c] sm:$0x1]
      %v812 = vld [vmem:[#allocation2 + $0x34] sm:$0x1]
      %v813 = vld [vmem:[#allocation2 + $0x3c] sm:$0x1]
      %vm814 = vsmask.f32 3328
      %vm815 = vsmask.f32 7440
      %vm816 = vmor %vm814, %vm815
      %v818 = vshrl.u32 %v797, 16
      %v820 = vrot.slane %v818, 4
      %v821 = vshll.u32 %v797, 16
      %v823 = vrot.slane %v821, 5
      %v824 = vor.u32 %v820, %v823
      %v825 = vrot.slane %v824, 4
      %v827 = vshll.u32 %v806, 16
      %v829 = vrot.slane %v827, 5
      %v830 = vsel %vm816, %v825, %v829
      %v832 = vshrl.u32 %v798, 16
      %v834 = vrot.slane %v832, 4
      %v835 = vshll.u32 %v798, 16
      %v837 = vrot.slane %v835, 5
      %v838 = vor.u32 %v834, %v837
      %v839 = vrot.slane %v838, 4
      %v841 = vshll.u32 %v807, 16
      %v843 = vrot.slane %v841, 5
      %v844 = vsel %vm816, %v839, %v843
      %v846 = vshrl.u32 %v799, 16
      %v848 = vrot.slane %v846, 4
      %v849 = vshll.u32 %v799, 16
      %v851 = vrot.slane %v849, 5
      %v852 = vor.u32 %v848, %v851
      %v853 = vrot.slane %v852, 4
      %v855 = vshll.u32 %v808, 16
      %v857 = vrot.slane %v855, 5
      %v858 = vsel %vm816, %v853, %v857
      %v860 = vshrl.u32 %v800, 16
      %v862 = vrot.slane %v860, 4
      %v863 = vshll.u32 %v800, 16
      %v865 = vrot.slane %v863, 5
      %v866 = vor.u32 %v862, %v865
      %v867 = vrot.slane %v866, 4
      %v869 = vshll.u32 %v809, 16
      %v871 = vrot.slane %v869, 5
      %v872 = vsel %vm816, %v867, %v871
      %v874 = vshrl.u32 %v801, 16
      %v876 = vrot.slane %v874, 4
      %v877 = vshll.u32 %v801, 16
      %v879 = vrot.slane %v877, 5
      %v880 = vor.u32 %v876, %v879
      %v881 = vrot.slane %v880, 4
      %v883 = vshll.u32 %v810, 16
      %v885 = vrot.slane %v883, 5
      %v886 = vsel %vm816, %v881, %v885
      %v888 = vshrl.u32 %v802, 16
      %v890 = vrot.slane %v888, 4
      %v891 = vshll.u32 %v802, 16
      %v893 = vrot.slane %v891, 5
      %v894 = vor.u32 %v890, %v893
      %v895 = vrot.slane %v894, 4
      %v897 = vshll.u32 %v811, 16
      %v899 = vrot.slane %v897, 5
      %v900 = vsel %vm816, %v895, %v899
      %v902 = vshrl.u32 %v803, 16
      %v904 = vrot.slane %v902, 4
      %v905 = vshll.u32 %v803, 16
      %v907 = vrot.slane %v905, 5
      %v908 = vor.u32 %v904, %v907
      %v909 = vrot.slane %v908, 4
      %v911 = vshll.u32 %v812, 16
      %v913 = vrot.slane %v911, 5
      %v914 = vsel %vm816, %v909, %v913
      %v916 = vshrl.u32 %v804, 16
      %v918 = vrot.slane %v916, 4
      %v919 = vshll.u32 %v804, 16
      %v921 = vrot.slane %v919, 5
      %v922 = vor.u32 %v918, %v921
      %v923 = vrot.slane %v922, 4
      %v925 = vshll.u32 %v813, 16
      %v927 = vrot.slane %v925, 5
      %v928 = vsel %vm816, %v923, %v927
      %s929 = scalar_lea.vmem %s3, 4
      %v930 = vld [vmem:[%s929] sm:$0xf]
      %v931 = vunpack.c.l.b16 %v830
      %v932 = vunpack.c.l.b16 %v844
      %v933 = vunpack.c.l.b16 %v858
      %v934 = vunpack.c.l.b16 %v872
      %v935 = vunpack.c.l.b16 %v886
      %v936 = vunpack.c.l.b16 %v900
      %v937 = vunpack.c.l.b16 %v914
      %v938 = vunpack.c.l.b16 %v928
      %v939 = vpack.c.b16 %v932, %v931
      %v940 = vpack.c.b16 %v934, %v933
      %v941 = vpack.c.b16 %v936, %v935
      %v942 = vpack.c.b16 %v938, %v937
      %vm943 = vcmask 64512
      %v945 = vsel %vm943, %v939, 0
      %v948 = vsel %vm943, %v940, 0
      %v951 = vsel %vm943, %v941, 0
      %v954 = vsel %vm943, %v942, 0
      %vm956 = vcmask 1043456
      %v958 = vsel %vm956, %v930, 0
      %960 = vmatpush.bf16.msra.mxu0 0
      %961 = vmatpush.bf16.msra.mxu0 0
      %962 = vmatpush.bf16.msra.mxu0 0
      %963 = vmatpush.bf16.msra.mxu0 0
      %964 = vmatpush.bf16.msra.mxu0 0
      %965 = vmatpush.bf16.msra.mxu0 0
      %966 = vmatpush.bf16.msra.mxu0 0
      %967 = vmatpush.bf16.msra.mxu0 %v958
      %968 = vmatmul.bf16.gmra.mxu0 %v945
      %v969 = vpop.f32.mrf.mxu0
      %v970 = vadd.f32 0.0, %v969
      %v971 = vpop.f32.mrf.mxu0
      %v972 = vadd.f32 0.0, %v971
      %973 = vmatmul.bf16.gmra.mxu0 %v948
      %v974 = vpop.f32.mrf.mxu0
      %v975 = vadd.f32 0.0, %v974
      %v976 = vpop.f32.mrf.mxu0
      %v977 = vadd.f32 0.0, %v976
      %978 = vmatmul.bf16.gmra.mxu0 %v951
      %v979 = vpop.f32.mrf.mxu0
      %v980 = vadd.f32 0.0, %v979
      %v981 = vpop.f32.mrf.mxu0
      %v982 = vadd.f32 0.0, %v981
      %983 = vmatmul.bf16.gmra.mxu0 %v954
      %v984 = vpop.f32.mrf.mxu0
      %v985 = vadd.f32 0.0, %v984
      %v986 = vpop.f32.mrf.mxu0
      %v987 = vadd.f32 0.0, %v986
      %988 = vdwg.mxu0
      %v997 = vunpack.c.l.b16 %v797
      %v998 = vunpack.c.l.b16 %v798
      %v999 = vunpack.c.l.b16 %v799
      %v1000 = vunpack.c.l.b16 %v800
      %v1001 = vunpack.c.l.b16 %v801
      %v1002 = vunpack.c.l.b16 %v802
      %v1003 = vunpack.c.l.b16 %v803
      %v1004 = vunpack.c.l.b16 %v804
      %v1005 = vpack.c.b16 %v998, %v997
      %v1006 = vpack.c.b16 %v1000, %v999
      %v1007 = vpack.c.b16 %v1002, %v1001
      %v1008 = vpack.c.b16 %v1004, %v1003
      %v1010 = vsel %vm943, %v1005, 0
      %v1013 = vsel %vm943, %v1006, 0
      %v1016 = vsel %vm943, %v1007, 0
      %v1019 = vsel %vm943, %v1008, 0
      %v1022 = vsel %vm956, %v805, 0
      %1024 = vmatpush.bf16.msra.mxu0 0
      %1025 = vmatpush.bf16.msra.mxu0 0
      %1026 = vmatpush.bf16.msra.mxu0 0
      %1027 = vmatpush.bf16.msra.mxu0 0
      %1028 = vmatpush.bf16.msra.mxu0 0
      %1029 = vmatpush.bf16.msra.mxu0 0
      %1030 = vmatpush.bf16.msra.mxu0 0
      %1031 = vmatpush.bf16.msra.mxu0 %v1022
      %1032 = vmatmul.bf16.gmra.mxu0 %v1010
      %v1033 = vpop.f32.mrf.mxu0
      %v1034 = vadd.f32 %v970, %v1033
      %v1035 = vpop.f32.mrf.mxu0
      %v1036 = vadd.f32 %v972, %v1035
      %1037 = vmatmul.bf16.gmra.mxu0 %v1013
      %v1038 = vpop.f32.mrf.mxu0
      %v1039 = vadd.f32 %v975, %v1038
      %v1040 = vpop.f32.mrf.mxu0
      %v1041 = vadd.f32 %v977, %v1040
      %1042 = vmatmul.bf16.gmra.mxu0 %v1016
      %v1043 = vpop.f32.mrf.mxu0
      %v1044 = vadd.f32 %v980, %v1043
      %v1045 = vpop.f32.mrf.mxu0
      %v1046 = vadd.f32 %v982, %v1045
      %1047 = vmatmul.bf16.gmra.mxu0 %v1019
      %v1048 = vpop.f32.mrf.mxu0
      %v1049 = vadd.f32 %v985, %v1048
      %v1050 = vpop.f32.mrf.mxu0
      %v1051 = vadd.f32 %v987, %v1050
      %1052 = vdwg.mxu0
      %v1053 = vld [vmem:[#allocation2] sm:$0xe]
      %v1054 = vld [vmem:[#allocation2 + $0x8] sm:$0xe]
      %v1055 = vld [vmem:[#allocation2 + $0x10] sm:$0xe]
      %v1056 = vld [vmem:[#allocation2 + $0x18] sm:$0xe]
      %v1057 = vld [vmem:[#allocation2 + $0x20] sm:$0xe]
      %v1058 = vld [vmem:[#allocation2 + $0x28] sm:$0xe]
      %v1059 = vld [vmem:[#allocation2 + $0x30] sm:$0xe]
      %v1060 = vld [vmem:[#allocation2 + $0x38] sm:$0xe]
      %vm1077 = vcmask 1042432
      %vm1078 = vcmask 1046532
      %vm1079 = vmor %vm1077, %vm1078
      %v1080 = vrot.slane %v1053, 5
      %v1081 = vrot.slane %v1080, 4
      %v1082 = vrot.slane %v806, 5
      %v1083 = vsel %vm1079, %v1081, %v1082
      %v1084 = vrot.slane %v1054, 5
      %v1085 = vrot.slane %v1084, 4
      %v1086 = vrot.slane %v807, 5
      %v1087 = vsel %vm1079, %v1085, %v1086
      %v1088 = vrot.slane %v1055, 5
      %v1089 = vrot.slane %v1088, 4
      %v1090 = vrot.slane %v808, 5
      %v1091 = vsel %vm1079, %v1089, %v1090
      %v1092 = vrot.slane %v1056, 5
      %v1093 = vrot.slane %v1092, 4
      %v1094 = vrot.slane %v809, 5
      %v1095 = vsel %vm1079, %v1093, %v1094
      %v1096 = vrot.slane %v1057, 5
      %v1097 = vrot.slane %v1096, 4
      %v1098 = vrot.slane %v810, 5
      %v1099 = vsel %vm1079, %v1097, %v1098
      %v1100 = vrot.slane %v1058, 5
      %v1101 = vrot.slane %v1100, 4
      %v1102 = vrot.slane %v811, 5
      %v1103 = vsel %vm1079, %v1101, %v1102
      %v1104 = vrot.slane %v1059, 5
      %v1105 = vrot.slane %v1104, 4
      %v1106 = vrot.slane %v812, 5
      %v1107 = vsel %vm1079, %v1105, %v1106
      %v1108 = vrot.slane %v1060, 5
      %v1109 = vrot.slane %v1108, 4
      %v1110 = vrot.slane %v813, 5
      %v1111 = vsel %vm1079, %v1109, %v1110
      %s1112 = scalar_lea.vmem %s3, 8
      %v1113 = vld [vmem:[%s1112] sm:$0xf]
      %v1114 = vunpack.c.l.b16 %v1083
      %v1115 = vunpack.c.l.b16 %v1087
      %v1116 = vunpack.c.l.b16 %v1091
      %v1117 = vunpack.c.l.b16 %v1095
      %v1118 = vunpack.c.l.b16 %v1099
      %v1119 = vunpack.c.l.b16 %v1103
      %v1120 = vunpack.c.l.b16 %v1107
      %v1121 = vunpack.c.l.b16 %v1111
      %v1122 = vpack.c.b16 %v1115, %v1114
      %v1123 = vpack.c.b16 %v1117, %v1116
      %v1124 = vpack.c.b16 %v1119, %v1118
      %v1125 = vpack.c.b16 %v1121, %v1120
      %v1127 = vsel %vm943, %v1122, 0
      %v1130 = vsel %vm943, %v1123, 0
      %v1133 = vsel %vm943, %v1124, 0
      %v1136 = vsel %vm943, %v1125, 0
      %v1139 = vsel %vm956, %v1113, 0
      %1141 = vmatpush.bf16.msra.mxu0 0
      %1142 = vmatpush.bf16.msra.mxu0 0
      %1143 = vmatpush.bf16.msra.mxu0 0
      %1144 = vmatpush.bf16.msra.mxu0 0
      %1145 = vmatpush.bf16.msra.mxu0 0
      %1146 = vmatpush.bf16.msra.mxu0 0
      %1147 = vmatpush.bf16.msra.mxu0 0
      %1148 = vmatpush.bf16.msra.mxu0 %v1139
      %1149 = vmatmul.bf16.gmra.mxu0 %v1127
      %v1150 = vpop.f32.mrf.mxu0
      %v1151 = vadd.f32 0.0, %v1150
      %v1152 = vpop.f32.mrf.mxu0
      %v1153 = vadd.f32 0.0, %v1152
      %1154 = vmatmul.bf16.gmra.mxu0 %v1130
      %v1155 = vpop.f32.mrf.mxu0
      %v1156 = vadd.f32 0.0, %v1155
      %v1157 = vpop.f32.mrf.mxu0
      %v1158 = vadd.f32 0.0, %v1157
      %1159 = vmatmul.bf16.gmra.mxu0 %v1133
      %v1160 = vpop.f32.mrf.mxu0
      %v1161 = vadd.f32 0.0, %v1160
      %v1162 = vpop.f32.mrf.mxu0
      %v1163 = vadd.f32 0.0, %v1162
      %1164 = vmatmul.bf16.gmra.mxu0 %v1136
      %v1165 = vpop.f32.mrf.mxu0
      %v1166 = vadd.f32 0.0, %v1165
      %v1167 = vpop.f32.mrf.mxu0
      %v1168 = vadd.f32 0.0, %v1167
      %1169 = vdwg.mxu0
      %v1170 = vadd.f32 %v1034, %v1151
      %v1171 = vadd.f32 %v1036, %v1153
      %v1172 = vadd.f32 %v1039, %v1156
      %v1173 = vadd.f32 %v1041, %v1158
      %v1174 = vadd.f32 %v1044, %v1161
      %v1175 = vadd.f32 %v1046, %v1163
      %v1176 = vadd.f32 %v1049, %v1166
      %v1177 = vadd.f32 %v1051, %v1168
      %v1178 = vld [vmem:[%s657] sm:$0xf]
      %v1179 = vld [vmem:[%s657 + $0x8] sm:$0xf]
      %v1180 = vld [vmem:[%s657 + $0x10] sm:$0xf]
      %v1181 = vld [vmem:[%s657 + $0x18] sm:$0xf]
      %v1182 = vld [vmem:[%s657 + $0x20] sm:$0xf]
      %v1183 = vld [vmem:[%s657 + $0x28] sm:$0xf]
      %v1184 = vld [vmem:[%s657 + $0x30] sm:$0xf]
      %v1185 = vld [vmem:[%s657 + $0x38] sm:$0xf]
      %s1186 = scalar_lea.vmem %s3, 12
      %v1187 = vld [vmem:[%s1186] sm:$0xf]
      %v1196 = vunpack.c.l.b16 %v1178
      %v1197 = vunpack.c.l.b16 %v1179
      %v1198 = vunpack.c.l.b16 %v1180
      %v1199 = vunpack.c.l.b16 %v1181
      %v1200 = vunpack.c.l.b16 %v1182
      %v1201 = vunpack.c.l.b16 %v1183
      %v1202 = vunpack.c.l.b16 %v1184
      %v1203 = vunpack.c.l.b16 %v1185
      %v1204 = vpack.c.b16 %v1197, %v1196
      %v1205 = vpack.c.b16 %v1199, %v1198
      %v1206 = vpack.c.b16 %v1201, %v1200
      %v1207 = vpack.c.b16 %v1203, %v1202
      %v1209 = vsel %vm943, %v1204, 0
      %v1212 = vsel %vm943, %v1205, 0
      %v1215 = vsel %vm943, %v1206, 0
      %v1218 = vsel %vm943, %v1207, 0
      %v1221 = vsel %vm956, %v1187, 0
      %1223 = vmatpush.bf16.msra.mxu0 0
      %1224 = vmatpush.bf16.msra.mxu0 0
      %1225 = vmatpush.bf16.msra.mxu0 0
      %1226 = vmatpush.bf16.msra.mxu0 0
      %1227 = vmatpush.bf16.msra.mxu0 0
      %1228 = vmatpush.bf16.msra.mxu0 0
      %1229 = vmatpush.bf16.msra.mxu0 0
      %1230 = vmatpush.bf16.msra.mxu0 %v1221
      %1231 = vmatmul.bf16.gmra.mxu0 %v1209
      %v1232 = vpop.f32.mrf.mxu0
      %v1233 = vadd.f32 0.0, %v1232
      %v1234 = vpop.f32.mrf.mxu0
      %v1235 = vadd.f32 0.0, %v1234
      %1236 = vmatmul.bf16.gmra.mxu0 %v1212
      %v1237 = vpop.f32.mrf.mxu0
      %v1238 = vadd.f32 0.0, %v1237
      %v1239 = vpop.f32.mrf.mxu0
      %v1240 = vadd.f32 0.0, %v1239
      %1241 = vmatmul.bf16.gmra.mxu0 %v1215
      %v1242 = vpop.f32.mrf.mxu0
      %v1243 = vadd.f32 0.0, %v1242
      %v1244 = vpop.f32.mrf.mxu0
      %v1245 = vadd.f32 0.0, %v1244
      %1246 = vmatmul.bf16.gmra.mxu0 %v1218
      %v1247 = vpop.f32.mrf.mxu0
      %v1248 = vadd.f32 0.0, %v1247
      %v1249 = vpop.f32.mrf.mxu0
      %v1250 = vadd.f32 0.0, %v1249
      %1251 = vdwg.mxu0
      %v1252 = vadd.f32 %v1170, %v1233
      %v1253 = vadd.f32 %v1171, %v1235
      %v1254 = vadd.f32 %v1172, %v1238
      %v1255 = vadd.f32 %v1173, %v1240
      %v1256 = vadd.f32 %v1174, %v1243
      %v1257 = vadd.f32 %v1175, %v1245
      %v1258 = vadd.f32 %v1176, %v1248
      %v1259 = vadd.f32 %v1177, %v1250
      %v1260 = vld [vmem:[%s657] sm:$0xf]
      %v1261 = vld [vmem:[%s657 + $0x4] sm:$0x1]
      %v1262 = vld [vmem:[%s657 + $0x8] sm:$0xf]
      %v1263 = vld [vmem:[%s657 + $0xc] sm:$0x1]
      %v1264 = vld [vmem:[%s657 + $0x10] sm:$0xf]
      %v1265 = vld [vmem:[%s657 + $0x14] sm:$0x1]
      %v1266 = vld [vmem:[%s657 + $0x18] sm:$0xf]
      %v1267 = vld [vmem:[%s657 + $0x1c] sm:$0x1]
      %v1268 = vld [vmem:[%s657 + $0x20] sm:$0xf]
      %v1269 = vld [vmem:[%s657 + $0x24] sm:$0x1]
      %v1270 = vld [vmem:[%s657 + $0x28] sm:$0xf]
      %v1271 = vld [vmem:[%s657 + $0x2c] sm:$0x1]
      %v1272 = vld [vmem:[%s657 + $0x30] sm:$0xf]
      %v1273 = vld [vmem:[%s657 + $0x34] sm:$0x1]
      %v1274 = vld [vmem:[%s657 + $0x38] sm:$0xf]
      %v1275 = vld [vmem:[%s657 + $0x3c] sm:$0x1]
      %v1277 = vshrl.u32 %v1260, 16
      %v1279 = vrot.slane %v1277, 4
      %v1280 = vshll.u32 %v1260, 16
      %v1282 = vrot.slane %v1280, 5
      %v1283 = vor.u32 %v1279, %v1282
      %v1284 = vrot.slane %v1283, 4
      %v1286 = vshll.u32 %v1261, 16
      %v1288 = vrot.slane %v1286, 5
      %v1289 = vsel %vm816, %v1284, %v1288
      %v1291 = vshrl.u32 %v1262, 16
      %v1293 = vrot.slane %v1291, 4
      %v1294 = vshll.u32 %v1262, 16
      %v1296 = vrot.slane %v1294, 5
      %v1297 = vor.u32 %v1293, %v1296
      %v1298 = vrot.slane %v1297, 4
      %v1300 = vshll.u32 %v1263, 16
      %v1302 = vrot.slane %v1300, 5
      %v1303 = vsel %vm816, %v1298, %v1302
      %v1305 = vshrl.u32 %v1264, 16
      %v1307 = vrot.slane %v1305, 4
      %v1308 = vshll.u32 %v1264, 16
      %v1310 = vrot.slane %v1308, 5
      %v1311 = vor.u32 %v1307, %v1310
      %v1312 = vrot.slane %v1311, 4
      %v1314 = vshll.u32 %v1265, 16
      %v1316 = vrot.slane %v1314, 5
      %v1317 = vsel %vm816, %v1312, %v1316
      %v1319 = vshrl.u32 %v1266, 16
      %v1321 = vrot.slane %v1319, 4
      %v1322 = vshll.u32 %v1266, 16
      %v1324 = vrot.slane %v1322, 5
      %v1325 = vor.u32 %v1321, %v1324
      %v1326 = vrot.slane %v1325, 4
      %v1328 = vshll.u32 %v1267, 16
      %v1330 = vrot.slane %v1328, 5
      %v1331 = vsel %vm816, %v1326, %v1330
      %v1333 = vshrl.u32 %v1268, 16
      %v1335 = vrot.slane %v1333, 4
      %v1336 = vshll.u32 %v1268, 16
      %v1338 = vrot.slane %v1336, 5
      %v1339 = vor.u32 %v1335, %v1338
      %v1340 = vrot.slane %v1339, 4
      %v1342 = vshll.u32 %v1269, 16
      %v1344 = vrot.slane %v1342, 5
      %v1345 = vsel %vm816, %v1340, %v1344
      %v1347 = vshrl.u32 %v1270, 16
      %v1349 = vrot.slane %v1347, 4
      %v1350 = vshll.u32 %v1270, 16
      %v1352 = vrot.slane %v1350, 5
      %v1353 = vor.u32 %v1349, %v1352
      %v1354 = vrot.slane %v1353, 4
      %v1356 = vshll.u32 %v1271, 16
      %v1358 = vrot.slane %v1356, 5
      %v1359 = vsel %vm816, %v1354, %v1358
      %v1361 = vshrl.u32 %v1272, 16
      %v1363 = vrot.slane %v1361, 4
      %v1364 = vshll.u32 %v1272, 16
      %v1366 = vrot.slane %v1364, 5
      %v1367 = vor.u32 %v1363, %v1366
      %v1368 = vrot.slane %v1367, 4
      %v1370 = vshll.u32 %v1273, 16
      %v1372 = vrot.slane %v1370, 5
      %v1373 = vsel %vm816, %v1368, %v1372
      %v1375 = vshrl.u32 %v1274, 16
      %v1377 = vrot.slane %v1375, 4
      %v1378 = vshll.u32 %v1274, 16
      %v1380 = vrot.slane %v1378, 5
      %v1381 = vor.u32 %v1377, %v1380
      %v1382 = vrot.slane %v1381, 4
      %v1384 = vshll.u32 %v1275, 16
      %v1386 = vrot.slane %v1384, 5
      %v1387 = vsel %vm816, %v1382, %v1386
      %s1388 = scalar_lea.vmem %s3, 16
      %v1389 = vld [vmem:[%s1388] sm:$0xf]
      %v1390 = vunpack.c.l.b16 %v1289
      %v1391 = vunpack.c.l.b16 %v1303
      %v1392 = vunpack.c.l.b16 %v1317
      %v1393 = vunpack.c.l.b16 %v1331
      %v1394 = vunpack.c.l.b16 %v1345
      %v1395 = vunpack.c.l.b16 %v1359
      %v1396 = vunpack.c.l.b16 %v1373
      %v1397 = vunpack.c.l.b16 %v1387
      %v1398 = vpack.c.b16 %v1391, %v1390
      %v1399 = vpack.c.b16 %v1393, %v1392
      %v1400 = vpack.c.b16 %v1395, %v1394
      %v1401 = vpack.c.b16 %v1397, %v1396
      %v1403 = vsel %vm943, %v1398, 0
      %v1406 = vsel %vm943, %v1399, 0
      %v1409 = vsel %vm943, %v1400, 0
      %v1412 = vsel %vm943, %v1401, 0
      %v1415 = vsel %vm956, %v1389, 0
      %1417 = vmatpush.bf16.msra.mxu0 0
      %1418 = vmatpush.bf16.msra.mxu0 0
      %1419 = vmatpush.bf16.msra.mxu0 0
      %1420 = vmatpush.bf16.msra.mxu0 0
      %1421 = vmatpush.bf16.msra.mxu0 0
      %1422 = vmatpush.bf16.msra.mxu0 0
      %1423 = vmatpush.bf16.msra.mxu0 0
      %1424 = vmatpush.bf16.msra.mxu0 %v1415
      %1425 = vmatmul.bf16.gmra.mxu0 %v1403
      %v1426 = vpop.f32.mrf.mxu0
      %v1427 = vadd.f32 0.0, %v1426
      %v1428 = vpop.f32.mrf.mxu0
      %v1429 = vadd.f32 0.0, %v1428
      %1430 = vmatmul.bf16.gmra.mxu0 %v1406
      %v1431 = vpop.f32.mrf.mxu0
      %v1432 = vadd.f32 0.0, %v1431
      %v1433 = vpop.f32.mrf.mxu0
      %v1434 = vadd.f32 0.0, %v1433
      %1435 = vmatmul.bf16.gmra.mxu0 %v1409
      %v1436 = vpop.f32.mrf.mxu0
      %v1437 = vadd.f32 0.0, %v1436
      %v1438 = vpop.f32.mrf.mxu0
      %v1439 = vadd.f32 0.0, %v1438
      %1440 = vmatmul.bf16.gmra.mxu0 %v1412
      %v1441 = vpop.f32.mrf.mxu0
      %v1442 = vadd.f32 0.0, %v1441
      %v1443 = vpop.f32.mrf.mxu0
      %v1444 = vadd.f32 0.0, %v1443
      %1445 = vdwg.mxu0
      %v1446 = vadd.f32 %v1252, %v1427
      %v1447 = vadd.f32 %v1253, %v1429
      %v1448 = vadd.f32 %v1254, %v1432
      %v1449 = vadd.f32 %v1255, %v1434
      %v1450 = vadd.f32 %v1256, %v1437
      %v1451 = vadd.f32 %v1257, %v1439
      %v1452 = vadd.f32 %v1258, %v1442
      %v1453 = vadd.f32 %v1259, %v1444
      %v1454 = vld [vmem:[%s657] sm:$0xe]
      %v1455 = vld [vmem:[%s657 + $0x8] sm:$0xe]
      %v1456 = vld [vmem:[%s657 + $0x10] sm:$0xe]
      %v1457 = vld [vmem:[%s657 + $0x18] sm:$0xe]
      %v1458 = vld [vmem:[%s657 + $0x20] sm:$0xe]
      %v1459 = vld [vmem:[%s657 + $0x28] sm:$0xe]
      %v1460 = vld [vmem:[%s657 + $0x30] sm:$0xe]
      %v1461 = vld [vmem:[%s657 + $0x38] sm:$0xe]
      %v1478 = vrot.slane %v1454, 5
      %v1479 = vrot.slane %v1478, 4
      %v1480 = vrot.slane %v1261, 5
      %v1481 = vsel %vm1079, %v1479, %v1480
      %v1482 = vrot.slane %v1455, 5
      %v1483 = vrot.slane %v1482, 4
      %v1484 = vrot.slane %v1263, 5
      %v1485 = vsel %vm1079, %v1483, %v1484
      %v1486 = vrot.slane %v1456, 5
      %v1487 = vrot.slane %v1486, 4
      %v1488 = vrot.slane %v1265, 5
      %v1489 = vsel %vm1079, %v1487, %v1488
      %v1490 = vrot.slane %v1457, 5
      %v1491 = vrot.slane %v1490, 4
      %v1492 = vrot.slane %v1267, 5
      %v1493 = vsel %vm1079, %v1491, %v1492
      %v1494 = vrot.slane %v1458, 5
      %v1495 = vrot.slane %v1494, 4
      %v1496 = vrot.slane %v1269, 5
      %v1497 = vsel %vm1079, %v1495, %v1496
      %v1498 = vrot.slane %v1459, 5
      %v1499 = vrot.slane %v1498, 4
      %v1500 = vrot.slane %v1271, 5
      %v1501 = vsel %vm1079, %v1499, %v1500
      %v1502 = vrot.slane %v1460, 5
      %v1503 = vrot.slane %v1502, 4
      %v1504 = vrot.slane %v1273, 5
      %v1505 = vsel %vm1079, %v1503, %v1504
      %v1506 = vrot.slane %v1461, 5
      %v1507 = vrot.slane %v1506, 4
      %v1508 = vrot.slane %v1275, 5
      %v1509 = vsel %vm1079, %v1507, %v1508
      %s1510 = scalar_lea.vmem %s3, 20
      %v1511 = vld [vmem:[%s1510] sm:$0xf]
      %v1512 = vunpack.c.l.b16 %v1481
      %v1513 = vunpack.c.l.b16 %v1485
      %v1514 = vunpack.c.l.b16 %v1489
      %v1515 = vunpack.c.l.b16 %v1493
      %v1516 = vunpack.c.l.b16 %v1497
      %v1517 = vunpack.c.l.b16 %v1501
      %v1518 = vunpack.c.l.b16 %v1505
      %v1519 = vunpack.c.l.b16 %v1509
      %v1520 = vpack.c.b16 %v1513, %v1512
      %v1521 = vpack.c.b16 %v1515, %v1514
      %v1522 = vpack.c.b16 %v1517, %v1516
      %v1523 = vpack.c.b16 %v1519, %v1518
      %v1525 = vsel %vm943, %v1520, 0
      %v1528 = vsel %vm943, %v1521, 0
      %v1531 = vsel %vm943, %v1522, 0
      %v1534 = vsel %vm943, %v1523, 0
      %v1537 = vsel %vm956, %v1511, 0
      %1539 = vmatpush.bf16.msra.mxu0 0
      %1540 = vmatpush.bf16.msra.mxu0 0
      %1541 = vmatpush.bf16.msra.mxu0 0
      %1542 = vmatpush.bf16.msra.mxu0 0
      %1543 = vmatpush.bf16.msra.mxu0 0
      %1544 = vmatpush.bf16.msra.mxu0 0
      %1545 = vmatpush.bf16.msra.mxu0 0
      %1546 = vmatpush.bf16.msra.mxu0 %v1537
      %1547 = vmatmul.bf16.gmra.mxu0 %v1525
      %v1548 = vpop.f32.mrf.mxu0
      %v1549 = vadd.f32 0.0, %v1548
      %v1550 = vpop.f32.mrf.mxu0
      %v1551 = vadd.f32 0.0, %v1550
      %1552 = vmatmul.bf16.gmra.mxu0 %v1528
      %v1553 = vpop.f32.mrf.mxu0
      %v1554 = vadd.f32 0.0, %v1553
      %v1555 = vpop.f32.mrf.mxu0
      %v1556 = vadd.f32 0.0, %v1555
      %1557 = vmatmul.bf16.gmra.mxu0 %v1531
      %v1558 = vpop.f32.mrf.mxu0
      %v1559 = vadd.f32 0.0, %v1558
      %v1560 = vpop.f32.mrf.mxu0
      %v1561 = vadd.f32 0.0, %v1560
      %1562 = vmatmul.bf16.gmra.mxu0 %v1534
      %v1563 = vpop.f32.mrf.mxu0
      %v1564 = vadd.f32 0.0, %v1563
      %v1565 = vpop.f32.mrf.mxu0
      %v1566 = vadd.f32 0.0, %v1565
      %1567 = vdwg.mxu0
      %v1568 = vadd.f32 %v1446, %v1549
      %v1569 = vadd.f32 %v1447, %v1551
      %v1570 = vadd.f32 %v1448, %v1554
      %v1571 = vadd.f32 %v1449, %v1556
      %v1572 = vadd.f32 %v1450, %v1559
      %v1573 = vadd.f32 %v1451, %v1561
      %v1574 = vadd.f32 %v1452, %v1564
      %v1575 = vadd.f32 %v1453, %v1566
      %s1576 = scalar_lea.vmem [#allocation2], 16
      %v1577 = vld [vmem:[%s1576] sm:$0xf]
      %v1578 = vld [vmem:[%s1576 + $0x8] sm:$0xf]
      %v1579 = vld [vmem:[%s1576 + $0x10] sm:$0xf]
      %v1580 = vld [vmem:[%s1576 + $0x18] sm:$0xf]
      %v1581 = vld [vmem:[%s1576 + $0x20] sm:$0xf]
      %v1582 = vld [vmem:[%s1576 + $0x28] sm:$0xf]
      %v1583 = vld [vmem:[%s1576 + $0x30] sm:$0xf]
      %v1584 = vld [vmem:[%s1576 + $0x38] sm:$0xf]
      %s1585 = scalar_lea.vmem %s3, 24
      %v1586 = vld [vmem:[%s1585] sm:$0xf]
      %v1595 = vunpack.c.l.b16 %v1577
      %v1596 = vunpack.c.l.b16 %v1578
      %v1597 = vunpack.c.l.b16 %v1579
      %v1598 = vunpack.c.l.b16 %v1580
      %v1599 = vunpack.c.l.b16 %v1581
      %v1600 = vunpack.c.l.b16 %v1582
      %v1601 = vunpack.c.l.b16 %v1583
      %v1602 = vunpack.c.l.b16 %v1584
      %v1603 = vpack.c.b16 %v1596, %v1595
      %v1604 = vpack.c.b16 %v1598, %v1597
      %v1605 = vpack.c.b16 %v1600, %v1599
      %v1606 = vpack.c.b16 %v1602, %v1601
      %v1608 = vsel %vm943, %v1603, 0
      %v1611 = vsel %vm943, %v1604, 0
      %v1614 = vsel %vm943, %v1605, 0
      %v1617 = vsel %vm943, %v1606, 0
      %v1620 = vsel %vm956, %v1586, 0
      %1622 = vmatpush.bf16.msra.mxu0 0
      %1623 = vmatpush.bf16.msra.mxu0 0
      %1624 = vmatpush.bf16.msra.mxu0 0
      %1625 = vmatpush.bf16.msra.mxu0 0
      %1626 = vmatpush.bf16.msra.mxu0 0
      %1627 = vmatpush.bf16.msra.mxu0 0
      %1628 = vmatpush.bf16.msra.mxu0 0
      %1629 = vmatpush.bf16.msra.mxu0 %v1620
      %1630 = vmatmul.bf16.gmra.mxu0 %v1608
      %v1631 = vpop.f32.mrf.mxu0
      %v1632 = vadd.f32 0.0, %v1631
      %v1633 = vpop.f32.mrf.mxu0
      %v1634 = vadd.f32 0.0, %v1633
      %1635 = vmatmul.bf16.gmra.mxu0 %v1611
      %v1636 = vpop.f32.mrf.mxu0
      %v1637 = vadd.f32 0.0, %v1636
      %v1638 = vpop.f32.mrf.mxu0
      %v1639 = vadd.f32 0.0, %v1638
      %1640 = vmatmul.bf16.gmra.mxu0 %v1614
      %v1641 = vpop.f32.mrf.mxu0
      %v1642 = vadd.f32 0.0, %v1641
      %v1643 = vpop.f32.mrf.mxu0
      %v1644 = vadd.f32 0.0, %v1643
      %1645 = vmatmul.bf16.gmra.mxu0 %v1617
      %v1646 = vpop.f32.mrf.mxu0
      %v1647 = vadd.f32 0.0, %v1646
      %v1648 = vpop.f32.mrf.mxu0
      %v1649 = vadd.f32 0.0, %v1648
      %1650 = vdwg.mxu0
      %v1651 = vadd.f32 %v1568, %v1632
      %v1652 = vadd.f32 %v1569, %v1634
      %v1653 = vadd.f32 %v1570, %v1637
      %v1654 = vadd.f32 %v1571, %v1639
      %v1655 = vadd.f32 %v1572, %v1642
      %v1656 = vadd.f32 %v1573, %v1644
      %v1657 = vadd.f32 %v1574, %v1647
      %v1658 = vadd.f32 %v1575, %v1649
      %v1659 = vld [vmem:[%s1576] sm:$0xf]
      %v1660 = vld [vmem:[%s1576 + $0x4] sm:$0x1]
      %v1661 = vld [vmem:[%s1576 + $0x8] sm:$0xf]
      %v1662 = vld [vmem:[%s1576 + $0xc] sm:$0x1]
      %v1663 = vld [vmem:[%s1576 + $0x10] sm:$0xf]
      %v1664 = vld [vmem:[%s1576 + $0x14] sm:$0x1]
      %v1665 = vld [vmem:[%s1576 + $0x18] sm:$0xf]
      %v1666 = vld [vmem:[%s1576 + $0x1c] sm:$0x1]
      %v1667 = vld [vmem:[%s1576 + $0x20] sm:$0xf]
      %v1668 = vld [vmem:[%s1576 + $0x24] sm:$0x1]
      %v1669 = vld [vmem:[%s1576 + $0x28] sm:$0xf]
      %v1670 = vld [vmem:[%s1576 + $0x2c] sm:$0x1]
      %v1671 = vld [vmem:[%s1576 + $0x30] sm:$0xf]
      %v1672 = vld [vmem:[%s1576 + $0x34] sm:$0x1]
      %v1673 = vld [vmem:[%s1576 + $0x38] sm:$0xf]
      %v1674 = vld [vmem:[%s1576 + $0x3c] sm:$0x1]
      %v1676 = vshrl.u32 %v1659, 16
      %v1678 = vrot.slane %v1676, 4
      %v1679 = vshll.u32 %v1659, 16
      %v1681 = vrot.slane %v1679, 5
      %v1682 = vor.u32 %v1678, %v1681
      %v1683 = vrot.slane %v1682, 4
      %v1685 = vshll.u32 %v1660, 16
      %v1687 = vrot.slane %v1685, 5
      %v1688 = vsel %vm816, %v1683, %v1687
      %v1690 = vshrl.u32 %v1661, 16
      %v1692 = vrot.slane %v1690, 4
      %v1693 = vshll.u32 %v1661, 16
      %v1695 = vrot.slane %v1693, 5
      %v1696 = vor.u32 %v1692, %v1695
      %v1697 = vrot.slane %v1696, 4
      %v1699 = vshll.u32 %v1662, 16
      %v1701 = vrot.slane %v1699, 5
      %v1702 = vsel %vm816, %v1697, %v1701
      %v1704 = vshrl.u32 %v1663, 16
      %v1706 = vrot.slane %v1704, 4
      %v1707 = vshll.u32 %v1663, 16
      %v1709 = vrot.slane %v1707, 5
      %v1710 = vor.u32 %v1706, %v1709
      %v1711 = vrot.slane %v1710, 4
      %v1713 = vshll.u32 %v1664, 16
      %v1715 = vrot.slane %v1713, 5
      %v1716 = vsel %vm816, %v1711, %v1715
      %v1718 = vshrl.u32 %v1665, 16
      %v1720 = vrot.slane %v1718, 4
      %v1721 = vshll.u32 %v1665, 16
      %v1723 = vrot.slane %v1721, 5
      %v1724 = vor.u32 %v1720, %v1723
      %v1725 = vrot.slane %v1724, 4
      %v1727 = vshll.u32 %v1666, 16
      %v1729 = vrot.slane %v1727, 5
      %v1730 = vsel %vm816, %v1725, %v1729
      %v1732 = vshrl.u32 %v1667, 16
      %v1734 = vrot.slane %v1732, 4
      %v1735 = vshll.u32 %v1667, 16
      %v1737 = vrot.slane %v1735, 5
      %v1738 = vor.u32 %v1734, %v1737
      %v1739 = vrot.slane %v1738, 4
      %v1741 = vshll.u32 %v1668, 16
      %v1743 = vrot.slane %v1741, 5
      %v1744 = vsel %vm816, %v1739, %v1743
      %v1746 = vshrl.u32 %v1669, 16
      %v1748 = vrot.slane %v1746, 4
      %v1749 = vshll.u32 %v1669, 16
      %v1751 = vrot.slane %v1749, 5
      %v1752 = vor.u32 %v1748, %v1751
      %v1753 = vrot.slane %v1752, 4
      %v1755 = vshll.u32 %v1670, 16
      %v1757 = vrot.slane %v1755, 5
      %v1758 = vsel %vm816, %v1753, %v1757
      %v1760 = vshrl.u32 %v1671, 16
      %v1762 = vrot.slane %v1760, 4
      %v1763 = vshll.u32 %v1671, 16
      %v1765 = vrot.slane %v1763, 5
      %v1766 = vor.u32 %v1762, %v1765
      %v1767 = vrot.slane %v1766, 4
      %v1769 = vshll.u32 %v1672, 16
      %v1771 = vrot.slane %v1769, 5
      %v1772 = vsel %vm816, %v1767, %v1771
      %v1774 = vshrl.u32 %v1673, 16
      %v1776 = vrot.slane %v1774, 4
      %v1777 = vshll.u32 %v1673, 16
      %v1779 = vrot.slane %v1777, 5
      %v1780 = vor.u32 %v1776, %v1779
      %v1781 = vrot.slane %v1780, 4
      %v1783 = vshll.u32 %v1674, 16
      %v1785 = vrot.slane %v1783, 5
      %v1786 = vsel %vm816, %v1781, %v1785
      %s1787 = scalar_lea.vmem %s3, 28
      %v1788 = vld [vmem:[%s1787] sm:$0xf]
      %v1789 = vunpack.c.l.b16 %v1688
      %v1790 = vunpack.c.l.b16 %v1702
      %v1791 = vunpack.c.l.b16 %v1716
      %v1792 = vunpack.c.l.b16 %v1730
      %v1793 = vunpack.c.l.b16 %v1744
      %v1794 = vunpack.c.l.b16 %v1758
      %v1795 = vunpack.c.l.b16 %v1772
      %v1796 = vunpack.c.l.b16 %v1786
      %v1797 = vpack.c.b16 %v1790, %v1789
      %v1798 = vpack.c.b16 %v1792, %v1791
      %v1799 = vpack.c.b16 %v1794, %v1793
      %v1800 = vpack.c.b16 %v1796, %v1795
      %v1802 = vsel %vm943, %v1797, 0
      %v1805 = vsel %vm943, %v1798, 0
      %v1808 = vsel %vm943, %v1799, 0
      %v1811 = vsel %vm943, %v1800, 0
      %v1814 = vsel %vm956, %v1788, 0
      %1816 = vmatpush.bf16.msra.mxu0 0
      %1817 = vmatpush.bf16.msra.mxu0 0
      %1818 = vmatpush.bf16.msra.mxu0 0
      %1819 = vmatpush.bf16.msra.mxu0 0
      %1820 = vmatpush.bf16.msra.mxu0 0
      %1821 = vmatpush.bf16.msra.mxu0 0
      %1822 = vmatpush.bf16.msra.mxu0 0
      %1823 = vmatpush.bf16.msra.mxu0 %v1814
      %1824 = vmatmul.bf16.gmra.mxu0 %v1802
      %v1825 = vpop.f32.mrf.mxu0
      %v1826 = vadd.f32 0.0, %v1825
      %v1827 = vpop.f32.mrf.mxu0
      %v1828 = vadd.f32 0.0, %v1827
      %1829 = vmatmul.bf16.gmra.mxu0 %v1805
      %v1830 = vpop.f32.mrf.mxu0
      %v1831 = vadd.f32 0.0, %v1830
      %v1832 = vpop.f32.mrf.mxu0
      %v1833 = vadd.f32 0.0, %v1832
      %1834 = vmatmul.bf16.gmra.mxu0 %v1808
      %v1835 = vpop.f32.mrf.mxu0
      %v1836 = vadd.f32 0.0, %v1835
      %v1837 = vpop.f32.mrf.mxu0
      %v1838 = vadd.f32 0.0, %v1837
      %1839 = vmatmul.bf16.gmra.mxu0 %v1811
      %v1840 = vpop.f32.mrf.mxu0
      %v1841 = vadd.f32 0.0, %v1840
      %v1842 = vpop.f32.mrf.mxu0
      %v1843 = vadd.f32 0.0, %v1842
      %1844 = vdwg.mxu0
      %v1845 = vadd.f32 %v1651, %v1826
      %v1846 = vadd.f32 %v1652, %v1828
      %v1847 = vadd.f32 %v1653, %v1831
      %v1848 = vadd.f32 %v1654, %v1833
      %v1849 = vadd.f32 %v1655, %v1836
      %v1850 = vadd.f32 %v1656, %v1838
      %v1851 = vadd.f32 %v1657, %v1841
      %v1852 = vadd.f32 %v1658, %v1843
      %v1853 = vld [vmem:[%s1576] sm:$0xe]
      %v1854 = vld [vmem:[%s1576 + $0x8] sm:$0xe]
      %v1855 = vld [vmem:[%s1576 + $0x10] sm:$0xe]
      %v1856 = vld [vmem:[%s1576 + $0x18] sm:$0xe]
      %v1857 = vld [vmem:[%s1576 + $0x20] sm:$0xe]
      %v1858 = vld [vmem:[%s1576 + $0x28] sm:$0xe]
      %v1859 = vld [vmem:[%s1576 + $0x30] sm:$0xe]
      %v1860 = vld [vmem:[%s1576 + $0x38] sm:$0xe]
      %v1877 = vrot.slane %v1853, 5
      %v1878 = vrot.slane %v1877, 4
      %v1879 = vrot.slane %v1660, 5
      %v1880 = vsel %vm1079, %v1878, %v1879
      %v1881 = vrot.slane %v1854, 5
      %v1882 = vrot.slane %v1881, 4
      %v1883 = vrot.slane %v1662, 5
      %v1884 = vsel %vm1079, %v1882, %v1883
      %v1885 = vrot.slane %v1855, 5
      %v1886 = vrot.slane %v1885, 4
      %v1887 = vrot.slane %v1664, 5
      %v1888 = vsel %vm1079, %v1886, %v1887
      %v1889 = vrot.slane %v1856, 5
      %v1890 = vrot.slane %v1889, 4
      %v1891 = vrot.slane %v1666, 5
      %v1892 = vsel %vm1079, %v1890, %v1891
      %v1893 = vrot.slane %v1857, 5
      %v1894 = vrot.slane %v1893, 4
      %v1895 = vrot.slane %v1668, 5
      %v1896 = vsel %vm1079, %v1894, %v1895
      %v1897 = vrot.slane %v1858, 5
      %v1898 = vrot.slane %v1897, 4
      %v1899 = vrot.slane %v1670, 5
      %v1900 = vsel %vm1079, %v1898, %v1899
      %v1901 = vrot.slane %v1859, 5
      %v1902 = vrot.slane %v1901, 4
      %v1903 = vrot.slane %v1672, 5
      %v1904 = vsel %vm1079, %v1902, %v1903
      %v1905 = vrot.slane %v1860, 5
      %v1906 = vrot.slane %v1905, 4
      %v1907 = vrot.slane %v1674, 5
      %v1908 = vsel %vm1079, %v1906, %v1907
      %s1909 = scalar_lea.vmem %s3, 32
      %v1910 = vld [vmem:[%s1909] sm:$0xf]
      %v1911 = vunpack.c.l.b16 %v1880
      %v1912 = vunpack.c.l.b16 %v1884
      %v1913 = vunpack.c.l.b16 %v1888
      %v1914 = vunpack.c.l.b16 %v1892
      %v1915 = vunpack.c.l.b16 %v1896
      %v1916 = vunpack.c.l.b16 %v1900
      %v1917 = vunpack.c.l.b16 %v1904
      %v1918 = vunpack.c.l.b16 %v1908
      %v1919 = vpack.c.b16 %v1912, %v1911
      %v1920 = vpack.c.b16 %v1914, %v1913
      %v1921 = vpack.c.b16 %v1916, %v1915
      %v1922 = vpack.c.b16 %v1918, %v1917
      %v1924 = vsel %vm943, %v1919, 0
      %v1927 = vsel %vm943, %v1920, 0
      %v1930 = vsel %vm943, %v1921, 0
      %v1933 = vsel %vm943, %v1922, 0
      %v1936 = vsel %vm956, %v1910, 0
      %1938 = vmatpush.bf16.msra.mxu0 0
      %1939 = vmatpush.bf16.msra.mxu0 0
      %1940 = vmatpush.bf16.msra.mxu0 0
      %1941 = vmatpush.bf16.msra.mxu0 0
      %1942 = vmatpush.bf16.msra.mxu0 0
      %1943 = vmatpush.bf16.msra.mxu0 0
      %1944 = vmatpush.bf16.msra.mxu0 0
      %1945 = vmatpush.bf16.msra.mxu0 %v1936
      %1946 = vmatmul.bf16.gmra.mxu0 %v1924
      %v1947 = vpop.f32.mrf.mxu0
      %v1948 = vadd.f32 0.0, %v1947
      %v1949 = vpop.f32.mrf.mxu0
      %v1950 = vadd.f32 0.0, %v1949
      %1951 = vmatmul.bf16.gmra.mxu0 %v1927
      %v1952 = vpop.f32.mrf.mxu0
      %v1953 = vadd.f32 0.0, %v1952
      %v1954 = vpop.f32.mrf.mxu0
      %v1955 = vadd.f32 0.0, %v1954
      %1956 = vmatmul.bf16.gmra.mxu0 %v1930
      %v1957 = vpop.f32.mrf.mxu0
      %v1958 = vadd.f32 0.0, %v1957
      %v1959 = vpop.f32.mrf.mxu0
      %v1960 = vadd.f32 0.0, %v1959
      %1961 = vmatmul.bf16.gmra.mxu0 %v1933
      %v1962 = vpop.f32.mrf.mxu0
      %v1963 = vadd.f32 0.0, %v1962
      %v1964 = vpop.f32.mrf.mxu0
      %v1965 = vadd.f32 0.0, %v1964
      %1966 = vdwg.mxu0
      %v1967 = vadd.f32 %v1845, %v1948
      %v1968 = vadd.f32 %v1846, %v1950
      %v1969 = vadd.f32 %v1847, %v1953
      %v1970 = vadd.f32 %v1848, %v1955
      %v1971 = vadd.f32 %v1849, %v1958
      %v1972 = vadd.f32 %v1850, %v1960
      %v1973 = vadd.f32 %v1851, %v1963
      %v1974 = vadd.f32 %v1852, %v1965
      %v1975 = vpack.c.bf16 %v1967, %v1967
      %v1976 = vpack.c.bf16 %v1968, %v1968
      %v1977 = vpack.c.bf16 %v1969, %v1969
      %v1978 = vpack.c.bf16 %v1970, %v1970
      %v1979 = vpack.c.bf16 %v1971, %v1971
      %v1980 = vpack.c.bf16 %v1972, %v1972
      %v1981 = vpack.c.bf16 %v1973, %v1973
      %v1982 = vpack.c.bf16 %v1974, %v1974
      %vm1983 = vcmask 60416
      %1984 = vst.msk [vmem:[%s446] sm:$0xf] %vm1983, %v1975
      %1985 = vst.msk [vmem:[%s446 + $0x4] sm:$0xf] %vm1983, %v1976
      %1986 = vst.msk [vmem:[%s446 + $0x8] sm:$0xf] %vm1983, %v1977
      %1987 = vst.msk [vmem:[%s446 + $0xc] sm:$0xf] %vm1983, %v1978
      %1988 = vst.msk [vmem:[%s446 + $0x10] sm:$0xf] %vm1983, %v1979
      %1989 = vst.msk [vmem:[%s446 + $0x14] sm:$0xf] %vm1983, %v1980
      %1990 = vst.msk [vmem:[%s446 + $0x18] sm:$0xf] %vm1983, %v1981
      %1991 = vst.msk [vmem:[%s446 + $0x1c] sm:$0xf] %vm1983, %v1982
      %v1992 = vsel %vm943, %v1967, 0.0
      %v1993 = vsel %vm943, %v1968, 0.0
      %v1994 = vadd.f32 %v1992, %v1993
      %v1995 = vsel %vm943, %v1969, 0.0
      %v1996 = vadd.f32 %v1994, %v1995
      %v1997 = vsel %vm943, %v1970, 0.0
      %v1998 = vadd.f32 %v1996, %v1997
      %v1999 = vsel %vm943, %v1971, 0.0
      %v2000 = vadd.f32 %v1998, %v1999
      %v2001 = vsel %vm943, %v1972, 0.0
      %v2002 = vadd.f32 %v2000, %v2001
      %v2003 = vsel %vm943, %v1973, 0.0
      %v2004 = vadd.f32 %v2002, %v2003
      %v2005 = vsel %vm943, %v1974, 0.0
      %v2006 = vadd.f32 %v2004, %v2005
      %v2007 = vrot.slane %v2006, 4
      %v2008 = vadd.f32 %v2006, %v2007
      %v2009 = vrot.slane %v2008, 2
      %v2010 = vadd.f32 %v2008, %v2009
      %v2011 = vrot.slane %v2010, 1
      %v2012 = vadd.f32 %v2010, %v2011
      %v2013 = vrcp.pop 64.0
      %v2014 = vmul.f32 64.0, %v2013
      %v2015 = vsub.f32 1.0, %v2014
      %v2016 = vmul.f32 %v2013, %v2015
      %v2017 = vadd.f32 %v2013, %v2016
      %vm2018 = vweird.f32 %v2013
      %v2019 = vsel %vm2018, %v2013, %v2017
      %v2020 = vmul.f32 %v2012, %v2019
      %v2021 = vsub.f32 %v1967, %v2020
      %v2022 = vsub.f32 %v1968, %v2020
      %v2023 = vsub.f32 %v1969, %v2020
      %v2024 = vsub.f32 %v1970, %v2020
      %v2025 = vsub.f32 %v1971, %v2020
      %v2026 = vsub.f32 %v1972, %v2020
      %v2027 = vsub.f32 %v1973, %v2020
      %v2028 = vsub.f32 %v1974, %v2020
      %v2029 = vmul.f32 %v2021, %v2021
      %v2030 = vmul.f32 %v2022, %v2022
      %v2031 = vmul.f32 %v2023, %v2023
      %v2032 = vmul.f32 %v2024, %v2024
      %v2033 = vmul.f32 %v2025, %v2025
      %v2034 = vmul.f32 %v2026, %v2026
      %v2035 = vmul.f32 %v2027, %v2027
      %v2036 = vmul.f32 %v2028, %v2028
      %v2037 = vsel %vm943, %v2029, 0.0
      %v2038 = vsel %vm943, %v2030, 0.0
      %v2039 = vadd.f32 %v2037, %v2038
      %v2040 = vsel %vm943, %v2031, 0.0
      %v2041 = vadd.f32 %v2039, %v2040
      %v2042 = vsel %vm943, %v2032, 0.0
      %v2043 = vadd.f32 %v2041, %v2042
      %v2044 = vsel %vm943, %v2033, 0.0
      %v2045 = vadd.f32 %v2043, %v2044
      %v2046 = vsel %vm943, %v2034, 0.0
      %v2047 = vadd.f32 %v2045, %v2046
      %v2048 = vsel %vm943, %v2035, 0.0
      %v2049 = vadd.f32 %v2047, %v2048
      %v2050 = vsel %vm943, %v2036, 0.0
      %v2051 = vadd.f32 %v2049, %v2050
      %v2052 = vrot.slane %v2051, 4
      %v2053 = vadd.f32 %v2051, %v2052
      %v2054 = vrot.slane %v2053, 2
      %v2055 = vadd.f32 %v2053, %v2054
      %v2056 = vrot.slane %v2055, 1
      %v2057 = vadd.f32 %v2055, %v2056
      %vm2058 = vcmask 1040384
      %v2059 = vsel %vm2058, %v2012, %v2057
      %vm2060 = vcmask 58368
      %2061 = vst.msk [vmem:[%s454] sm:$0x3] %vm2060, %v2059
      %s2062 = smul.u32 8, %s24
      %p2063 = scmp.lt.s32.totalorder %s23, 1
      %s2064 = scalar_select %p2063, %s23, 1
      %p2065 = scmp.lt.s32.totalorder %s2062, 7
      %s2066 = scalar_select %p2065, %s2062, 7
      %s2067 = smul.addr %s2064, 8
      %s2068 = sadd.s32 %s2066, %s2067
      %s2069 = smul.addr %s2068, 4
      %s2070 = scalar_lea.vmem %s6, %s2069
      %p2071 = scmp.lt.s32.totalorder %s23, 1
      %s2072 = scalar_select %p2071, %s23, 1
      %p2073 = scmp.lt.s32.totalorder %s24, 0
      %s2074 = scalar_select %p2073, %s24, 0
      %s2075 = sadd.s32 %s2074, %s2072
      %s2076 = smul.addr %s2075, 2
      %s2077 = scalar_lea.vmem %s7, %s2076
      // Predicated region
      $region61: #{down2.6} parent=43 // pred_check
        %p2078 = pneg %p214
      $region62: #{down2.6} parent=43 // pred_check_branch
        %2080 = sbr.rel (%p2078) target = $region64
      $region63: #{down2.6} parent=43 // pred_region
        %s2081 = smul.u32 8, %s24
      $region64: #{down2.6} parent=43 // pred_fallthru
        _
      // Predicated region
      $region65: #{down2.6} parent=43 // pred_check
        %p2082 = pneg %p242
      $region66: #{down2.6} parent=43 // pred_check_branch
        %2084 = sbr.rel (%p2082) target = $region68
      $region67: #{down2.6} parent=43 // pred_region
        _
      $region68: #{down2.6} parent=43 // pred_fallthru
        _
    $region44: #{down2.6} parent=5 // pred_fallthru
      _
    %p2085 = scmp.le.s32.totalorder 2, %s14
    // Predicated region
    $region69: #{down2.6} parent=5 // pred_check
      %p2086 = pneg %p2085
    $region70: #{down2.6} parent=5 // pred_check_branch
      %2088 = sbr.rel (%p2086) target = $region72
    $region71: #{down2.6} parent=5 // pred_region
      %s2089 = ssub.s32 %s14, 2
      // Predicated region
      $region73: #{down2.6} parent=71 // pred_check
        %p2090 = pneg %p220
      $region74: #{down2.6} parent=71 // pred_check_branch
        %2092 = sbr.rel (%p2090) target = $region76
      $region75: #{down2.6} parent=71 // pred_region
        %s2093 = smul.u32 8, %s26
        %p2094 = scmp.lt.s32.totalorder %s25, 1
        %s2095 = scalar_select %p2094, %s25, 1
        %p2096 = scmp.lt.s32.totalorder %s2093, 7
        %s2097 = scalar_select %p2096, %s2093, 7
        %s2098 = smul.addr %s2095, 8
        %s2099 = sadd.s32 %s2097, %s2098
        %s2100 = smul.addr %s2099, 4
        %s2101 = scalar_lea.vmem %s6, %s2100
      $region76: #{down2.6} parent=71 // pred_fallthru
        _
      // Predicated region
      $region77: #{down2.6} parent=71 // pred_check
        %p2102 = pneg %p248
      $region78: #{down2.6} parent=71 // pred_check_branch
        %2104 = sbr.rel (%p2102) target = $region80
      $region79: #{down2.6} parent=71 // pred_region
        %p2105 = scmp.lt.s32.totalorder %s25, 1
        %s2106 = scalar_select %p2105, %s25, 1
        %p2107 = scmp.lt.s32.totalorder %s26, 0
        %s2108 = scalar_select %p2107, %s26, 0
        %s2109 = sadd.s32 %s2108, %s2106
        %s2110 = smul.addr %s2109, 2
        %s2111 = scalar_lea.vmem %s7, %s2110
      $region80: #{down2.6} parent=71 // pred_fallthru
        _
    $region72: #{down2.6} parent=5 // pred_fallthru
      _
  $region6: #{down2.6} parent=0 // loop_footer
    %s18 = sadd.s32 1, %s14
  $region7: #{down2.6} parent=0 // loop_footer_branch
    %13 = sbr.rel target = $region3
  $region8: #{down2.6} parent=0 // loop_exit
    _

</llo_original>
